<compile_context>
chip_gen: v5e
topology: v5e:2x2
jax: 0.10.0
libtpu: 0.0.40
codegen_flags: <defaults>
</compile_context>

<pallas_src>
import functools
import math

import jax
import jax.numpy as jnp
from jax import lax
from jax.experimental import pallas as pl
from jax.experimental.pallas import tpu as pltpu


# ----------------------------- fused attention-layer kernel -----------------------------
def _fused_rel_mha_kernel(
    x_ref,        # (Bb, T, C)   activations (lane-dense)
    wqkv_ref,     # (C, 3C)      fused [q|k|v] weight, q-cols pre-scaled, pre-cast
    bqkv_ref,     # (1, 3C)      f32, q-part pre-scaled
    wo_ref,       # (C, C)       output projection weight, pre-cast
    bo_ref,       # (1, C)       f32
    kembt_ref,    # (D, R)       relative key embedding (transposed), pre-cast
    vemb_ref,     # (R, D)       relative value embedding, pre-cast
    mask_ref,     # (Bb, T, T)   int8 keep-mask (nonzero = attend)
    o_ref,        # (Bb, T, C)
    pband_ref,    # scratch (T, R) f32 — banded attention probs
    merged_ref,   # scratch (Bb*T, C) matmul_dtype — merged head outputs
    *,
    n_heads,
    head_dim,
    weff,
    matmul_dtype,
):
    f32 = jnp.float32
    md = matmul_dtype
    Bb, T, C = x_ref.shape
    H, D = n_heads, head_dim
    R = 2 * weff + 1

    # ---- fused q/k/v projection for all Bb*T rows: one (Bb*T,C)x(C,3C) MXU matmul ----
    x2 = x_ref[...].reshape(Bb * T, C).astype(md)
    qkv = jnp.dot(x2, wqkv_ref[...], preferred_element_type=f32) + bqkv_ref[...]

    # shared across sub-batches and heads: only the diag iota stays live
    col = lax.broadcasted_iota(jnp.int32, (T, T), 1)
    row = lax.broadcasted_iota(jnp.int32, (T, T), 0)
    diag = col - row                                               # j - i

    k_emb_t = kembt_ref[...]                                       # (D, R)
    v_emb = vemb_ref[...]                                          # (R, D)

    # H is small for this module (typically 2); static unroll is fine.
    for b in range(Bb):
        keep = mask_ref[b] != 0                                    # (T, T) bool (i8 compare)
        qkv_b = qkv[b * T:(b + 1) * T, :]                          # (T, 3C) f32
        for h in range(H):
            # q already carries 1/sqrt(D) (folded into the weights)
            q = qkv_b[:, h * D:(h + 1) * D].astype(md)
            k = qkv_b[:, C + h * D:C + (h + 1) * D].astype(md)
            v = qkv_b[:, 2 * C + h * D:2 * C + (h + 1) * D].astype(md)

            # content scores: contract last dims (no in-kernel k.T)
            scores = lax.dot_general(q, k, (((1,), (1,)), ((), ())),
                                     preferred_element_type=f32)   # (T, T)

            # relative-key logits on the MXU: (T, D) x (D, R)
            rel_k = jnp.dot(q, k_emb_t, preferred_element_type=f32)  # (T, R)

            # skew: scores[i, j] += rel_k[i, (j - i) + weff] for |j - i| <= weff
            # (one cheap compare per pass, recomputed — nothing held live)
            for idx in range(R):
                dm = diag == (idx - weff)
                scores = scores + jnp.where(dm, rel_k[:, idx:idx + 1], 0.0)

            # mask + softmax (matches masked_fill(mask == 0, -1e4) then softmax)
            scores = jnp.where(keep, scores, -10000.0)
            m = jnp.max(scores, axis=-1, keepdims=True)
            e = jnp.exp(scores - m)
            p = e * pl.reciprocal(jnp.sum(e, axis=-1, keepdims=True), approx=True)

            # content output: (T, T) x (T, D)
            head_out = jnp.dot(p.astype(md), v, preferred_element_type=f32)

            # banded probs: write each diagonal straight into the VMEM scratch
            for idx in range(R):
                dm = diag == (idx - weff)
                pband_ref[:, idx:idx + 1] = jnp.sum(jnp.where(dm, p, 0.0),
                                                    axis=-1, keepdims=True)
            # relative-value term: (T, R) x (R, D)
            head_out = head_out + jnp.dot(pband_ref[...].astype(md), v_emb,
                                          preferred_element_type=f32)

            # merge heads in VMEM (no HBM concat); output projection done once below
            merged_ref[b * T:(b + 1) * T, h * D:(h + 1) * D] = head_out.astype(md)

    # single output projection with full K = C depth: (Bb*T, C) x (C, C)
    out = jnp.dot(merged_ref[...], wo_ref[...],
                  preferred_element_type=f32) + bo_ref[...]
    o_ref[...] = out.reshape(Bb, T, C).astype(o_ref.dtype)


# ----------------------------- full module forward -----------------------------
def relative_mha_forward(x, attn_mask, params, n_heads, window_size, *,
                         matmul_dtype=jnp.float32, batch_block=None):
    """x: (B, C, T), attn_mask: (B, 1, T, T) (nonzero = attend) -> (B, C, T).

    matmul_dtype=jnp.bfloat16 is recommended on v6e/v7x (native MXU rate,
    half the resident weight VMEM); accumulation stays f32.
    """
    B, C, T = x.shape
    H = n_heads
    D = C // H
    weff = min(window_size, T - 1)        # effective window (== torch pad+slice support)
    R = 2 * weff + 1
    inv_scale = 1.0 / math.sqrt(D)

    # block several batch elements per grid step so the projection matmuls fill
    # the MXU's M dimension at small T (pick largest divisor of B with modest rows)
    if batch_block is None:
        batch_block = 1
        for bb in range(1, B + 1):
            if B % bb == 0 and bb * T <= 512 and bb <= 8:
                batch_block = bb
    Bb = batch_block
    assert B % Bb == 0, "batch_block must divide the batch size"

    # lane-dense (B, T, C) layout for the kernel (accepted as layout plumbing)
    x_btc = jnp.transpose(x, (0, 2, 1))

    # fused projection weights (1x1 conv == per-timestep linear); 1/sqrt(D) is
    # folded into the q columns/bias; everything pre-cast to matmul_dtype.
    w_qkv = jnp.concatenate(
        [params["wq"].T * inv_scale, params["wk"].T, params["wv"].T],
        axis=1).astype(matmul_dtype)                              # (C, 3C)
    b_qkv = jnp.concatenate(
        [params["bq"] * inv_scale, params["bk"], params["bv"]]
    ).reshape(1, 3 * C).astype(jnp.float32)
    w_o = params["wo"].T.astype(matmul_dtype)                     # (C, C)
    b_o = params["bo"].reshape(1, C).astype(jnp.float32)

    # relative embeddings restricted to the effective window (rows outside it are
    # all-zero in the torch pad/slice); key embedding passed pre-transposed.
    lo, hi = window_size - weff, window_size + weff + 1
    k_emb_t = params["emb_rel_k"][lo:hi].T.astype(matmul_dtype)   # (D, R)
    v_emb = params["emb_rel_v"][lo:hi].astype(matmul_dtype)       # (R, D)

    # compact int8 keep-mask
    mask_i8 = (attn_mask != 0).reshape(B, T, T).astype(jnp.int8)

    # explicit scoped-VMEM limit sized to actual buffers with headroom
    md_size = jnp.dtype(matmul_dtype).itemsize
    x_size = jnp.dtype(x.dtype).itemsize
    est = (4 * Bb * T * C * x_size                                 # x + out, double-buffered
           + 2 * Bb * T * T                                        # int8 mask
           + 2 * ((3 * C * C + C * C + 2 * D * R) * md_size + 16 * C)  # resident weights
           + T * R * 4 + Bb * T * C * md_size                      # scratches
           + Bb * T * 3 * C * 4 + 8 * T * T * 4)                   # qkv + (T,T) temporaries
    vmem_limit = int(min(64 << 20, max(2 * est, 16 << 20)))

    kernel = functools.partial(
        _fused_rel_mha_kernel,
        n_heads=H, head_dim=D, weff=weff, matmul_dtype=matmul_dtype)

    out_btc = pl.pallas_call(
        kernel,
        out_shape=jax.ShapeDtypeStruct((B, T, C), x.dtype),
        grid=(B // Bb,),
        in_specs=[
            pl.BlockSpec((Bb, T, C), lambda b: (b, 0, 0)),         # x (per-step block)
            pl.BlockSpec((C, 3 * C), lambda b: (0, 0)),            # w_qkv (resident)
            pl.BlockSpec((1, 3 * C), lambda b: (0, 0)),            # b_qkv
            pl.BlockSpec((C, C), lambda b: (0, 0)),                # w_o
            pl.BlockSpec((1, C), lambda b: (0, 0)),                # b_o
            pl.BlockSpec((D, R), lambda b: (0, 0)),                # k_emb^T
            pl.BlockSpec((R, D), lambda b: (0, 0)),                # v_emb
            pl.BlockSpec((Bb, T, T), lambda b: (b, 0, 0)),         # keep-mask
        ],
        out_specs=pl.BlockSpec((Bb, T, C), lambda b: (b, 0, 0)),
        scratch_shapes=[
            pltpu.VMEM((T, R), jnp.float32),                       # banded probs
            pltpu.VMEM((Bb * T, C), matmul_dtype),                 # merged head outputs
        ],
        compiler_params=pltpu.CompilerParams(
            dimension_semantics=("parallel",),
            vmem_limit_bytes=vmem_limit),
    )(x_btc, w_qkv, b_qkv, w_o, b_o, k_emb_t, v_emb, mask_i8)

    return jnp.transpose(out_btc, (0, 2, 1))  # back to (B, C, T)


# ----------------------------- pure-JAX reference (mirrors the torch code) -----------------------------
def reference_forward(x, attn_mask, params, n_heads, window_size):
    B, C, T = x.shape
    H, W = n_heads, window_size
    D = C // H
    scale = math.sqrt(D)

    def conv1x1(t, w, b):
        return jnp.einsum("oc,bct->bot", w, t) + b[None, :, None]

    q = conv1x1(x, params["wq"], params["bq"])
    k = conv1x1(x, params["wk"], params["bk"])
    v = conv1x1(x, params["wv"], params["bv"])
    query = q.reshape(B, H, D, T).transpose(0, 1, 3, 2)
    key = k.reshape(B, H, D, T).transpose(0, 1, 3, 2)
    value = v.reshape(B, H, D, T).transpose(0, 1, 3, 2)
    scores = jnp.matmul(query / scale, key.transpose(0, 1, 3, 2))

    pad_length = max(0, T - (W + 1))
    start = max(0, W + 1 - T)
    end = start + 2 * T - 1
    k_emb = jnp.pad(params["emb_rel_k"], ((pad_length, pad_length), (0, 0)))[start:end]
    rel_logits = jnp.matmul(query / scale, k_emb.T)                       # (B,H,T,2T-1)
    rel_logits = jnp.pad(rel_logits, ((0, 0), (0, 0), (0, 0), (0, 1)))
    rel_logits = rel_logits.reshape(B, H, 2 * T * T)
    rel_logits = jnp.pad(rel_logits, ((0, 0), (0, 0), (0, T - 1)))
    scores_local = rel_logits.reshape(B, H, T + 1, 2 * T - 1)[:, :, :T, T - 1:]
    scores = scores + scores_local

    scores = jnp.where(attn_mask == 0, -10000.0, scores)
    p = jax.nn.softmax(scores, axis=-1)
    output = jnp.matmul(p, value)

    p_pad = jnp.pad(p, ((0, 0), (0, 0), (0, 0), (0, T - 1)))
    p_pad = p_pad.reshape(B, H, T * (2 * T - 1))
    p_pad = jnp.pad(p_pad, ((0, 0), (0, 0), (T, 0)))
    relative_weights = p_pad.reshape(B, H, T, 2 * T)[:, :, :, 1:]
    v_emb = jnp.pad(params["emb_rel_v"], ((pad_length, pad_length), (0, 0)))[start:end]
    output = output + jnp.matmul(relative_weights, v_emb)

    xo = output.transpose(0, 1, 3, 2).reshape(B, C, T)
    return conv1x1(xo, params["wo"], params["bo"])


# ----------------------------- main -----------------------------
if __name__ == "__main__":
    B, C, T = 2, 32, 16
    H, W = 4, 4
    D = C // H

    key = jax.random.PRNGKey(0)
    ks = jax.random.split(key, 12)

    def xavier(k, fan_out, fan_in):
        lim = math.sqrt(6.0 / (fan_in + fan_out))
        return jax.random.uniform(k, (fan_out, fan_in), jnp.float32, -lim, lim)

    params = {
        "wq": xavier(ks[0], C, C), "bq": 0.02 * jax.random.normal(ks[1], (C,), jnp.float32),
        "wk": xavier(ks[2], C, C), "bk": 0.02 * jax.random.normal(ks[3], (C,), jnp.float32),
        "wv": xavier(ks[4], C, C), "bv": 0.02 * jax.random.normal(ks[5], (C,), jnp.float32),
        "wo": xavier(ks[6], C, C), "bo": 0.02 * jax.random.normal(ks[7], (C,), jnp.float32),
        "emb_rel_k": (D ** -0.5) * jax.random.normal(ks[8], (2 * W + 1, D), jnp.float32),
        "emb_rel_v": (D ** -0.5) * jax.random.normal(ks[9], (2 * W + 1, D), jnp.float32),
    }

    x = jax.random.normal(ks[10], (B, C, T), jnp.float32)
    lengths = jnp.array([T, 11])
    tmask = (jnp.arange(T)[None, :] < lengths[:, None]).astype(jnp.float32)  # (B, T)
    attn_mask = tmask[:, None, :, None] * tmask[:, None, None, :]            # (B, 1, T, T)

    # f32 MXU path (strict check)
    out = relative_mha_forward(x, attn_mask, params, H, W)
    out = jax.block_until_ready(out)

    with jax.default_matmul_precision("highest"):
        ref = reference_forward(x, attn_mask, params, H, W)
    ref = jax.block_until_ready(ref)

    assert out.shape == (B, C, T)
    max_err = float(jnp.max(jnp.abs(out - ref)))
    assert max_err < 5e-3, f"f32 mismatch vs reference, max_err={max_err}"

    # bf16 MXU path (recommended on v6e/v7x) — loose sanity check
    out_bf16 = relative_mha_forward(x, attn_mask, params, H, W,
                                    matmul_dtype=jnp.bfloat16)
    out_bf16 = jax.block_until_ready(out_bf16)
    max_err_bf16 = float(jnp.max(jnp.abs(out_bf16 - ref)))
    assert max_err_bf16 < 0.25, f"bf16 mismatch vs reference, max_err={max_err_bf16}"

    print("KERNEL_OK")
</pallas_src>

<mosaic_0001>
module attributes {stable_mosaic.version = 11 : i64} {
  func.func @_fused_rel_mha_kernel(%arg0: i32, %arg1: memref<2x16x32xf32, #tpu.memory_space<vmem>>, %arg2: memref<32x96xf32, #tpu.memory_space<vmem>>, %arg3: memref<1x96xf32, #tpu.memory_space<vmem>>, %arg4: memref<32x32xf32, #tpu.memory_space<vmem>>, %arg5: memref<1x32xf32, #tpu.memory_space<vmem>>, %arg6: memref<8x9xf32, #tpu.memory_space<vmem>>, %arg7: memref<9x8xf32, #tpu.memory_space<vmem>>, %arg8: memref<2x16x16xi8, #tpu.memory_space<vmem>>, %arg9: memref<2x16x32xf32, #tpu.memory_space<vmem>>, %arg10: memref<16x9xf32, #tpu.memory_space<vmem>>, %arg11: memref<32x32xf32, #tpu.memory_space<vmem>>) attributes {dimension_semantics = [#tpu.dimension_semantics<parallel>], iteration_bounds = array<i64: 1>, scalar_prefetch = 0 : i64, scratch_operands = 2 : i64, tpu.core_type = #tpu.core_type<tc>, window_params = [{transform_indices = @transform_0, window_bounds = array<i64: 2, 16, 32>}, {pipeline_mode = #tpu.pipeline_mode<synchronous>, transform_indices = @transform_1, window_bounds = array<i64: 32, 96>}, {pipeline_mode = #tpu.pipeline_mode<synchronous>, transform_indices = @transform_2, window_bounds = array<i64: 1, 96>}, {pipeline_mode = #tpu.pipeline_mode<synchronous>, transform_indices = @transform_3, window_bounds = array<i64: 32, 32>}, {pipeline_mode = #tpu.pipeline_mode<synchronous>, transform_indices = @transform_4, window_bounds = array<i64: 1, 32>}, {pipeline_mode = #tpu.pipeline_mode<synchronous>, transform_indices = @transform_5, window_bounds = array<i64: 8, 9>}, {pipeline_mode = #tpu.pipeline_mode<synchronous>, transform_indices = @transform_6, window_bounds = array<i64: 9, 8>}, {transform_indices = @transform_7, window_bounds = array<i64: 2, 16, 16>}, {transform_indices = @transform_8, window_bounds = array<i64: 2, 16, 32>}]} {
    %c0 = arith.constant 0 : index
    %c0_0 = arith.constant 0 : index
    %c0_1 = arith.constant 0 : index
    %0 = vector.load %arg1[%c0, %c0_0, %c0_1] : memref<2x16x32xf32, #tpu.memory_space<vmem>>, vector<2x16x32xf32>
    %1 = vector.shape_cast %0 : vector<2x16x32xf32> to vector<32x32xf32>
    %c0_2 = arith.constant 0 : index
    %c0_3 = arith.constant 0 : index
    %2 = vector.load %arg2[%c0_2, %c0_3] : memref<32x96xf32, #tpu.memory_space<vmem>>, vector<32x96xf32>
    %cst = arith.constant dense<0.000000e+00> : vector<32x96xf32>
    %3 = tpu.matmul %1, %2, %cst {dimension_numbers = #tpu.dot_dimension_numbers<[1], [0], [0], [1], [0, 0, 1, 1], [], []>} : vector<32x32xf32>, vector<32x96xf32>, vector<32x96xf32> -> vector<32x96xf32>
    %c0_4 = arith.constant 0 : index
    %c0_5 = arith.constant 0 : index
    %4 = vector.load %arg3[%c0_4, %c0_5] : memref<1x96xf32, #tpu.memory_space<vmem>>, vector<1x96xf32>
    %5 = vector.broadcast %4 : vector<1x96xf32> to vector<32x96xf32>
    %6 = arith.addf %3, %5 : vector<32x96xf32>
    %7 = tpu.iota {dimensions = array<i32: 1>} : vector<16x16xi32>
    %8 = tpu.iota {dimensions = array<i32: 0>} : vector<16x16xi32>
    %9 = arith.subi %7, %8 : vector<16x16xi32>
    %c0_6 = arith.constant 0 : index
    %c0_7 = arith.constant 0 : index
    %10 = vector.load %arg6[%c0_6, %c0_7] : memref<8x9xf32, #tpu.memory_space<vmem>>, vector<8x9xf32>
    %c0_8 = arith.constant 0 : index
    %c0_9 = arith.constant 0 : index
    %11 = vector.load %arg7[%c0_8, %c0_9] : memref<9x8xf32, #tpu.memory_space<vmem>>, vector<9x8xf32>
    %c0_10 = arith.constant 0 : index
    %c0_11 = arith.constant 0 : index
    %c0_12 = arith.constant 0 : index
    %12 = vector.load %arg8[%c0_10, %c0_11, %c0_12] : memref<2x16x16xi8, #tpu.memory_space<vmem>>, vector<1x16x16xi8>
    %13 = vector.shape_cast %12 : vector<1x16x16xi8> to vector<16x16xi8>
    %c0_i8 = arith.constant 0 : i8
    %14 = vector.broadcast %c0_i8 : i8 to vector<16x16xi8>
    %15 = arith.cmpi ne, %13, %14 : vector<16x16xi8>
    %16 = vector.extract_strided_slice %6 {offsets = [0, 0], sizes = [16, 96], strides = [1, 1]} : vector<32x96xf32> to vector<16x96xf32>
    %17 = vector.extract_strided_slice %16 {offsets = [0, 0], sizes = [16, 8], strides = [1, 1]} : vector<16x96xf32> to vector<16x8xf32>
    %18 = vector.extract_strided_slice %16 {offsets = [0, 32], sizes = [16, 8], strides = [1, 1]} : vector<16x96xf32> to vector<16x8xf32>
    %19 = vector.extract_strided_slice %16 {offsets = [0, 64], sizes = [16, 8], strides = [1, 1]} : vector<16x96xf32> to vector<16x8xf32>
    %cst_13 = arith.constant dense<0.000000e+00> : vector<16x16xf32>
    %20 = tpu.matmul %17, %18, %cst_13 {dimension_numbers = #tpu.dot_dimension_numbers<[1], [1], [0], [0], [0, 0, 1, 0], [], []>} : vector<16x8xf32>, vector<16x8xf32>, vector<16x16xf32> -> vector<16x16xf32>
    %cst_14 = arith.constant dense<0.000000e+00> : vector<16x9xf32>
    %21 = tpu.matmul %17, %10, %cst_14 {dimension_numbers = #tpu.dot_dimension_numbers<[1], [0], [0], [1], [0, 0, 1, 1], [], []>} : vector<16x8xf32>, vector<8x9xf32>, vector<16x9xf32> -> vector<16x9xf32>
    %c-4_i32 = arith.constant -4 : i32
    %22 = vector.broadcast %c-4_i32 : i32 to vector<16x16xi32>
    %23 = arith.cmpi eq, %9, %22 : vector<16x16xi32>
    %24 = vector.extract_strided_slice %21 {offsets = [0, 0], sizes = [16, 1], strides = [1, 1]} : vector<16x9xf32> to vector<16x1xf32>
    %cst_15 = arith.constant 0.000000e+00 : f32
    %25 = vector.shape_cast %24 : vector<16x1xf32> to vector<16x1xf32>
    %26 = vector.broadcast %25 : vector<16x1xf32> to vector<16x16xf32>
    %27 = vector.broadcast %cst_15 : f32 to vector<16x16xf32>
    %28 = arith.select %23, %26, %27 : vector<16x16xi1>, vector<16x16xf32>
    %29 = arith.addf %20, %28 : vector<16x16xf32>
    %c-3_i32 = arith.constant -3 : i32
    %30 = vector.broadcast %c-3_i32 : i32 to vector<16x16xi32>
    %31 = arith.cmpi eq, %9, %30 : vector<16x16xi32>
    %32 = vector.extract_strided_slice %21 {offsets = [0, 1], sizes = [16, 1], strides = [1, 1]} : vector<16x9xf32> to vector<16x1xf32>
    %cst_16 = arith.constant 0.000000e+00 : f32
    %33 = vector.shape_cast %32 : vector<16x1xf32> to vector<16x1xf32>
    %34 = vector.broadcast %33 : vector<16x1xf32> to vector<16x16xf32>
    %35 = vector.broadcast %cst_16 : f32 to vector<16x16xf32>
    %36 = arith.select %31, %34, %35 : vector<16x16xi1>, vector<16x16xf32>
    %37 = arith.addf %29, %36 : vector<16x16xf32>
    %c-2_i32 = arith.constant -2 : i32
    %38 = vector.broadcast %c-2_i32 : i32 to vector<16x16xi32>
    %39 = arith.cmpi eq, %9, %38 : vector<16x16xi32>
    %40 = vector.extract_strided_slice %21 {offsets = [0, 2], sizes = [16, 1], strides = [1, 1]} : vector<16x9xf32> to vector<16x1xf32>
    %cst_17 = arith.constant 0.000000e+00 : f32
    %41 = vector.shape_cast %40 : vector<16x1xf32> to vector<16x1xf32>
    %42 = vector.broadcast %41 : vector<16x1xf32> to vector<16x16xf32>
    %43 = vector.broadcast %cst_17 : f32 to vector<16x16xf32>
    %44 = arith.select %39, %42, %43 : vector<16x16xi1>, vector<16x16xf32>
    %45 = arith.addf %37, %44 : vector<16x16xf32>
    %c-1_i32 = arith.constant -1 : i32
    %46 = vector.broadcast %c-1_i32 : i32 to vector<16x16xi32>
    %47 = arith.cmpi eq, %9, %46 : vector<16x16xi32>
    %48 = vector.extract_strided_slice %21 {offsets = [0, 3], sizes = [16, 1], strides = [1, 1]} : vector<16x9xf32> to vector<16x1xf32>
    %cst_18 = arith.constant 0.000000e+00 : f32
    %49 = vector.shape_cast %48 : vector<16x1xf32> to vector<16x1xf32>
    %50 = vector.broadcast %49 : vector<16x1xf32> to vector<16x16xf32>
    %51 = vector.broadcast %cst_18 : f32 to vector<16x16xf32>
    %52 = arith.select %47, %50, %51 : vector<16x16xi1>, vector<16x16xf32>
    %53 = arith.addf %45, %52 : vector<16x16xf32>
    %c0_i32 = arith.constant 0 : i32
    %54 = vector.broadcast %c0_i32 : i32 to vector<16x16xi32>
    %55 = arith.cmpi eq, %9, %54 : vector<16x16xi32>
    %56 = vector.extract_strided_slice %21 {offsets = [0, 4], sizes = [16, 1], strides = [1, 1]} : vector<16x9xf32> to vector<16x1xf32>
    %cst_19 = arith.constant 0.000000e+00 : f32
    %57 = vector.shape_cast %56 : vector<16x1xf32> to vector<16x1xf32>
    %58 = vector.broadcast %57 : vector<16x1xf32> to vector<16x16xf32>
    %59 = vector.broadcast %cst_19 : f32 to vector<16x16xf32>
    %60 = arith.select %55, %58, %59 : vector<16x16xi1>, vector<16x16xf32>
    %61 = arith.addf %53, %60 : vector<16x16xf32>
    %c1_i32 = arith.constant 1 : i32
    %62 = vector.broadcast %c1_i32 : i32 to vector<16x16xi32>
    %63 = arith.cmpi eq, %9, %62 : vector<16x16xi32>
    %64 = vector.extract_strided_slice %21 {offsets = [0, 5], sizes = [16, 1], strides = [1, 1]} : vector<16x9xf32> to vector<16x1xf32>
    %cst_20 = arith.constant 0.000000e+00 : f32
    %65 = vector.shape_cast %64 : vector<16x1xf32> to vector<16x1xf32>
    %66 = vector.broadcast %65 : vector<16x1xf32> to vector<16x16xf32>
    %67 = vector.broadcast %cst_20 : f32 to vector<16x16xf32>
    %68 = arith.select %63, %66, %67 : vector<16x16xi1>, vector<16x16xf32>
    %69 = arith.addf %61, %68 : vector<16x16xf32>
    %c2_i32 = arith.constant 2 : i32
    %70 = vector.broadcast %c2_i32 : i32 to vector<16x16xi32>
    %71 = arith.cmpi eq, %9, %70 : vector<16x16xi32>
    %72 = vector.extract_strided_slice %21 {offsets = [0, 6], sizes = [16, 1], strides = [1, 1]} : vector<16x9xf32> to vector<16x1xf32>
    %cst_21 = arith.constant 0.000000e+00 : f32
    %73 = vector.shape_cast %72 : vector<16x1xf32> to vector<16x1xf32>
    %74 = vector.broadcast %73 : vector<16x1xf32> to vector<16x16xf32>
    %75 = vector.broadcast %cst_21 : f32 to vector<16x16xf32>
    %76 = arith.select %71, %74, %75 : vector<16x16xi1>, vector<16x16xf32>
    %77 = arith.addf %69, %76 : vector<16x16xf32>
    %c3_i32 = arith.constant 3 : i32
    %78 = vector.broadcast %c3_i32 : i32 to vector<16x16xi32>
    %79 = arith.cmpi eq, %9, %78 : vector<16x16xi32>
    %80 = vector.extract_strided_slice %21 {offsets = [0, 7], sizes = [16, 1], strides = [1, 1]} : vector<16x9xf32> to vector<16x1xf32>
    %cst_22 = arith.constant 0.000000e+00 : f32
    %81 = vector.shape_cast %80 : vector<16x1xf32> to vector<16x1xf32>
    %82 = vector.broadcast %81 : vector<16x1xf32> to vector<16x16xf32>
    %83 = vector.broadcast %cst_22 : f32 to vector<16x16xf32>
    %84 = arith.select %79, %82, %83 : vector<16x16xi1>, vector<16x16xf32>
    %85 = arith.addf %77, %84 : vector<16x16xf32>
    %c4_i32 = arith.constant 4 : i32
    %86 = vector.broadcast %c4_i32 : i32 to vector<16x16xi32>
    %87 = arith.cmpi eq, %9, %86 : vector<16x16xi32>
    %88 = vector.extract_strided_slice %21 {offsets = [0, 8], sizes = [16, 1], strides = [1, 1]} : vector<16x9xf32> to vector<16x1xf32>
    %cst_23 = arith.constant 0.000000e+00 : f32
    %89 = vector.shape_cast %88 : vector<16x1xf32> to vector<16x1xf32>
    %90 = vector.broadcast %89 : vector<16x1xf32> to vector<16x16xf32>
    %91 = vector.broadcast %cst_23 : f32 to vector<16x16xf32>
    %92 = arith.select %87, %90, %91 : vector<16x16xi1>, vector<16x16xf32>
    %93 = arith.addf %85, %92 : vector<16x16xf32>
    %cst_24 = arith.constant -1.000000e+04 : f32
    %94 = vector.broadcast %cst_24 : f32 to vector<16x16xf32>
    %95 = arith.select %15, %93, %94 : vector<16x16xi1>, vector<16x16xf32>
    %cst_25 = arith.constant dense<0xFF800000> : vector<16xf32>
    %96 = vector.multi_reduction <maximumf>, %95, %cst_25 [1] : vector<16x16xf32> to vector<16xf32>
    %97 = vector.shape_cast %96 : vector<16xf32> to vector<16x1xf32>
    %98 = vector.broadcast %97 : vector<16x1xf32> to vector<16x16xf32>
    %99 = arith.subf %95, %98 : vector<16x16xf32>
    %100 = math.exp %99 : vector<16x16xf32>
    %cst_26 = arith.constant dense<0.000000e+00> : vector<16xf32>
    %101 = vector.multi_reduction <add>, %100, %cst_26 [1] : vector<16x16xf32> to vector<16xf32>
    %102 = vector.shape_cast %101 : vector<16xf32> to vector<16x1xf32>
    %103 = tpu.reciprocal %102 {approx = true} : vector<16x1xf32> -> vector<16x1xf32>
    %104 = vector.broadcast %103 : vector<16x1xf32> to vector<16x16xf32>
    %105 = arith.mulf %100, %104 : vector<16x16xf32>
    %cst_27 = arith.constant dense<0.000000e+00> : vector<16x8xf32>
    %106 = tpu.matmul %105, %19, %cst_27 {dimension_numbers = #tpu.dot_dimension_numbers<[1], [0], [0], [1], [0, 0, 1, 1], [], []>} : vector<16x16xf32>, vector<16x8xf32>, vector<16x8xf32> -> vector<16x8xf32>
    %c-4_i32_28 = arith.constant -4 : i32
    %107 = vector.broadcast %c-4_i32_28 : i32 to vector<16x16xi32>
    %108 = arith.cmpi eq, %9, %107 : vector<16x16xi32>
    %cst_29 = arith.constant 0.000000e+00 : f32
    %109 = vector.broadcast %cst_29 : f32 to vector<16x16xf32>
    %110 = arith.select %108, %105, %109 : vector<16x16xi1>, vector<16x16xf32>
    %cst_30 = arith.constant dense<0.000000e+00> : vector<16xf32>
    %111 = vector.multi_reduction <add>, %110, %cst_30 [1] : vector<16x16xf32> to vector<16xf32>
    %112 = vector.shape_cast %111 : vector<16xf32> to vector<16x1xf32>
    %c0_31 = arith.constant 0 : index
    %c0_32 = arith.constant 0 : index
    %113 = vector.load %arg10[%c0_31, %c0_32] : memref<16x9xf32, #tpu.memory_space<vmem>>, vector<16x1xf32>
    tpu.vector_store %arg10[%c0_31, %c0_32], %112 {strides = array<i32>} : memref<16x9xf32, #tpu.memory_space<vmem>>, vector<16x1xf32>,
    %c-3_i32_33 = arith.constant -3 : i32
    %114 = vector.broadcast %c-3_i32_33 : i32 to vector<16x16xi32>
    %115 = arith.cmpi eq, %9, %114 : vector<16x16xi32>
    %cst_34 = arith.constant 0.000000e+00 : f32
    %116 = vector.broadcast %cst_34 : f32 to vector<16x16xf32>
    %117 = arith.select %115, %105, %116 : vector<16x16xi1>, vector<16x16xf32>
    %cst_35 = arith.constant dense<0.000000e+00> : vector<16xf32>
    %118 = vector.multi_reduction <add>, %117, %cst_35 [1] : vector<16x16xf32> to vector<16xf32>
    %119 = vector.shape_cast %118 : vector<16xf32> to vector<16x1xf32>
    %c0_36 = arith.constant 0 : index
    %c1 = arith.constant 1 : index
    %120 = vector.load %arg10[%c0_36, %c1] : memref<16x9xf32, #tpu.memory_space<vmem>>, vector<16x1xf32>
    tpu.vector_store %arg10[%c0_36, %c1], %119 {strides = array<i32>} : memref<16x9xf32, #tpu.memory_space<vmem>>, vector<16x1xf32>,
    %c-2_i32_37 = arith.constant -2 : i32
    %121 = vector.broadcast %c-2_i32_37 : i32 to vector<16x16xi32>
    %122 = arith.cmpi eq, %9, %121 : vector<16x16xi32>
    %cst_38 = arith.constant 0.000000e+00 : f32
    %123 = vector.broadcast %cst_38 : f32 to vector<16x16xf32>
    %124 = arith.select %122, %105, %123 : vector<16x16xi1>, vector<16x16xf32>
    %cst_39 = arith.constant dense<0.000000e+00> : vector<16xf32>
    %125 = vector.multi_reduction <add>, %124, %cst_39 [1] : vector<16x16xf32> to vector<16xf32>
    %126 = vector.shape_cast %125 : vector<16xf32> to vector<16x1xf32>
    %c0_40 = arith.constant 0 : index
    %c2 = arith.constant 2 : index
    %127 = vector.load %arg10[%c0_40, %c2] : memref<16x9xf32, #tpu.memory_space<vmem>>, vector<16x1xf32>
    tpu.vector_store %arg10[%c0_40, %c2], %126 {strides = array<i32>} : memref<16x9xf32, #tpu.memory_space<vmem>>, vector<16x1xf32>,
    %c-1_i32_41 = arith.constant -1 : i32
    %128 = vector.broadcast %c-1_i32_41 : i32 to vector<16x16xi32>
    %129 = arith.cmpi eq, %9, %128 : vector<16x16xi32>
    %cst_42 = arith.constant 0.000000e+00 : f32
    %130 = vector.broadcast %cst_42 : f32 to vector<16x16xf32>
    %131 = arith.select %129, %105, %130 : vector<16x16xi1>, vector<16x16xf32>
    %cst_43 = arith.constant dense<0.000000e+00> : vector<16xf32>
    %132 = vector.multi_reduction <add>, %131, %cst_43 [1] : vector<16x16xf32> to vector<16xf32>
    %133 = vector.shape_cast %132 : vector<16xf32> to vector<16x1xf32>
    %c0_44 = arith.constant 0 : index
    %c3 = arith.constant 3 : index
    %134 = vector.load %arg10[%c0_44, %c3] : memref<16x9xf32, #tpu.memory_space<vmem>>, vector<16x1xf32>
    tpu.vector_store %arg10[%c0_44, %c3], %133 {strides = array<i32>} : memref<16x9xf32, #tpu.memory_space<vmem>>, vector<16x1xf32>,
    %c0_i32_45 = arith.constant 0 : i32
    %135 = vector.broadcast %c0_i32_45 : i32 to vector<16x16xi32>
    %136 = arith.cmpi eq, %9, %135 : vector<16x16xi32>
    %cst_46 = arith.constant 0.000000e+00 : f32
    %137 = vector.broadcast %cst_46 : f32 to vector<16x16xf32>
    %138 = arith.select %136, %105, %137 : vector<16x16xi1>, vector<16x16xf32>
    %cst_47 = arith.constant dense<0.000000e+00> : vector<16xf32>
    %139 = vector.multi_reduction <add>, %138, %cst_47 [1] : vector<16x16xf32> to vector<16xf32>
    %140 = vector.shape_cast %139 : vector<16xf32> to vector<16x1xf32>
    %c0_48 = arith.constant 0 : index
    %c4 = arith.constant 4 : index
    %141 = vector.load %arg10[%c0_48, %c4] : memref<16x9xf32, #tpu.memory_space<vmem>>, vector<16x1xf32>
    tpu.vector_store %arg10[%c0_48, %c4], %140 {strides = array<i32>} : memref<16x9xf32, #tpu.memory_space<vmem>>, vector<16x1xf32>,
    %c1_i32_49 = arith.constant 1 : i32
    %142 = vector.broadcast %c1_i32_49 : i32 to vector<16x16xi32>
    %143 = arith.cmpi eq, %9, %142 : vector<16x16xi32>
    %cst_50 = arith.constant 0.000000e+00 : f32
    %144 = vector.broadcast %cst_50 : f32 to vector<16x16xf32>
    %145 = arith.select %143, %105, %144 : vector<16x16xi1>, vector<16x16xf32>
    %cst_51 = arith.constant dense<0.000000e+00> : vector<16xf32>
    %146 = vector.multi_reduction <add>, %145, %cst_51 [1] : vector<16x16xf32> to vector<16xf32>
    %147 = vector.shape_cast %146 : vector<16xf32> to vector<16x1xf32>
    %c0_52 = arith.constant 0 : index
    %c5 = arith.constant 5 : index
    %148 = vector.load %arg10[%c0_52, %c5] : memref<16x9xf32, #tpu.memory_space<vmem>>, vector<16x1xf32>
    tpu.vector_store %arg10[%c0_52, %c5], %147 {strides = array<i32>} : memref<16x9xf32, #tpu.memory_space<vmem>>, vector<16x1xf32>,
    %c2_i32_53 = arith.constant 2 : i32
    %149 = vector.broadcast %c2_i32_53 : i32 to vector<16x16xi32>
    %150 = arith.cmpi eq, %9, %149 : vector<16x16xi32>
    %cst_54 = arith.constant 0.000000e+00 : f32
    %151 = vector.broadcast %cst_54 : f32 to vector<16x16xf32>
    %152 = arith.select %150, %105, %151 : vector<16x16xi1>, vector<16x16xf32>
    %cst_55 = arith.constant dense<0.000000e+00> : vector<16xf32>
    %153 = vector.multi_reduction <add>, %152, %cst_55 [1] : vector<16x16xf32> to vector<16xf32>
    %154 = vector.shape_cast %153 : vector<16xf32> to vector<16x1xf32>
    %c0_56 = arith.constant 0 : index
    %c6 = arith.constant 6 : index
    %155 = vector.load %arg10[%c0_56, %c6] : memref<16x9xf32, #tpu.memory_space<vmem>>, vector<16x1xf32>
    tpu.vector_store %arg10[%c0_56, %c6], %154 {strides = array<i32>} : memref<16x9xf32, #tpu.memory_space<vmem>>, vector<16x1xf32>,
    %c3_i32_57 = arith.constant 3 : i32
    %156 = vector.broadcast %c3_i32_57 : i32 to vector<16x16xi32>
    %157 = arith.cmpi eq, %9, %156 : vector<16x16xi32>
    %cst_58 = arith.constant 0.000000e+00 : f32
    %158 = vector.broadcast %cst_58 : f32 to vector<16x16xf32>
    %159 = arith.select %157, %105, %158 : vector<16x16xi1>, vector<16x16xf32>
    %cst_59 = arith.constant dense<0.000000e+00> : vector<16xf32>
    %160 = vector.multi_reduction <add>, %159, %cst_59 [1] : vector<16x16xf32> to vector<16xf32>
    %161 = vector.shape_cast %160 : vector<16xf32> to vector<16x1xf32>
    %c0_60 = arith.constant 0 : index
    %c7 = arith.constant 7 : index
    %162 = vector.load %arg10[%c0_60, %c7] : memref<16x9xf32, #tpu.memory_space<vmem>>, vector<16x1xf32>
    tpu.vector_store %arg10[%c0_60, %c7], %161 {strides = array<i32>} : memref<16x9xf32, #tpu.memory_space<vmem>>, vector<16x1xf32>,
    %c4_i32_61 = arith.constant 4 : i32
    %163 = vector.broadcast %c4_i32_61 : i32 to vector<16x16xi32>
    %164 = arith.cmpi eq, %9, %163 : vector<16x16xi32>
    %cst_62 = arith.constant 0.000000e+00 : f32
    %165 = vector.broadcast %cst_62 : f32 to vector<16x16xf32>
    %166 = arith.select %164, %105, %165 : vector<16x16xi1>, vector<16x16xf32>
    %cst_63 = arith.constant dense<0.000000e+00> : vector<16xf32>
    %167 = vector.multi_reduction <add>, %166, %cst_63 [1] : vector<16x16xf32> to vector<16xf32>
    %168 = vector.shape_cast %167 : vector<16xf32> to vector<16x1xf32>
    %c0_64 = arith.constant 0 : index
    %c8 = arith.constant 8 : index
    %169 = vector.load %arg10[%c0_64, %c8] : memref<16x9xf32, #tpu.memory_space<vmem>>, vector<16x1xf32>
    tpu.vector_store %arg10[%c0_64, %c8], %168 {strides = array<i32>} : memref<16x9xf32, #tpu.memory_space<vmem>>, vector<16x1xf32>,
    %c0_65 = arith.constant 0 : index
    %c0_66 = arith.constant 0 : index
    %170 = vector.load %arg10[%c0_65, %c0_66] : memref<16x9xf32, #tpu.memory_space<vmem>>, vector<16x9xf32>
    %cst_67 = arith.constant dense<0.000000e+00> : vector<16x8xf32>
    %171 = tpu.matmul %170, %11, %cst_67 {dimension_numbers = #tpu.dot_dimension_numbers<[1], [0], [0], [1], [0, 0, 1, 1], [], []>} : vector<16x9xf32>, vector<9x8xf32>, vector<16x8xf32> -> vector<16x8xf32>
    %172 = arith.addf %106, %171 : vector<16x8xf32>
    %c0_68 = arith.constant 0 : index
    %c0_69 = arith.constant 0 : index
    %173 = vector.load %arg11[%c0_68, %c0_69] : memref<32x32xf32, #tpu.memory_space<vmem>>, vector<16x8xf32>
    tpu.vector_store %arg11[%c0_68, %c0_69], %172 {strides = array<i32>} : memref<32x32xf32, #tpu.memory_space<vmem>>, vector<16x8xf32>,
    %174 = vector.extract_strided_slice %16 {offsets = [0, 8], sizes = [16, 8], strides = [1, 1]} : vector<16x96xf32> to vector<16x8xf32>
    %175 = vector.extract_strided_slice %16 {offsets = [0, 40], sizes = [16, 8], strides = [1, 1]} : vector<16x96xf32> to vector<16x8xf32>
    %176 = vector.extract_strided_slice %16 {offsets = [0, 72], sizes = [16, 8], strides = [1, 1]} : vector<16x96xf32> to vector<16x8xf32>
    %cst_70 = arith.constant dense<0.000000e+00> : vector<16x16xf32>
    %177 = tpu.matmul %174, %175, %cst_70 {dimension_numbers = #tpu.dot_dimension_numbers<[1], [1], [0], [0], [0, 0, 1, 0], [], []>} : vector<16x8xf32>, vector<16x8xf32>, vector<16x16xf32> -> vector<16x16xf32>
    %cst_71 = arith.constant dense<0.000000e+00> : vector<16x9xf32>
    %178 = tpu.matmul %174, %10, %cst_71 {dimension_numbers = #tpu.dot_dimension_numbers<[1], [0], [0], [1], [0, 0, 1, 1], [], []>} : vector<16x8xf32>, vector<8x9xf32>, vector<16x9xf32> -> vector<16x9xf32>
    %c-4_i32_72 = arith.constant -4 : i32
    %179 = vector.broadcast %c-4_i32_72 : i32 to vector<16x16xi32>
    %180 = arith.cmpi eq, %9, %179 : vector<16x16xi32>
    %181 = vector.extract_strided_slice %178 {offsets = [0, 0], sizes = [16, 1], strides = [1, 1]} : vector<16x9xf32> to vector<16x1xf32>
    %cst_73 = arith.constant 0.000000e+00 : f32
    %182 = vector.shape_cast %181 : vector<16x1xf32> to vector<16x1xf32>
    %183 = vector.broadcast %182 : vector<16x1xf32> to vector<16x16xf32>
    %184 = vector.broadcast %cst_73 : f32 to vector<16x16xf32>
    %185 = arith.select %180, %183, %184 : vector<16x16xi1>, vector<16x16xf32>
    %186 = arith.addf %177, %185 : vector<16x16xf32>
    %c-3_i32_74 = arith.constant -3 : i32
    %187 = vector.broadcast %c-3_i32_74 : i32 to vector<16x16xi32>
    %188 = arith.cmpi eq, %9, %187 : vector<16x16xi32>
    %189 = vector.extract_strided_slice %178 {offsets = [0, 1], sizes = [16, 1], strides = [1, 1]} : vector<16x9xf32> to vector<16x1xf32>
    %cst_75 = arith.constant 0.000000e+00 : f32
    %190 = vector.shape_cast %189 : vector<16x1xf32> to vector<16x1xf32>
    %191 = vector.broadcast %190 : vector<16x1xf32> to vector<16x16xf32>
    %192 = vector.broadcast %cst_75 : f32 to vector<16x16xf32>
    %193 = arith.select %188, %191, %192 : vector<16x16xi1>, vector<16x16xf32>
    %194 = arith.addf %186, %193 : vector<16x16xf32>
    %c-2_i32_76 = arith.constant -2 : i32
    %195 = vector.broadcast %c-2_i32_76 : i32 to vector<16x16xi32>
    %196 = arith.cmpi eq, %9, %195 : vector<16x16xi32>
    %197 = vector.extract_strided_slice %178 {offsets = [0, 2], sizes = [16, 1], strides = [1, 1]} : vector<16x9xf32> to vector<16x1xf32>
    %cst_77 = arith.constant 0.000000e+00 : f32
    %198 = vector.shape_cast %197 : vector<16x1xf32> to vector<16x1xf32>
    %199 = vector.broadcast %198 : vector<16x1xf32> to vector<16x16xf32>
    %200 = vector.broadcast %cst_77 : f32 to vector<16x16xf32>
    %201 = arith.select %196, %199, %200 : vector<16x16xi1>, vector<16x16xf32>
    %202 = arith.addf %194, %201 : vector<16x16xf32>
    %c-1_i32_78 = arith.constant -1 : i32
    %203 = vector.broadcast %c-1_i32_78 : i32 to vector<16x16xi32>
    %204 = arith.cmpi eq, %9, %203 : vector<16x16xi32>
    %205 = vector.extract_strided_slice %178 {offsets = [0, 3], sizes = [16, 1], strides = [1, 1]} : vector<16x9xf32> to vector<16x1xf32>
    %cst_79 = arith.constant 0.000000e+00 : f32
    %206 = vector.shape_cast %205 : vector<16x1xf32> to vector<16x1xf32>
    %207 = vector.broadcast %206 : vector<16x1xf32> to vector<16x16xf32>
    %208 = vector.broadcast %cst_79 : f32 to vector<16x16xf32>
    %209 = arith.select %204, %207, %208 : vector<16x16xi1>, vector<16x16xf32>
    %210 = arith.addf %202, %209 : vector<16x16xf32>
    %c0_i32_80 = arith.constant 0 : i32
    %211 = vector.broadcast %c0_i32_80 : i32 to vector<16x16xi32>
    %212 = arith.cmpi eq, %9, %211 : vector<16x16xi32>
    %213 = vector.extract_strided_slice %178 {offsets = [0, 4], sizes = [16, 1], strides = [1, 1]} : vector<16x9xf32> to vector<16x1xf32>
    %cst_81 = arith.constant 0.000000e+00 : f32
    %214 = vector.shape_cast %213 : vector<16x1xf32> to vector<16x1xf32>
    %215 = vector.broadcast %214 : vector<16x1xf32> to vector<16x16xf32>
    %216 = vector.broadcast %cst_81 : f32 to vector<16x16xf32>
    %217 = arith.select %212, %215, %216 : vector<16x16xi1>, vector<16x16xf32>
    %218 = arith.addf %210, %217 : vector<16x16xf32>
    %c1_i32_82 = arith.constant 1 : i32
    %219 = vector.broadcast %c1_i32_82 : i32 to vector<16x16xi32>
    %220 = arith.cmpi eq, %9, %219 : vector<16x16xi32>
    %221 = vector.extract_strided_slice %178 {offsets = [0, 5], sizes = [16, 1], strides = [1, 1]} : vector<16x9xf32> to vector<16x1xf32>
    %cst_83 = arith.constant 0.000000e+00 : f32
    %222 = vector.shape_cast %221 : vector<16x1xf32> to vector<16x1xf32>
    %223 = vector.broadcast %222 : vector<16x1xf32> to vector<16x16xf32>
    %224 = vector.broadcast %cst_83 : f32 to vector<16x16xf32>
    %225 = arith.select %220, %223, %224 : vector<16x16xi1>, vector<16x16xf32>
    %226 = arith.addf %218, %225 : vector<16x16xf32>
    %c2_i32_84 = arith.constant 2 : i32
    %227 = vector.broadcast %c2_i32_84 : i32 to vector<16x16xi32>
    %228 = arith.cmpi eq, %9, %227 : vector<16x16xi32>
    %229 = vector.extract_strided_slice %178 {offsets = [0, 6], sizes = [16, 1], strides = [1, 1]} : vector<16x9xf32> to vector<16x1xf32>
    %cst_85 = arith.constant 0.000000e+00 : f32
    %230 = vector.shape_cast %229 : vector<16x1xf32> to vector<16x1xf32>
    %231 = vector.broadcast %230 : vector<16x1xf32> to vector<16x16xf32>
    %232 = vector.broadcast %cst_85 : f32 to vector<16x16xf32>
    %233 = arith.select %228, %231, %232 : vector<16x16xi1>, vector<16x16xf32>
    %234 = arith.addf %226, %233 : vector<16x16xf32>
    %c3_i32_86 = arith.constant 3 : i32
    %235 = vector.broadcast %c3_i32_86 : i32 to vector<16x16xi32>
    %236 = arith.cmpi eq, %9, %235 : vector<16x16xi32>
    %237 = vector.extract_strided_slice %178 {offsets = [0, 7], sizes = [16, 1], strides = [1, 1]} : vector<16x9xf32> to vector<16x1xf32>
    %cst_87 = arith.constant 0.000000e+00 : f32
    %238 = vector.shape_cast %237 : vector<16x1xf32> to vector<16x1xf32>
    %239 = vector.broadcast %238 : vector<16x1xf32> to vector<16x16xf32>
    %240 = vector.broadcast %cst_87 : f32 to vector<16x16xf32>
    %241 = arith.select %236, %239, %240 : vector<16x16xi1>, vector<16x16xf32>
    %242 = arith.addf %234, %241 : vector<16x16xf32>
    %c4_i32_88 = arith.constant 4 : i32
    %243 = vector.broadcast %c4_i32_88 : i32 to vector<16x16xi32>
    %244 = arith.cmpi eq, %9, %243 : vector<16x16xi32>
    %245 = vector.extract_strided_slice %178 {offsets = [0, 8], sizes = [16, 1], strides = [1, 1]} : vector<16x9xf32> to vector<16x1xf32>
    %cst_89 = arith.constant 0.000000e+00 : f32
    %246 = vector.shape_cast %245 : vector<16x1xf32> to vector<16x1xf32>
    %247 = vector.broadcast %246 : vector<16x1xf32> to vector<16x16xf32>
    %248 = vector.broadcast %cst_89 : f32 to vector<16x16xf32>
    %249 = arith.select %244, %247, %248 : vector<16x16xi1>, vector<16x16xf32>
    %250 = arith.addf %242, %249 : vector<16x16xf32>
    %cst_90 = arith.constant -1.000000e+04 : f32
    %251 = vector.broadcast %cst_90 : f32 to vector<16x16xf32>
    %252 = arith.select %15, %250, %251 : vector<16x16xi1>, vector<16x16xf32>
    %cst_91 = arith.constant dense<0xFF800000> : vector<16xf32>
    %253 = vector.multi_reduction <maximumf>, %252, %cst_91 [1] : vector<16x16xf32> to vector<16xf32>
    %254 = vector.shape_cast %253 : vector<16xf32> to vector<16x1xf32>
    %255 = vector.broadcast %254 : vector<16x1xf32> to vector<16x16xf32>
    %256 = arith.subf %252, %255 : vector<16x16xf32>
    %257 = math.exp %256 : vector<16x16xf32>
    %cst_92 = arith.constant dense<0.000000e+00> : vector<16xf32>
    %258 = vector.multi_reduction <add>, %257, %cst_92 [1] : vector<16x16xf32> to vector<16xf32>
    %259 = vector.shape_cast %258 : vector<16xf32> to vector<16x1xf32>
    %260 = tpu.reciprocal %259 {approx = true} : vector<16x1xf32> -> vector<16x1xf32>
    %261 = vector.broadcast %260 : vector<16x1xf32> to vector<16x16xf32>
    %262 = arith.mulf %257, %261 : vector<16x16xf32>
    %cst_93 = arith.constant dense<0.000000e+00> : vector<16x8xf32>
    %263 = tpu.matmul %262, %176, %cst_93 {dimension_numbers = #tpu.dot_dimension_numbers<[1], [0], [0], [1], [0, 0, 1, 1], [], []>} : vector<16x16xf32>, vector<16x8xf32>, vector<16x8xf32> -> vector<16x8xf32>
    %c-4_i32_94 = arith.constant -4 : i32
    %264 = vector.broadcast %c-4_i32_94 : i32 to vector<16x16xi32>
    %265 = arith.cmpi eq, %9, %264 : vector<16x16xi32>
    %cst_95 = arith.constant 0.000000e+00 : f32
    %266 = vector.broadcast %cst_95 : f32 to vector<16x16xf32>
    %267 = arith.select %265, %262, %266 : vector<16x16xi1>, vector<16x16xf32>
    %cst_96 = arith.constant dense<0.000000e+00> : vector<16xf32>
    %268 = vector.multi_reduction <add>, %267, %cst_96 [1] : vector<16x16xf32> to vector<16xf32>
    %269 = vector.shape_cast %268 : vector<16xf32> to vector<16x1xf32>
    %c0_97 = arith.constant 0 : index
    %c0_98 = arith.constant 0 : index
    %270 = vector.load %arg10[%c0_97, %c0_98] : memref<16x9xf32, #tpu.memory_space<vmem>>, vector<16x1xf32>
    tpu.vector_store %arg10[%c0_97, %c0_98], %269 {strides = array<i32>} : memref<16x9xf32, #tpu.memory_space<vmem>>, vector<16x1xf32>,
    %c-3_i32_99 = arith.constant -3 : i32
    %271 = vector.broadcast %c-3_i32_99 : i32 to vector<16x16xi32>
    %272 = arith.cmpi eq, %9, %271 : vector<16x16xi32>
    %cst_100 = arith.constant 0.000000e+00 : f32
    %273 = vector.broadcast %cst_100 : f32 to vector<16x16xf32>
    %274 = arith.select %272, %262, %273 : vector<16x16xi1>, vector<16x16xf32>
    %cst_101 = arith.constant dense<0.000000e+00> : vector<16xf32>
    %275 = vector.multi_reduction <add>, %274, %cst_101 [1] : vector<16x16xf32> to vector<16xf32>
    %276 = vector.shape_cast %275 : vector<16xf32> to vector<16x1xf32>
    %c0_102 = arith.constant 0 : index
    %c1_103 = arith.constant 1 : index
    %277 = vector.load %arg10[%c0_102, %c1_103] : memref<16x9xf32, #tpu.memory_space<vmem>>, vector<16x1xf32>
    tpu.vector_store %arg10[%c0_102, %c1_103], %276 {strides = array<i32>} : memref<16x9xf32, #tpu.memory_space<vmem>>, vector<16x1xf32>,
    %c-2_i32_104 = arith.constant -2 : i32
    %278 = vector.broadcast %c-2_i32_104 : i32 to vector<16x16xi32>
    %279 = arith.cmpi eq, %9, %278 : vector<16x16xi32>
    %cst_105 = arith.constant 0.000000e+00 : f32
    %280 = vector.broadcast %cst_105 : f32 to vector<16x16xf32>
    %281 = arith.select %279, %262, %280 : vector<16x16xi1>, vector<16x16xf32>
    %cst_106 = arith.constant dense<0.000000e+00> : vector<16xf32>
    %282 = vector.multi_reduction <add>, %281, %cst_106 [1] : vector<16x16xf32> to vector<16xf32>
    %283 = vector.shape_cast %282 : vector<16xf32> to vector<16x1xf32>
    %c0_107 = arith.constant 0 : index
    %c2_108 = arith.constant 2 : index
    %284 = vector.load %arg10[%c0_107, %c2_108] : memref<16x9xf32, #tpu.memory_space<vmem>>, vector<16x1xf32>
    tpu.vector_store %arg10[%c0_107, %c2_108], %283 {strides = array<i32>} : memref<16x9xf32, #tpu.memory_space<vmem>>, vector<16x1xf32>,
    %c-1_i32_109 = arith.constant -1 : i32
    %285 = vector.broadcast %c-1_i32_109 : i32 to vector<16x16xi32>
    %286 = arith.cmpi eq, %9, %285 : vector<16x16xi32>
    %cst_110 = arith.constant 0.000000e+00 : f32
    %287 = vector.broadcast %cst_110 : f32 to vector<16x16xf32>
    %288 = arith.select %286, %262, %287 : vector<16x16xi1>, vector<16x16xf32>
    %cst_111 = arith.constant dense<0.000000e+00> : vector<16xf32>
    %289 = vector.multi_reduction <add>, %288, %cst_111 [1] : vector<16x16xf32> to vector<16xf32>
    %290 = vector.shape_cast %289 : vector<16xf32> to vector<16x1xf32>
    %c0_112 = arith.constant 0 : index
    %c3_113 = arith.constant 3 : index
    %291 = vector.load %arg10[%c0_112, %c3_113] : memref<16x9xf32, #tpu.memory_space<vmem>>, vector<16x1xf32>
    tpu.vector_store %arg10[%c0_112, %c3_113], %290 {strides = array<i32>} : memref<16x9xf32, #tpu.memory_space<vmem>>, vector<16x1xf32>,
    %c0_i32_114 = arith.constant 0 : i32
    %292 = vector.broadcast %c0_i32_114 : i32 to vector<16x16xi32>
    %293 = arith.cmpi eq, %9, %292 : vector<16x16xi32>
    %cst_115 = arith.constant 0.000000e+00 : f32
    %294 = vector.broadcast %cst_115 : f32 to vector<16x16xf32>
    %295 = arith.select %293, %262, %294 : vector<16x16xi1>, vector<16x16xf32>
    %cst_116 = arith.constant dense<0.000000e+00> : vector<16xf32>
    %296 = vector.multi_reduction <add>, %295, %cst_116 [1] : vector<16x16xf32> to vector<16xf32>
    %297 = vector.shape_cast %296 : vector<16xf32> to vector<16x1xf32>
    %c0_117 = arith.constant 0 : index
    %c4_118 = arith.constant 4 : index
    %298 = vector.load %arg10[%c0_117, %c4_118] : memref<16x9xf32, #tpu.memory_space<vmem>>, vector<16x1xf32>
    tpu.vector_store %arg10[%c0_117, %c4_118], %297 {strides = array<i32>} : memref<16x9xf32, #tpu.memory_space<vmem>>, vector<16x1xf32>,
    %c1_i32_119 = arith.constant 1 : i32
    %299 = vector.broadcast %c1_i32_119 : i32 to vector<16x16xi32>
    %300 = arith.cmpi eq, %9, %299 : vector<16x16xi32>
    %cst_120 = arith.constant 0.000000e+00 : f32
    %301 = vector.broadcast %cst_120 : f32 to vector<16x16xf32>
    %302 = arith.select %300, %262, %301 : vector<16x16xi1>, vector<16x16xf32>
    %cst_121 = arith.constant dense<0.000000e+00> : vector<16xf32>
    %303 = vector.multi_reduction <add>, %302, %cst_121 [1] : vector<16x16xf32> to vector<16xf32>
    %304 = vector.shape_cast %303 : vector<16xf32> to vector<16x1xf32>
    %c0_122 = arith.constant 0 : index
    %c5_123 = arith.constant 5 : index
    %305 = vector.load %arg10[%c0_122, %c5_123] : memref<16x9xf32, #tpu.memory_space<vmem>>, vector<16x1xf32>
    tpu.vector_store %arg10[%c0_122, %c5_123], %304 {strides = array<i32>} : memref<16x9xf32, #tpu.memory_space<vmem>>, vector<16x1xf32>,
    %c2_i32_124 = arith.constant 2 : i32
    %306 = vector.broadcast %c2_i32_124 : i32 to vector<16x16xi32>
    %307 = arith.cmpi eq, %9, %306 : vector<16x16xi32>
    %cst_125 = arith.constant 0.000000e+00 : f32
    %308 = vector.broadcast %cst_125 : f32 to vector<16x16xf32>
    %309 = arith.select %307, %262, %308 : vector<16x16xi1>, vector<16x16xf32>
    %cst_126 = arith.constant dense<0.000000e+00> : vector<16xf32>
    %310 = vector.multi_reduction <add>, %309, %cst_126 [1] : vector<16x16xf32> to vector<16xf32>
    %311 = vector.shape_cast %310 : vector<16xf32> to vector<16x1xf32>
    %c0_127 = arith.constant 0 : index
    %c6_128 = arith.constant 6 : index
    %312 = vector.load %arg10[%c0_127, %c6_128] : memref<16x9xf32, #tpu.memory_space<vmem>>, vector<16x1xf32>
    tpu.vector_store %arg10[%c0_127, %c6_128], %311 {strides = array<i32>} : memref<16x9xf32, #tpu.memory_space<vmem>>, vector<16x1xf32>,
    %c3_i32_129 = arith.constant 3 : i32
    %313 = vector.broadcast %c3_i32_129 : i32 to vector<16x16xi32>
    %314 = arith.cmpi eq, %9, %313 : vector<16x16xi32>
    %cst_130 = arith.constant 0.000000e+00 : f32
    %315 = vector.broadcast %cst_130 : f32 to vector<16x16xf32>
    %316 = arith.select %314, %262, %315 : vector<16x16xi1>, vector<16x16xf32>
    %cst_131 = arith.constant dense<0.000000e+00> : vector<16xf32>
    %317 = vector.multi_reduction <add>, %316, %cst_131 [1] : vector<16x16xf32> to vector<16xf32>
    %318 = vector.shape_cast %317 : vector<16xf32> to vector<16x1xf32>
    %c0_132 = arith.constant 0 : index
    %c7_133 = arith.constant 7 : index
    %319 = vector.load %arg10[%c0_132, %c7_133] : memref<16x9xf32, #tpu.memory_space<vmem>>, vector<16x1xf32>
    tpu.vector_store %arg10[%c0_132, %c7_133], %318 {strides = array<i32>} : memref<16x9xf32, #tpu.memory_space<vmem>>, vector<16x1xf32>,
    %c4_i32_134 = arith.constant 4 : i32
    %320 = vector.broadcast %c4_i32_134 : i32 to vector<16x16xi32>
    %321 = arith.cmpi eq, %9, %320 : vector<16x16xi32>
    %cst_135 = arith.constant 0.000000e+00 : f32
    %322 = vector.broadcast %cst_135 : f32 to vector<16x16xf32>
    %323 = arith.select %321, %262, %322 : vector<16x16xi1>, vector<16x16xf32>
    %cst_136 = arith.constant dense<0.000000e+00> : vector<16xf32>
    %324 = vector.multi_reduction <add>, %323, %cst_136 [1] : vector<16x16xf32> to vector<16xf32>
    %325 = vector.shape_cast %324 : vector<16xf32> to vector<16x1xf32>
    %c0_137 = arith.constant 0 : index
    %c8_138 = arith.constant 8 : index
    %326 = vector.load %arg10[%c0_137, %c8_138] : memref<16x9xf32, #tpu.memory_space<vmem>>, vector<16x1xf32>
    tpu.vector_store %arg10[%c0_137, %c8_138], %325 {strides = array<i32>} : memref<16x9xf32, #tpu.memory_space<vmem>>, vector<16x1xf32>,
    %c0_139 = arith.constant 0 : index
    %c0_140 = arith.constant 0 : index
    %327 = vector.load %arg10[%c0_139, %c0_140] : memref<16x9xf32, #tpu.memory_space<vmem>>, vector<16x9xf32>
    %cst_141 = arith.constant dense<0.000000e+00> : vector<16x8xf32>
    %328 = tpu.matmul %327, %11, %cst_141 {dimension_numbers = #tpu.dot_dimension_numbers<[1], [0], [0], [1], [0, 0, 1, 1], [], []>} : vector<16x9xf32>, vector<9x8xf32>, vector<16x8xf32> -> vector<16x8xf32>
    %329 = arith.addf %263, %328 : vector<16x8xf32>
    %c0_142 = arith.constant 0 : index
    %c8_143 = arith.constant 8 : index
    %330 = vector.load %arg11[%c0_142, %c8_143] : memref<32x32xf32, #tpu.memory_space<vmem>>, vector<16x8xf32>
    tpu.vector_store %arg11[%c0_142, %c8_143], %329 {strides = array<i32>} : memref<32x32xf32, #tpu.memory_space<vmem>>, vector<16x8xf32>,
    %331 = vector.extract_strided_slice %16 {offsets = [0, 16], sizes = [16, 8], strides = [1, 1]} : vector<16x96xf32> to vector<16x8xf32>
    %332 = vector.extract_strided_slice %16 {offsets = [0, 48], sizes = [16, 8], strides = [1, 1]} : vector<16x96xf32> to vector<16x8xf32>
    %333 = vector.extract_strided_slice %16 {offsets = [0, 80], sizes = [16, 8], strides = [1, 1]} : vector<16x96xf32> to vector<16x8xf32>
    %cst_144 = arith.constant dense<0.000000e+00> : vector<16x16xf32>
    %334 = tpu.matmul %331, %332, %cst_144 {dimension_numbers = #tpu.dot_dimension_numbers<[1], [1], [0], [0], [0, 0, 1, 0], [], []>} : vector<16x8xf32>, vector<16x8xf32>, vector<16x16xf32> -> vector<16x16xf32>
    %cst_145 = arith.constant dense<0.000000e+00> : vector<16x9xf32>
    %335 = tpu.matmul %331, %10, %cst_145 {dimension_numbers = #tpu.dot_dimension_numbers<[1], [0], [0], [1], [0, 0, 1, 1], [], []>} : vector<16x8xf32>, vector<8x9xf32>, vector<16x9xf32> -> vector<16x9xf32>
    %c-4_i32_146 = arith.constant -4 : i32
    %336 = vector.broadcast %c-4_i32_146 : i32 to vector<16x16xi32>
    %337 = arith.cmpi eq, %9, %336 : vector<16x16xi32>
    %338 = vector.extract_strided_slice %335 {offsets = [0, 0], sizes = [16, 1], strides = [1, 1]} : vector<16x9xf32> to vector<16x1xf32>
    %cst_147 = arith.constant 0.000000e+00 : f32
    %339 = vector.shape_cast %338 : vector<16x1xf32> to vector<16x1xf32>
    %340 = vector.broadcast %339 : vector<16x1xf32> to vector<16x16xf32>
    %341 = vector.broadcast %cst_147 : f32 to vector<16x16xf32>
    %342 = arith.select %337, %340, %341 : vector<16x16xi1>, vector<16x16xf32>
    %343 = arith.addf %334, %342 : vector<16x16xf32>
    %c-3_i32_148 = arith.constant -3 : i32
    %344 = vector.broadcast %c-3_i32_148 : i32 to vector<16x16xi32>
    %345 = arith.cmpi eq, %9, %344 : vector<16x16xi32>
    %346 = vector.extract_strided_slice %335 {offsets = [0, 1], sizes = [16, 1], strides = [1, 1]} : vector<16x9xf32> to vector<16x1xf32>
    %cst_149 = arith.constant 0.000000e+00 : f32
    %347 = vector.shape_cast %346 : vector<16x1xf32> to vector<16x1xf32>
    %348 = vector.broadcast %347 : vector<16x1xf32> to vector<16x16xf32>
    %349 = vector.broadcast %cst_149 : f32 to vector<16x16xf32>
    %350 = arith.select %345, %348, %349 : vector<16x16xi1>, vector<16x16xf32>
    %351 = arith.addf %343, %350 : vector<16x16xf32>
    %c-2_i32_150 = arith.constant -2 : i32
    %352 = vector.broadcast %c-2_i32_150 : i32 to vector<16x16xi32>
    %353 = arith.cmpi eq, %9, %352 : vector<16x16xi32>
    %354 = vector.extract_strided_slice %335 {offsets = [0, 2], sizes = [16, 1], strides = [1, 1]} : vector<16x9xf32> to vector<16x1xf32>
    %cst_151 = arith.constant 0.000000e+00 : f32
    %355 = vector.shape_cast %354 : vector<16x1xf32> to vector<16x1xf32>
    %356 = vector.broadcast %355 : vector<16x1xf32> to vector<16x16xf32>
    %357 = vector.broadcast %cst_151 : f32 to vector<16x16xf32>
    %358 = arith.select %353, %356, %357 : vector<16x16xi1>, vector<16x16xf32>
    %359 = arith.addf %351, %358 : vector<16x16xf32>
    %c-1_i32_152 = arith.constant -1 : i32
    %360 = vector.broadcast %c-1_i32_152 : i32 to vector<16x16xi32>
    %361 = arith.cmpi eq, %9, %360 : vector<16x16xi32>
    %362 = vector.extract_strided_slice %335 {offsets = [0, 3], sizes = [16, 1], strides = [1, 1]} : vector<16x9xf32> to vector<16x1xf32>
    %cst_153 = arith.constant 0.000000e+00 : f32
    %363 = vector.shape_cast %362 : vector<16x1xf32> to vector<16x1xf32>
    %364 = vector.broadcast %363 : vector<16x1xf32> to vector<16x16xf32>
    %365 = vector.broadcast %cst_153 : f32 to vector<16x16xf32>
    %366 = arith.select %361, %364, %365 : vector<16x16xi1>, vector<16x16xf32>
    %367 = arith.addf %359, %366 : vector<16x16xf32>
    %c0_i32_154 = arith.constant 0 : i32
    %368 = vector.broadcast %c0_i32_154 : i32 to vector<16x16xi32>
    %369 = arith.cmpi eq, %9, %368 : vector<16x16xi32>
    %370 = vector.extract_strided_slice %335 {offsets = [0, 4], sizes = [16, 1], strides = [1, 1]} : vector<16x9xf32> to vector<16x1xf32>
    %cst_155 = arith.constant 0.000000e+00 : f32
    %371 = vector.shape_cast %370 : vector<16x1xf32> to vector<16x1xf32>
    %372 = vector.broadcast %371 : vector<16x1xf32> to vector<16x16xf32>
    %373 = vector.broadcast %cst_155 : f32 to vector<16x16xf32>
    %374 = arith.select %369, %372, %373 : vector<16x16xi1>, vector<16x16xf32>
    %375 = arith.addf %367, %374 : vector<16x16xf32>
    %c1_i32_156 = arith.constant 1 : i32
    %376 = vector.broadcast %c1_i32_156 : i32 to vector<16x16xi32>
    %377 = arith.cmpi eq, %9, %376 : vector<16x16xi32>
    %378 = vector.extract_strided_slice %335 {offsets = [0, 5], sizes = [16, 1], strides = [1, 1]} : vector<16x9xf32> to vector<16x1xf32>
    %cst_157 = arith.constant 0.000000e+00 : f32
    %379 = vector.shape_cast %378 : vector<16x1xf32> to vector<16x1xf32>
    %380 = vector.broadcast %379 : vector<16x1xf32> to vector<16x16xf32>
    %381 = vector.broadcast %cst_157 : f32 to vector<16x16xf32>
    %382 = arith.select %377, %380, %381 : vector<16x16xi1>, vector<16x16xf32>
    %383 = arith.addf %375, %382 : vector<16x16xf32>
    %c2_i32_158 = arith.constant 2 : i32
    %384 = vector.broadcast %c2_i32_158 : i32 to vector<16x16xi32>
    %385 = arith.cmpi eq, %9, %384 : vector<16x16xi32>
    %386 = vector.extract_strided_slice %335 {offsets = [0, 6], sizes = [16, 1], strides = [1, 1]} : vector<16x9xf32> to vector<16x1xf32>
    %cst_159 = arith.constant 0.000000e+00 : f32
    %387 = vector.shape_cast %386 : vector<16x1xf32> to vector<16x1xf32>
    %388 = vector.broadcast %387 : vector<16x1xf32> to vector<16x16xf32>
    %389 = vector.broadcast %cst_159 : f32 to vector<16x16xf32>
    %390 = arith.select %385, %388, %389 : vector<16x16xi1>, vector<16x16xf32>
    %391 = arith.addf %383, %390 : vector<16x16xf32>
    %c3_i32_160 = arith.constant 3 : i32
    %392 = vector.broadcast %c3_i32_160 : i32 to vector<16x16xi32>
    %393 = arith.cmpi eq, %9, %392 : vector<16x16xi32>
    %394 = vector.extract_strided_slice %335 {offsets = [0, 7], sizes = [16, 1], strides = [1, 1]} : vector<16x9xf32> to vector<16x1xf32>
    %cst_161 = arith.constant 0.000000e+00 : f32
    %395 = vector.shape_cast %394 : vector<16x1xf32> to vector<16x1xf32>
    %396 = vector.broadcast %395 : vector<16x1xf32> to vector<16x16xf32>
    %397 = vector.broadcast %cst_161 : f32 to vector<16x16xf32>
    %398 = arith.select %393, %396, %397 : vector<16x16xi1>, vector<16x16xf32>
    %399 = arith.addf %391, %398 : vector<16x16xf32>
    %c4_i32_162 = arith.constant 4 : i32
    %400 = vector.broadcast %c4_i32_162 : i32 to vector<16x16xi32>
    %401 = arith.cmpi eq, %9, %400 : vector<16x16xi32>
    %402 = vector.extract_strided_slice %335 {offsets = [0, 8], sizes = [16, 1], strides = [1, 1]} : vector<16x9xf32> to vector<16x1xf32>
    %cst_163 = arith.constant 0.000000e+00 : f32
    %403 = vector.shape_cast %402 : vector<16x1xf32> to vector<16x1xf32>
    %404 = vector.broadcast %403 : vector<16x1xf32> to vector<16x16xf32>
    %405 = vector.broadcast %cst_163 : f32 to vector<16x16xf32>
    %406 = arith.select %401, %404, %405 : vector<16x16xi1>, vector<16x16xf32>
    %407 = arith.addf %399, %406 : vector<16x16xf32>
    %cst_164 = arith.constant -1.000000e+04 : f32
    %408 = vector.broadcast %cst_164 : f32 to vector<16x16xf32>
    %409 = arith.select %15, %407, %408 : vector<16x16xi1>, vector<16x16xf32>
    %cst_165 = arith.constant dense<0xFF800000> : vector<16xf32>
    %410 = vector.multi_reduction <maximumf>, %409, %cst_165 [1] : vector<16x16xf32> to vector<16xf32>
    %411 = vector.shape_cast %410 : vector<16xf32> to vector<16x1xf32>
    %412 = vector.broadcast %411 : vector<16x1xf32> to vector<16x16xf32>
    %413 = arith.subf %409, %412 : vector<16x16xf32>
    %414 = math.exp %413 : vector<16x16xf32>
    %cst_166 = arith.constant dense<0.000000e+00> : vector<16xf32>
    %415 = vector.multi_reduction <add>, %414, %cst_166 [1] : vector<16x16xf32> to vector<16xf32>
    %416 = vector.shape_cast %415 : vector<16xf32> to vector<16x1xf32>
    %417 = tpu.reciprocal %416 {approx = true} : vector<16x1xf32> -> vector<16x1xf32>
    %418 = vector.broadcast %417 : vector<16x1xf32> to vector<16x16xf32>
    %419 = arith.mulf %414, %418 : vector<16x16xf32>
    %cst_167 = arith.constant dense<0.000000e+00> : vector<16x8xf32>
    %420 = tpu.matmul %419, %333, %cst_167 {dimension_numbers = #tpu.dot_dimension_numbers<[1], [0], [0], [1], [0, 0, 1, 1], [], []>} : vector<16x16xf32>, vector<16x8xf32>, vector<16x8xf32> -> vector<16x8xf32>
    %c-4_i32_168 = arith.constant -4 : i32
    %421 = vector.broadcast %c-4_i32_168 : i32 to vector<16x16xi32>
    %422 = arith.cmpi eq, %9, %421 : vector<16x16xi32>
    %cst_169 = arith.constant 0.000000e+00 : f32
    %423 = vector.broadcast %cst_169 : f32 to vector<16x16xf32>
    %424 = arith.select %422, %419, %423 : vector<16x16xi1>, vector<16x16xf32>
    %cst_170 = arith.constant dense<0.000000e+00> : vector<16xf32>
    %425 = vector.multi_reduction <add>, %424, %cst_170 [1] : vector<16x16xf32> to vector<16xf32>
    %426 = vector.shape_cast %425 : vector<16xf32> to vector<16x1xf32>
    %c0_171 = arith.constant 0 : index
    %c0_172 = arith.constant 0 : index
    %427 = vector.load %arg10[%c0_171, %c0_172] : memref<16x9xf32, #tpu.memory_space<vmem>>, vector<16x1xf32>
    tpu.vector_store %arg10[%c0_171, %c0_172], %426 {strides = array<i32>} : memref<16x9xf32, #tpu.memory_space<vmem>>, vector<16x1xf32>,
    %c-3_i32_173 = arith.constant -3 : i32
    %428 = vector.broadcast %c-3_i32_173 : i32 to vector<16x16xi32>
    %429 = arith.cmpi eq, %9, %428 : vector<16x16xi32>
    %cst_174 = arith.constant 0.000000e+00 : f32
    %430 = vector.broadcast %cst_174 : f32 to vector<16x16xf32>
    %431 = arith.select %429, %419, %430 : vector<16x16xi1>, vector<16x16xf32>
    %cst_175 = arith.constant dense<0.000000e+00> : vector<16xf32>
    %432 = vector.multi_reduction <add>, %431, %cst_175 [1] : vector<16x16xf32> to vector<16xf32>
    %433 = vector.shape_cast %432 : vector<16xf32> to vector<16x1xf32>
    %c0_176 = arith.constant 0 : index
    %c1_177 = arith.constant 1 : index
    %434 = vector.load %arg10[%c0_176, %c1_177] : memref<16x9xf32, #tpu.memory_space<vmem>>, vector<16x1xf32>
    tpu.vector_store %arg10[%c0_176, %c1_177], %433 {strides = array<i32>} : memref<16x9xf32, #tpu.memory_space<vmem>>, vector<16x1xf32>,
    %c-2_i32_178 = arith.constant -2 : i32
    %435 = vector.broadcast %c-2_i32_178 : i32 to vector<16x16xi32>
    %436 = arith.cmpi eq, %9, %435 : vector<16x16xi32>
    %cst_179 = arith.constant 0.000000e+00 : f32
    %437 = vector.broadcast %cst_179 : f32 to vector<16x16xf32>
    %438 = arith.select %436, %419, %437 : vector<16x16xi1>, vector<16x16xf32>
    %cst_180 = arith.constant dense<0.000000e+00> : vector<16xf32>
    %439 = vector.multi_reduction <add>, %438, %cst_180 [1] : vector<16x16xf32> to vector<16xf32>
    %440 = vector.shape_cast %439 : vector<16xf32> to vector<16x1xf32>
    %c0_181 = arith.constant 0 : index
    %c2_182 = arith.constant 2 : index
    %441 = vector.load %arg10[%c0_181, %c2_182] : memref<16x9xf32, #tpu.memory_space<vmem>>, vector<16x1xf32>
    tpu.vector_store %arg10[%c0_181, %c2_182], %440 {strides = array<i32>} : memref<16x9xf32, #tpu.memory_space<vmem>>, vector<16x1xf32>,
    %c-1_i32_183 = arith.constant -1 : i32
    %442 = vector.broadcast %c-1_i32_183 : i32 to vector<16x16xi32>
    %443 = arith.cmpi eq, %9, %442 : vector<16x16xi32>
    %cst_184 = arith.constant 0.000000e+00 : f32
    %444 = vector.broadcast %cst_184 : f32 to vector<16x16xf32>
    %445 = arith.select %443, %419, %444 : vector<16x16xi1>, vector<16x16xf32>
    %cst_185 = arith.constant dense<0.000000e+00> : vector<16xf32>
    %446 = vector.multi_reduction <add>, %445, %cst_185 [1] : vector<16x16xf32> to vector<16xf32>
    %447 = vector.shape_cast %446 : vector<16xf32> to vector<16x1xf32>
    %c0_186 = arith.constant 0 : index
    %c3_187 = arith.constant 3 : index
    %448 = vector.load %arg10[%c0_186, %c3_187] : memref<16x9xf32, #tpu.memory_space<vmem>>, vector<16x1xf32>
    tpu.vector_store %arg10[%c0_186, %c3_187], %447 {strides = array<i32>} : memref<16x9xf32, #tpu.memory_space<vmem>>, vector<16x1xf32>,
    %c0_i32_188 = arith.constant 0 : i32
    %449 = vector.broadcast %c0_i32_188 : i32 to vector<16x16xi32>
    %450 = arith.cmpi eq, %9, %449 : vector<16x16xi32>
    %cst_189 = arith.constant 0.000000e+00 : f32
    %451 = vector.broadcast %cst_189 : f32 to vector<16x16xf32>
    %452 = arith.select %450, %419, %451 : vector<16x16xi1>, vector<16x16xf32>
    %cst_190 = arith.constant dense<0.000000e+00> : vector<16xf32>
    %453 = vector.multi_reduction <add>, %452, %cst_190 [1] : vector<16x16xf32> to vector<16xf32>
    %454 = vector.shape_cast %453 : vector<16xf32> to vector<16x1xf32>
    %c0_191 = arith.constant 0 : index
    %c4_192 = arith.constant 4 : index
    %455 = vector.load %arg10[%c0_191, %c4_192] : memref<16x9xf32, #tpu.memory_space<vmem>>, vector<16x1xf32>
    tpu.vector_store %arg10[%c0_191, %c4_192], %454 {strides = array<i32>} : memref<16x9xf32, #tpu.memory_space<vmem>>, vector<16x1xf32>,
    %c1_i32_193 = arith.constant 1 : i32
    %456 = vector.broadcast %c1_i32_193 : i32 to vector<16x16xi32>
    %457 = arith.cmpi eq, %9, %456 : vector<16x16xi32>
    %cst_194 = arith.constant 0.000000e+00 : f32
    %458 = vector.broadcast %cst_194 : f32 to vector<16x16xf32>
    %459 = arith.select %457, %419, %458 : vector<16x16xi1>, vector<16x16xf32>
    %cst_195 = arith.constant dense<0.000000e+00> : vector<16xf32>
    %460 = vector.multi_reduction <add>, %459, %cst_195 [1] : vector<16x16xf32> to vector<16xf32>
    %461 = vector.shape_cast %460 : vector<16xf32> to vector<16x1xf32>
    %c0_196 = arith.constant 0 : index
    %c5_197 = arith.constant 5 : index
    %462 = vector.load %arg10[%c0_196, %c5_197] : memref<16x9xf32, #tpu.memory_space<vmem>>, vector<16x1xf32>
    tpu.vector_store %arg10[%c0_196, %c5_197], %461 {strides = array<i32>} : memref<16x9xf32, #tpu.memory_space<vmem>>, vector<16x1xf32>,
    %c2_i32_198 = arith.constant 2 : i32
    %463 = vector.broadcast %c2_i32_198 : i32 to vector<16x16xi32>
    %464 = arith.cmpi eq, %9, %463 : vector<16x16xi32>
    %cst_199 = arith.constant 0.000000e+00 : f32
    %465 = vector.broadcast %cst_199 : f32 to vector<16x16xf32>
    %466 = arith.select %464, %419, %465 : vector<16x16xi1>, vector<16x16xf32>
    %cst_200 = arith.constant dense<0.000000e+00> : vector<16xf32>
    %467 = vector.multi_reduction <add>, %466, %cst_200 [1] : vector<16x16xf32> to vector<16xf32>
    %468 = vector.shape_cast %467 : vector<16xf32> to vector<16x1xf32>
    %c0_201 = arith.constant 0 : index
    %c6_202 = arith.constant 6 : index
    %469 = vector.load %arg10[%c0_201, %c6_202] : memref<16x9xf32, #tpu.memory_space<vmem>>, vector<16x1xf32>
    tpu.vector_store %arg10[%c0_201, %c6_202], %468 {strides = array<i32>} : memref<16x9xf32, #tpu.memory_space<vmem>>, vector<16x1xf32>,
    %c3_i32_203 = arith.constant 3 : i32
    %470 = vector.broadcast %c3_i32_203 : i32 to vector<16x16xi32>
    %471 = arith.cmpi eq, %9, %470 : vector<16x16xi32>
    %cst_204 = arith.constant 0.000000e+00 : f32
    %472 = vector.broadcast %cst_204 : f32 to vector<16x16xf32>
    %473 = arith.select %471, %419, %472 : vector<16x16xi1>, vector<16x16xf32>
    %cst_205 = arith.constant dense<0.000000e+00> : vector<16xf32>
    %474 = vector.multi_reduction <add>, %473, %cst_205 [1] : vector<16x16xf32> to vector<16xf32>
    %475 = vector.shape_cast %474 : vector<16xf32> to vector<16x1xf32>
    %c0_206 = arith.constant 0 : index
    %c7_207 = arith.constant 7 : index
    %476 = vector.load %arg10[%c0_206, %c7_207] : memref<16x9xf32, #tpu.memory_space<vmem>>, vector<16x1xf32>
    tpu.vector_store %arg10[%c0_206, %c7_207], %475 {strides = array<i32>} : memref<16x9xf32, #tpu.memory_space<vmem>>, vector<16x1xf32>,
    %c4_i32_208 = arith.constant 4 : i32
    %477 = vector.broadcast %c4_i32_208 : i32 to vector<16x16xi32>
    %478 = arith.cmpi eq, %9, %477 : vector<16x16xi32>
    %cst_209 = arith.constant 0.000000e+00 : f32
    %479 = vector.broadcast %cst_209 : f32 to vector<16x16xf32>
    %480 = arith.select %478, %419, %479 : vector<16x16xi1>, vector<16x16xf32>
    %cst_210 = arith.constant dense<0.000000e+00> : vector<16xf32>
    %481 = vector.multi_reduction <add>, %480, %cst_210 [1] : vector<16x16xf32> to vector<16xf32>
    %482 = vector.shape_cast %481 : vector<16xf32> to vector<16x1xf32>
    %c0_211 = arith.constant 0 : index
    %c8_212 = arith.constant 8 : index
    %483 = vector.load %arg10[%c0_211, %c8_212] : memref<16x9xf32, #tpu.memory_space<vmem>>, vector<16x1xf32>
    tpu.vector_store %arg10[%c0_211, %c8_212], %482 {strides = array<i32>} : memref<16x9xf32, #tpu.memory_space<vmem>>, vector<16x1xf32>,
    %c0_213 = arith.constant 0 : index
    %c0_214 = arith.constant 0 : index
    %484 = vector.load %arg10[%c0_213, %c0_214] : memref<16x9xf32, #tpu.memory_space<vmem>>, vector<16x9xf32>
    %cst_215 = arith.constant dense<0.000000e+00> : vector<16x8xf32>
    %485 = tpu.matmul %484, %11, %cst_215 {dimension_numbers = #tpu.dot_dimension_numbers<[1], [0], [0], [1], [0, 0, 1, 1], [], []>} : vector<16x9xf32>, vector<9x8xf32>, vector<16x8xf32> -> vector<16x8xf32>
    %486 = arith.addf %420, %485 : vector<16x8xf32>
    %c0_216 = arith.constant 0 : index
    %c16 = arith.constant 16 : index
    %487 = vector.load %arg11[%c0_216, %c16] : memref<32x32xf32, #tpu.memory_space<vmem>>, vector<16x8xf32>
    tpu.vector_store %arg11[%c0_216, %c16], %486 {strides = array<i32>} : memref<32x32xf32, #tpu.memory_space<vmem>>, vector<16x8xf32>,
    %488 = vector.extract_strided_slice %16 {offsets = [0, 24], sizes = [16, 8], strides = [1, 1]} : vector<16x96xf32> to vector<16x8xf32>
    %489 = vector.extract_strided_slice %16 {offsets = [0, 56], sizes = [16, 8], strides = [1, 1]} : vector<16x96xf32> to vector<16x8xf32>
    %490 = vector.extract_strided_slice %16 {offsets = [0, 88], sizes = [16, 8], strides = [1, 1]} : vector<16x96xf32> to vector<16x8xf32>
    %cst_217 = arith.constant dense<0.000000e+00> : vector<16x16xf32>
    %491 = tpu.matmul %488, %489, %cst_217 {dimension_numbers = #tpu.dot_dimension_numbers<[1], [1], [0], [0], [0, 0, 1, 0], [], []>} : vector<16x8xf32>, vector<16x8xf32>, vector<16x16xf32> -> vector<16x16xf32>
    %cst_218 = arith.constant dense<0.000000e+00> : vector<16x9xf32>
    %492 = tpu.matmul %488, %10, %cst_218 {dimension_numbers = #tpu.dot_dimension_numbers<[1], [0], [0], [1], [0, 0, 1, 1], [], []>} : vector<16x8xf32>, vector<8x9xf32>, vector<16x9xf32> -> vector<16x9xf32>
    %c-4_i32_219 = arith.constant -4 : i32
    %493 = vector.broadcast %c-4_i32_219 : i32 to vector<16x16xi32>
    %494 = arith.cmpi eq, %9, %493 : vector<16x16xi32>
    %495 = vector.extract_strided_slice %492 {offsets = [0, 0], sizes = [16, 1], strides = [1, 1]} : vector<16x9xf32> to vector<16x1xf32>
    %cst_220 = arith.constant 0.000000e+00 : f32
    %496 = vector.shape_cast %495 : vector<16x1xf32> to vector<16x1xf32>
    %497 = vector.broadcast %496 : vector<16x1xf32> to vector<16x16xf32>
    %498 = vector.broadcast %cst_220 : f32 to vector<16x16xf32>
    %499 = arith.select %494, %497, %498 : vector<16x16xi1>, vector<16x16xf32>
    %500 = arith.addf %491, %499 : vector<16x16xf32>
    %c-3_i32_221 = arith.constant -3 : i32
    %501 = vector.broadcast %c-3_i32_221 : i32 to vector<16x16xi32>
    %502 = arith.cmpi eq, %9, %501 : vector<16x16xi32>
    %503 = vector.extract_strided_slice %492 {offsets = [0, 1], sizes = [16, 1], strides = [1, 1]} : vector<16x9xf32> to vector<16x1xf32>
    %cst_222 = arith.constant 0.000000e+00 : f32
    %504 = vector.shape_cast %503 : vector<16x1xf32> to vector<16x1xf32>
    %505 = vector.broadcast %504 : vector<16x1xf32> to vector<16x16xf32>
    %506 = vector.broadcast %cst_222 : f32 to vector<16x16xf32>
    %507 = arith.select %502, %505, %506 : vector<16x16xi1>, vector<16x16xf32>
    %508 = arith.addf %500, %507 : vector<16x16xf32>
    %c-2_i32_223 = arith.constant -2 : i32
    %509 = vector.broadcast %c-2_i32_223 : i32 to vector<16x16xi32>
    %510 = arith.cmpi eq, %9, %509 : vector<16x16xi32>
    %511 = vector.extract_strided_slice %492 {offsets = [0, 2], sizes = [16, 1], strides = [1, 1]} : vector<16x9xf32> to vector<16x1xf32>
    %cst_224 = arith.constant 0.000000e+00 : f32
    %512 = vector.shape_cast %511 : vector<16x1xf32> to vector<16x1xf32>
    %513 = vector.broadcast %512 : vector<16x1xf32> to vector<16x16xf32>
    %514 = vector.broadcast %cst_224 : f32 to vector<16x16xf32>
    %515 = arith.select %510, %513, %514 : vector<16x16xi1>, vector<16x16xf32>
    %516 = arith.addf %508, %515 : vector<16x16xf32>
    %c-1_i32_225 = arith.constant -1 : i32
    %517 = vector.broadcast %c-1_i32_225 : i32 to vector<16x16xi32>
    %518 = arith.cmpi eq, %9, %517 : vector<16x16xi32>
    %519 = vector.extract_strided_slice %492 {offsets = [0, 3], sizes = [16, 1], strides = [1, 1]} : vector<16x9xf32> to vector<16x1xf32>
    %cst_226 = arith.constant 0.000000e+00 : f32
    %520 = vector.shape_cast %519 : vector<16x1xf32> to vector<16x1xf32>
    %521 = vector.broadcast %520 : vector<16x1xf32> to vector<16x16xf32>
    %522 = vector.broadcast %cst_226 : f32 to vector<16x16xf32>
    %523 = arith.select %518, %521, %522 : vector<16x16xi1>, vector<16x16xf32>
    %524 = arith.addf %516, %523 : vector<16x16xf32>
    %c0_i32_227 = arith.constant 0 : i32
    %525 = vector.broadcast %c0_i32_227 : i32 to vector<16x16xi32>
    %526 = arith.cmpi eq, %9, %525 : vector<16x16xi32>
    %527 = vector.extract_strided_slice %492 {offsets = [0, 4], sizes = [16, 1], strides = [1, 1]} : vector<16x9xf32> to vector<16x1xf32>
    %cst_228 = arith.constant 0.000000e+00 : f32
    %528 = vector.shape_cast %527 : vector<16x1xf32> to vector<16x1xf32>
    %529 = vector.broadcast %528 : vector<16x1xf32> to vector<16x16xf32>
    %530 = vector.broadcast %cst_228 : f32 to vector<16x16xf32>
    %531 = arith.select %526, %529, %530 : vector<16x16xi1>, vector<16x16xf32>
    %532 = arith.addf %524, %531 : vector<16x16xf32>
    %c1_i32_229 = arith.constant 1 : i32
    %533 = vector.broadcast %c1_i32_229 : i32 to vector<16x16xi32>
    %534 = arith.cmpi eq, %9, %533 : vector<16x16xi32>
    %535 = vector.extract_strided_slice %492 {offsets = [0, 5], sizes = [16, 1], strides = [1, 1]} : vector<16x9xf32> to vector<16x1xf32>
    %cst_230 = arith.constant 0.000000e+00 : f32
    %536 = vector.shape_cast %535 : vector<16x1xf32> to vector<16x1xf32>
    %537 = vector.broadcast %536 : vector<16x1xf32> to vector<16x16xf32>
    %538 = vector.broadcast %cst_230 : f32 to vector<16x16xf32>
    %539 = arith.select %534, %537, %538 : vector<16x16xi1>, vector<16x16xf32>
    %540 = arith.addf %532, %539 : vector<16x16xf32>
    %c2_i32_231 = arith.constant 2 : i32
    %541 = vector.broadcast %c2_i32_231 : i32 to vector<16x16xi32>
    %542 = arith.cmpi eq, %9, %541 : vector<16x16xi32>
    %543 = vector.extract_strided_slice %492 {offsets = [0, 6], sizes = [16, 1], strides = [1, 1]} : vector<16x9xf32> to vector<16x1xf32>
    %cst_232 = arith.constant 0.000000e+00 : f32
    %544 = vector.shape_cast %543 : vector<16x1xf32> to vector<16x1xf32>
    %545 = vector.broadcast %544 : vector<16x1xf32> to vector<16x16xf32>
    %546 = vector.broadcast %cst_232 : f32 to vector<16x16xf32>
    %547 = arith.select %542, %545, %546 : vector<16x16xi1>, vector<16x16xf32>
    %548 = arith.addf %540, %547 : vector<16x16xf32>
    %c3_i32_233 = arith.constant 3 : i32
    %549 = vector.broadcast %c3_i32_233 : i32 to vector<16x16xi32>
    %550 = arith.cmpi eq, %9, %549 : vector<16x16xi32>
    %551 = vector.extract_strided_slice %492 {offsets = [0, 7], sizes = [16, 1], strides = [1, 1]} : vector<16x9xf32> to vector<16x1xf32>
    %cst_234 = arith.constant 0.000000e+00 : f32
    %552 = vector.shape_cast %551 : vector<16x1xf32> to vector<16x1xf32>
    %553 = vector.broadcast %552 : vector<16x1xf32> to vector<16x16xf32>
    %554 = vector.broadcast %cst_234 : f32 to vector<16x16xf32>
    %555 = arith.select %550, %553, %554 : vector<16x16xi1>, vector<16x16xf32>
    %556 = arith.addf %548, %555 : vector<16x16xf32>
    %c4_i32_235 = arith.constant 4 : i32
    %557 = vector.broadcast %c4_i32_235 : i32 to vector<16x16xi32>
    %558 = arith.cmpi eq, %9, %557 : vector<16x16xi32>
    %559 = vector.extract_strided_slice %492 {offsets = [0, 8], sizes = [16, 1], strides = [1, 1]} : vector<16x9xf32> to vector<16x1xf32>
    %cst_236 = arith.constant 0.000000e+00 : f32
    %560 = vector.shape_cast %559 : vector<16x1xf32> to vector<16x1xf32>
    %561 = vector.broadcast %560 : vector<16x1xf32> to vector<16x16xf32>
    %562 = vector.broadcast %cst_236 : f32 to vector<16x16xf32>
    %563 = arith.select %558, %561, %562 : vector<16x16xi1>, vector<16x16xf32>
    %564 = arith.addf %556, %563 : vector<16x16xf32>
    %cst_237 = arith.constant -1.000000e+04 : f32
    %565 = vector.broadcast %cst_237 : f32 to vector<16x16xf32>
    %566 = arith.select %15, %564, %565 : vector<16x16xi1>, vector<16x16xf32>
    %cst_238 = arith.constant dense<0xFF800000> : vector<16xf32>
    %567 = vector.multi_reduction <maximumf>, %566, %cst_238 [1] : vector<16x16xf32> to vector<16xf32>
    %568 = vector.shape_cast %567 : vector<16xf32> to vector<16x1xf32>
    %569 = vector.broadcast %568 : vector<16x1xf32> to vector<16x16xf32>
    %570 = arith.subf %566, %569 : vector<16x16xf32>
    %571 = math.exp %570 : vector<16x16xf32>
    %cst_239 = arith.constant dense<0.000000e+00> : vector<16xf32>
    %572 = vector.multi_reduction <add>, %571, %cst_239 [1] : vector<16x16xf32> to vector<16xf32>
    %573 = vector.shape_cast %572 : vector<16xf32> to vector<16x1xf32>
    %574 = tpu.reciprocal %573 {approx = true} : vector<16x1xf32> -> vector<16x1xf32>
    %575 = vector.broadcast %574 : vector<16x1xf32> to vector<16x16xf32>
    %576 = arith.mulf %571, %575 : vector<16x16xf32>
    %cst_240 = arith.constant dense<0.000000e+00> : vector<16x8xf32>
    %577 = tpu.matmul %576, %490, %cst_240 {dimension_numbers = #tpu.dot_dimension_numbers<[1], [0], [0], [1], [0, 0, 1, 1], [], []>} : vector<16x16xf32>, vector<16x8xf32>, vector<16x8xf32> -> vector<16x8xf32>
    %c-4_i32_241 = arith.constant -4 : i32
    %578 = vector.broadcast %c-4_i32_241 : i32 to vector<16x16xi32>
    %579 = arith.cmpi eq, %9, %578 : vector<16x16xi32>
    %cst_242 = arith.constant 0.000000e+00 : f32
    %580 = vector.broadcast %cst_242 : f32 to vector<16x16xf32>
    %581 = arith.select %579, %576, %580 : vector<16x16xi1>, vector<16x16xf32>
    %cst_243 = arith.constant dense<0.000000e+00> : vector<16xf32>
    %582 = vector.multi_reduction <add>, %581, %cst_243 [1] : vector<16x16xf32> to vector<16xf32>
    %583 = vector.shape_cast %582 : vector<16xf32> to vector<16x1xf32>
    %c0_244 = arith.constant 0 : index
    %c0_245 = arith.constant 0 : index
    %584 = vector.load %arg10[%c0_244, %c0_245] : memref<16x9xf32, #tpu.memory_space<vmem>>, vector<16x1xf32>
    tpu.vector_store %arg10[%c0_244, %c0_245], %583 {strides = array<i32>} : memref<16x9xf32, #tpu.memory_space<vmem>>, vector<16x1xf32>,
    %c-3_i32_246 = arith.constant -3 : i32
    %585 = vector.broadcast %c-3_i32_246 : i32 to vector<16x16xi32>
    %586 = arith.cmpi eq, %9, %585 : vector<16x16xi32>
    %cst_247 = arith.constant 0.000000e+00 : f32
    %587 = vector.broadcast %cst_247 : f32 to vector<16x16xf32>
    %588 = arith.select %586, %576, %587 : vector<16x16xi1>, vector<16x16xf32>
    %cst_248 = arith.constant dense<0.000000e+00> : vector<16xf32>
    %589 = vector.multi_reduction <add>, %588, %cst_248 [1] : vector<16x16xf32> to vector<16xf32>
    %590 = vector.shape_cast %589 : vector<16xf32> to vector<16x1xf32>
    %c0_249 = arith.constant 0 : index
    %c1_250 = arith.constant 1 : index
    %591 = vector.load %arg10[%c0_249, %c1_250] : memref<16x9xf32, #tpu.memory_space<vmem>>, vector<16x1xf32>
    tpu.vector_store %arg10[%c0_249, %c1_250], %590 {strides = array<i32>} : memref<16x9xf32, #tpu.memory_space<vmem>>, vector<16x1xf32>,
    %c-2_i32_251 = arith.constant -2 : i32
    %592 = vector.broadcast %c-2_i32_251 : i32 to vector<16x16xi32>
    %593 = arith.cmpi eq, %9, %592 : vector<16x16xi32>
    %cst_252 = arith.constant 0.000000e+00 : f32
    %594 = vector.broadcast %cst_252 : f32 to vector<16x16xf32>
    %595 = arith.select %593, %576, %594 : vector<16x16xi1>, vector<16x16xf32>
    %cst_253 = arith.constant dense<0.000000e+00> : vector<16xf32>
    %596 = vector.multi_reduction <add>, %595, %cst_253 [1] : vector<16x16xf32> to vector<16xf32>
    %597 = vector.shape_cast %596 : vector<16xf32> to vector<16x1xf32>
    %c0_254 = arith.constant 0 : index
    %c2_255 = arith.constant 2 : index
    %598 = vector.load %arg10[%c0_254, %c2_255] : memref<16x9xf32, #tpu.memory_space<vmem>>, vector<16x1xf32>
    tpu.vector_store %arg10[%c0_254, %c2_255], %597 {strides = array<i32>} : memref<16x9xf32, #tpu.memory_space<vmem>>, vector<16x1xf32>,
    %c-1_i32_256 = arith.constant -1 : i32
    %599 = vector.broadcast %c-1_i32_256 : i32 to vector<16x16xi32>
    %600 = arith.cmpi eq, %9, %599 : vector<16x16xi32>
    %cst_257 = arith.constant 0.000000e+00 : f32
    %601 = vector.broadcast %cst_257 : f32 to vector<16x16xf32>
    %602 = arith.select %600, %576, %601 : vector<16x16xi1>, vector<16x16xf32>
    %cst_258 = arith.constant dense<0.000000e+00> : vector<16xf32>
    %603 = vector.multi_reduction <add>, %602, %cst_258 [1] : vector<16x16xf32> to vector<16xf32>
    %604 = vector.shape_cast %603 : vector<16xf32> to vector<16x1xf32>
    %c0_259 = arith.constant 0 : index
    %c3_260 = arith.constant 3 : index
    %605 = vector.load %arg10[%c0_259, %c3_260] : memref<16x9xf32, #tpu.memory_space<vmem>>, vector<16x1xf32>
    tpu.vector_store %arg10[%c0_259, %c3_260], %604 {strides = array<i32>} : memref<16x9xf32, #tpu.memory_space<vmem>>, vector<16x1xf32>,
    %c0_i32_261 = arith.constant 0 : i32
    %606 = vector.broadcast %c0_i32_261 : i32 to vector<16x16xi32>
    %607 = arith.cmpi eq, %9, %606 : vector<16x16xi32>
    %cst_262 = arith.constant 0.000000e+00 : f32
    %608 = vector.broadcast %cst_262 : f32 to vector<16x16xf32>
    %609 = arith.select %607, %576, %608 : vector<16x16xi1>, vector<16x16xf32>
    %cst_263 = arith.constant dense<0.000000e+00> : vector<16xf32>
    %610 = vector.multi_reduction <add>, %609, %cst_263 [1] : vector<16x16xf32> to vector<16xf32>
    %611 = vector.shape_cast %610 : vector<16xf32> to vector<16x1xf32>
    %c0_264 = arith.constant 0 : index
    %c4_265 = arith.constant 4 : index
    %612 = vector.load %arg10[%c0_264, %c4_265] : memref<16x9xf32, #tpu.memory_space<vmem>>, vector<16x1xf32>
    tpu.vector_store %arg10[%c0_264, %c4_265], %611 {strides = array<i32>} : memref<16x9xf32, #tpu.memory_space<vmem>>, vector<16x1xf32>,
    %c1_i32_266 = arith.constant 1 : i32
    %613 = vector.broadcast %c1_i32_266 : i32 to vector<16x16xi32>
    %614 = arith.cmpi eq, %9, %613 : vector<16x16xi32>
    %cst_267 = arith.constant 0.000000e+00 : f32
    %615 = vector.broadcast %cst_267 : f32 to vector<16x16xf32>
    %616 = arith.select %614, %576, %615 : vector<16x16xi1>, vector<16x16xf32>
    %cst_268 = arith.constant dense<0.000000e+00> : vector<16xf32>
    %617 = vector.multi_reduction <add>, %616, %cst_268 [1] : vector<16x16xf32> to vector<16xf32>
    %618 = vector.shape_cast %617 : vector<16xf32> to vector<16x1xf32>
    %c0_269 = arith.constant 0 : index
    %c5_270 = arith.constant 5 : index
    %619 = vector.load %arg10[%c0_269, %c5_270] : memref<16x9xf32, #tpu.memory_space<vmem>>, vector<16x1xf32>
    tpu.vector_store %arg10[%c0_269, %c5_270], %618 {strides = array<i32>} : memref<16x9xf32, #tpu.memory_space<vmem>>, vector<16x1xf32>,
    %c2_i32_271 = arith.constant 2 : i32
    %620 = vector.broadcast %c2_i32_271 : i32 to vector<16x16xi32>
    %621 = arith.cmpi eq, %9, %620 : vector<16x16xi32>
    %cst_272 = arith.constant 0.000000e+00 : f32
    %622 = vector.broadcast %cst_272 : f32 to vector<16x16xf32>
    %623 = arith.select %621, %576, %622 : vector<16x16xi1>, vector<16x16xf32>
    %cst_273 = arith.constant dense<0.000000e+00> : vector<16xf32>
    %624 = vector.multi_reduction <add>, %623, %cst_273 [1] : vector<16x16xf32> to vector<16xf32>
    %625 = vector.shape_cast %624 : vector<16xf32> to vector<16x1xf32>
    %c0_274 = arith.constant 0 : index
    %c6_275 = arith.constant 6 : index
    %626 = vector.load %arg10[%c0_274, %c6_275] : memref<16x9xf32, #tpu.memory_space<vmem>>, vector<16x1xf32>
    tpu.vector_store %arg10[%c0_274, %c6_275], %625 {strides = array<i32>} : memref<16x9xf32, #tpu.memory_space<vmem>>, vector<16x1xf32>,
    %c3_i32_276 = arith.constant 3 : i32
    %627 = vector.broadcast %c3_i32_276 : i32 to vector<16x16xi32>
    %628 = arith.cmpi eq, %9, %627 : vector<16x16xi32>
    %cst_277 = arith.constant 0.000000e+00 : f32
    %629 = vector.broadcast %cst_277 : f32 to vector<16x16xf32>
    %630 = arith.select %628, %576, %629 : vector<16x16xi1>, vector<16x16xf32>
    %cst_278 = arith.constant dense<0.000000e+00> : vector<16xf32>
    %631 = vector.multi_reduction <add>, %630, %cst_278 [1] : vector<16x16xf32> to vector<16xf32>
    %632 = vector.shape_cast %631 : vector<16xf32> to vector<16x1xf32>
    %c0_279 = arith.constant 0 : index
    %c7_280 = arith.constant 7 : index
    %633 = vector.load %arg10[%c0_279, %c7_280] : memref<16x9xf32, #tpu.memory_space<vmem>>, vector<16x1xf32>
    tpu.vector_store %arg10[%c0_279, %c7_280], %632 {strides = array<i32>} : memref<16x9xf32, #tpu.memory_space<vmem>>, vector<16x1xf32>,
    %c4_i32_281 = arith.constant 4 : i32
    %634 = vector.broadcast %c4_i32_281 : i32 to vector<16x16xi32>
    %635 = arith.cmpi eq, %9, %634 : vector<16x16xi32>
    %cst_282 = arith.constant 0.000000e+00 : f32
    %636 = vector.broadcast %cst_282 : f32 to vector<16x16xf32>
    %637 = arith.select %635, %576, %636 : vector<16x16xi1>, vector<16x16xf32>
    %cst_283 = arith.constant dense<0.000000e+00> : vector<16xf32>
    %638 = vector.multi_reduction <add>, %637, %cst_283 [1] : vector<16x16xf32> to vector<16xf32>
    %639 = vector.shape_cast %638 : vector<16xf32> to vector<16x1xf32>
    %c0_284 = arith.constant 0 : index
    %c8_285 = arith.constant 8 : index
    %640 = vector.load %arg10[%c0_284, %c8_285] : memref<16x9xf32, #tpu.memory_space<vmem>>, vector<16x1xf32>
    tpu.vector_store %arg10[%c0_284, %c8_285], %639 {strides = array<i32>} : memref<16x9xf32, #tpu.memory_space<vmem>>, vector<16x1xf32>,
    %c0_286 = arith.constant 0 : index
    %c0_287 = arith.constant 0 : index
    %641 = vector.load %arg10[%c0_286, %c0_287] : memref<16x9xf32, #tpu.memory_space<vmem>>, vector<16x9xf32>
    %cst_288 = arith.constant dense<0.000000e+00> : vector<16x8xf32>
    %642 = tpu.matmul %641, %11, %cst_288 {dimension_numbers = #tpu.dot_dimension_numbers<[1], [0], [0], [1], [0, 0, 1, 1], [], []>} : vector<16x9xf32>, vector<9x8xf32>, vector<16x8xf32> -> vector<16x8xf32>
    %643 = arith.addf %577, %642 : vector<16x8xf32>
    %c0_289 = arith.constant 0 : index
    %c24 = arith.constant 24 : index
    %644 = vector.load %arg11[%c0_289, %c24] : memref<32x32xf32, #tpu.memory_space<vmem>>, vector<16x8xf32>
    tpu.vector_store %arg11[%c0_289, %c24], %643 {strides = array<i32>} : memref<32x32xf32, #tpu.memory_space<vmem>>, vector<16x8xf32>,
    %c1_290 = arith.constant 1 : index
    %c0_291 = arith.constant 0 : index
    %c0_292 = arith.constant 0 : index
    %645 = vector.load %arg8[%c1_290, %c0_291, %c0_292] : memref<2x16x16xi8, #tpu.memory_space<vmem>>, vector<1x16x16xi8>
    %646 = vector.shape_cast %645 : vector<1x16x16xi8> to vector<16x16xi8>
    %c0_i8_293 = arith.constant 0 : i8
    %647 = vector.broadcast %c0_i8_293 : i8 to vector<16x16xi8>
    %648 = arith.cmpi ne, %646, %647 : vector<16x16xi8>
    %649 = vector.extract_strided_slice %6 {offsets = [16, 0], sizes = [16, 96], strides = [1, 1]} : vector<32x96xf32> to vector<16x96xf32>
    %650 = vector.extract_strided_slice %649 {offsets = [0, 0], sizes = [16, 8], strides = [1, 1]} : vector<16x96xf32> to vector<16x8xf32>
    %651 = vector.extract_strided_slice %649 {offsets = [0, 32], sizes = [16, 8], strides = [1, 1]} : vector<16x96xf32> to vector<16x8xf32>
    %652 = vector.extract_strided_slice %649 {offsets = [0, 64], sizes = [16, 8], strides = [1, 1]} : vector<16x96xf32> to vector<16x8xf32>
    %cst_294 = arith.constant dense<0.000000e+00> : vector<16x16xf32>
    %653 = tpu.matmul %650, %651, %cst_294 {dimension_numbers = #tpu.dot_dimension_numbers<[1], [1], [0], [0], [0, 0, 1, 0], [], []>} : vector<16x8xf32>, vector<16x8xf32>, vector<16x16xf32> -> vector<16x16xf32>
    %cst_295 = arith.constant dense<0.000000e+00> : vector<16x9xf32>
    %654 = tpu.matmul %650, %10, %cst_295 {dimension_numbers = #tpu.dot_dimension_numbers<[1], [0], [0], [1], [0, 0, 1, 1], [], []>} : vector<16x8xf32>, vector<8x9xf32>, vector<16x9xf32> -> vector<16x9xf32>
    %c-4_i32_296 = arith.constant -4 : i32
    %655 = vector.broadcast %c-4_i32_296 : i32 to vector<16x16xi32>
    %656 = arith.cmpi eq, %9, %655 : vector<16x16xi32>
    %657 = vector.extract_strided_slice %654 {offsets = [0, 0], sizes = [16, 1], strides = [1, 1]} : vector<16x9xf32> to vector<16x1xf32>
    %cst_297 = arith.constant 0.000000e+00 : f32
    %658 = vector.shape_cast %657 : vector<16x1xf32> to vector<16x1xf32>
    %659 = vector.broadcast %658 : vector<16x1xf32> to vector<16x16xf32>
    %660 = vector.broadcast %cst_297 : f32 to vector<16x16xf32>
    %661 = arith.select %656, %659, %660 : vector<16x16xi1>, vector<16x16xf32>
    %662 = arith.addf %653, %661 : vector<16x16xf32>
    %c-3_i32_298 = arith.constant -3 : i32
    %663 = vector.broadcast %c-3_i32_298 : i32 to vector<16x16xi32>
    %664 = arith.cmpi eq, %9, %663 : vector<16x16xi32>
    %665 = vector.extract_strided_slice %654 {offsets = [0, 1], sizes = [16, 1], strides = [1, 1]} : vector<16x9xf32> to vector<16x1xf32>
    %cst_299 = arith.constant 0.000000e+00 : f32
    %666 = vector.shape_cast %665 : vector<16x1xf32> to vector<16x1xf32>
    %667 = vector.broadcast %666 : vector<16x1xf32> to vector<16x16xf32>
    %668 = vector.broadcast %cst_299 : f32 to vector<16x16xf32>
    %669 = arith.select %664, %667, %668 : vector<16x16xi1>, vector<16x16xf32>
    %670 = arith.addf %662, %669 : vector<16x16xf32>
    %c-2_i32_300 = arith.constant -2 : i32
    %671 = vector.broadcast %c-2_i32_300 : i32 to vector<16x16xi32>
    %672 = arith.cmpi eq, %9, %671 : vector<16x16xi32>
    %673 = vector.extract_strided_slice %654 {offsets = [0, 2], sizes = [16, 1], strides = [1, 1]} : vector<16x9xf32> to vector<16x1xf32>
    %cst_301 = arith.constant 0.000000e+00 : f32
    %674 = vector.shape_cast %673 : vector<16x1xf32> to vector<16x1xf32>
    %675 = vector.broadcast %674 : vector<16x1xf32> to vector<16x16xf32>
    %676 = vector.broadcast %cst_301 : f32 to vector<16x16xf32>
    %677 = arith.select %672, %675, %676 : vector<16x16xi1>, vector<16x16xf32>
    %678 = arith.addf %670, %677 : vector<16x16xf32>
    %c-1_i32_302 = arith.constant -1 : i32
    %679 = vector.broadcast %c-1_i32_302 : i32 to vector<16x16xi32>
    %680 = arith.cmpi eq, %9, %679 : vector<16x16xi32>
    %681 = vector.extract_strided_slice %654 {offsets = [0, 3], sizes = [16, 1], strides = [1, 1]} : vector<16x9xf32> to vector<16x1xf32>
    %cst_303 = arith.constant 0.000000e+00 : f32
    %682 = vector.shape_cast %681 : vector<16x1xf32> to vector<16x1xf32>
    %683 = vector.broadcast %682 : vector<16x1xf32> to vector<16x16xf32>
    %684 = vector.broadcast %cst_303 : f32 to vector<16x16xf32>
    %685 = arith.select %680, %683, %684 : vector<16x16xi1>, vector<16x16xf32>
    %686 = arith.addf %678, %685 : vector<16x16xf32>
    %c0_i32_304 = arith.constant 0 : i32
    %687 = vector.broadcast %c0_i32_304 : i32 to vector<16x16xi32>
    %688 = arith.cmpi eq, %9, %687 : vector<16x16xi32>
    %689 = vector.extract_strided_slice %654 {offsets = [0, 4], sizes = [16, 1], strides = [1, 1]} : vector<16x9xf32> to vector<16x1xf32>
    %cst_305 = arith.constant 0.000000e+00 : f32
    %690 = vector.shape_cast %689 : vector<16x1xf32> to vector<16x1xf32>
    %691 = vector.broadcast %690 : vector<16x1xf32> to vector<16x16xf32>
    %692 = vector.broadcast %cst_305 : f32 to vector<16x16xf32>
    %693 = arith.select %688, %691, %692 : vector<16x16xi1>, vector<16x16xf32>
    %694 = arith.addf %686, %693 : vector<16x16xf32>
    %c1_i32_306 = arith.constant 1 : i32
    %695 = vector.broadcast %c1_i32_306 : i32 to vector<16x16xi32>
    %696 = arith.cmpi eq, %9, %695 : vector<16x16xi32>
    %697 = vector.extract_strided_slice %654 {offsets = [0, 5], sizes = [16, 1], strides = [1, 1]} : vector<16x9xf32> to vector<16x1xf32>
    %cst_307 = arith.constant 0.000000e+00 : f32
    %698 = vector.shape_cast %697 : vector<16x1xf32> to vector<16x1xf32>
    %699 = vector.broadcast %698 : vector<16x1xf32> to vector<16x16xf32>
    %700 = vector.broadcast %cst_307 : f32 to vector<16x16xf32>
    %701 = arith.select %696, %699, %700 : vector<16x16xi1>, vector<16x16xf32>
    %702 = arith.addf %694, %701 : vector<16x16xf32>
    %c2_i32_308 = arith.constant 2 : i32
    %703 = vector.broadcast %c2_i32_308 : i32 to vector<16x16xi32>
    %704 = arith.cmpi eq, %9, %703 : vector<16x16xi32>
    %705 = vector.extract_strided_slice %654 {offsets = [0, 6], sizes = [16, 1], strides = [1, 1]} : vector<16x9xf32> to vector<16x1xf32>
    %cst_309 = arith.constant 0.000000e+00 : f32
    %706 = vector.shape_cast %705 : vector<16x1xf32> to vector<16x1xf32>
    %707 = vector.broadcast %706 : vector<16x1xf32> to vector<16x16xf32>
    %708 = vector.broadcast %cst_309 : f32 to vector<16x16xf32>
    %709 = arith.select %704, %707, %708 : vector<16x16xi1>, vector<16x16xf32>
    %710 = arith.addf %702, %709 : vector<16x16xf32>
    %c3_i32_310 = arith.constant 3 : i32
    %711 = vector.broadcast %c3_i32_310 : i32 to vector<16x16xi32>
    %712 = arith.cmpi eq, %9, %711 : vector<16x16xi32>
    %713 = vector.extract_strided_slice %654 {offsets = [0, 7], sizes = [16, 1], strides = [1, 1]} : vector<16x9xf32> to vector<16x1xf32>
    %cst_311 = arith.constant 0.000000e+00 : f32
    %714 = vector.shape_cast %713 : vector<16x1xf32> to vector<16x1xf32>
    %715 = vector.broadcast %714 : vector<16x1xf32> to vector<16x16xf32>
    %716 = vector.broadcast %cst_311 : f32 to vector<16x16xf32>
    %717 = arith.select %712, %715, %716 : vector<16x16xi1>, vector<16x16xf32>
    %718 = arith.addf %710, %717 : vector<16x16xf32>
    %c4_i32_312 = arith.constant 4 : i32
    %719 = vector.broadcast %c4_i32_312 : i32 to vector<16x16xi32>
    %720 = arith.cmpi eq, %9, %719 : vector<16x16xi32>
    %721 = vector.extract_strided_slice %654 {offsets = [0, 8], sizes = [16, 1], strides = [1, 1]} : vector<16x9xf32> to vector<16x1xf32>
    %cst_313 = arith.constant 0.000000e+00 : f32
    %722 = vector.shape_cast %721 : vector<16x1xf32> to vector<16x1xf32>
    %723 = vector.broadcast %722 : vector<16x1xf32> to vector<16x16xf32>
    %724 = vector.broadcast %cst_313 : f32 to vector<16x16xf32>
    %725 = arith.select %720, %723, %724 : vector<16x16xi1>, vector<16x16xf32>
    %726 = arith.addf %718, %725 : vector<16x16xf32>
    %cst_314 = arith.constant -1.000000e+04 : f32
    %727 = vector.broadcast %cst_314 : f32 to vector<16x16xf32>
    %728 = arith.select %648, %726, %727 : vector<16x16xi1>, vector<16x16xf32>
    %cst_315 = arith.constant dense<0xFF800000> : vector<16xf32>
    %729 = vector.multi_reduction <maximumf>, %728, %cst_315 [1] : vector<16x16xf32> to vector<16xf32>
    %730 = vector.shape_cast %729 : vector<16xf32> to vector<16x1xf32>
    %731 = vector.broadcast %730 : vector<16x1xf32> to vector<16x16xf32>
    %732 = arith.subf %728, %731 : vector<16x16xf32>
    %733 = math.exp %732 : vector<16x16xf32>
    %cst_316 = arith.constant dense<0.000000e+00> : vector<16xf32>
    %734 = vector.multi_reduction <add>, %733, %cst_316 [1] : vector<16x16xf32> to vector<16xf32>
    %735 = vector.shape_cast %734 : vector<16xf32> to vector<16x1xf32>
    %736 = tpu.reciprocal %735 {approx = true} : vector<16x1xf32> -> vector<16x1xf32>
    %737 = vector.broadcast %736 : vector<16x1xf32> to vector<16x16xf32>
    %738 = arith.mulf %733, %737 : vector<16x16xf32>
    %cst_317 = arith.constant dense<0.000000e+00> : vector<16x8xf32>
    %739 = tpu.matmul %738, %652, %cst_317 {dimension_numbers = #tpu.dot_dimension_numbers<[1], [0], [0], [1], [0, 0, 1, 1], [], []>} : vector<16x16xf32>, vector<16x8xf32>, vector<16x8xf32> -> vector<16x8xf32>
    %c-4_i32_318 = arith.constant -4 : i32
    %740 = vector.broadcast %c-4_i32_318 : i32 to vector<16x16xi32>
    %741 = arith.cmpi eq, %9, %740 : vector<16x16xi32>
    %cst_319 = arith.constant 0.000000e+00 : f32
    %742 = vector.broadcast %cst_319 : f32 to vector<16x16xf32>
    %743 = arith.select %741, %738, %742 : vector<16x16xi1>, vector<16x16xf32>
    %cst_320 = arith.constant dense<0.000000e+00> : vector<16xf32>
    %744 = vector.multi_reduction <add>, %743, %cst_320 [1] : vector<16x16xf32> to vector<16xf32>
    %745 = vector.shape_cast %744 : vector<16xf32> to vector<16x1xf32>
    %c0_321 = arith.constant 0 : index
    %c0_322 = arith.constant 0 : index
    %746 = vector.load %arg10[%c0_321, %c0_322] : memref<16x9xf32, #tpu.memory_space<vmem>>, vector<16x1xf32>
    tpu.vector_store %arg10[%c0_321, %c0_322], %745 {strides = array<i32>} : memref<16x9xf32, #tpu.memory_space<vmem>>, vector<16x1xf32>,
    %c-3_i32_323 = arith.constant -3 : i32
    %747 = vector.broadcast %c-3_i32_323 : i32 to vector<16x16xi32>
    %748 = arith.cmpi eq, %9, %747 : vector<16x16xi32>
    %cst_324 = arith.constant 0.000000e+00 : f32
    %749 = vector.broadcast %cst_324 : f32 to vector<16x16xf32>
    %750 = arith.select %748, %738, %749 : vector<16x16xi1>, vector<16x16xf32>
    %cst_325 = arith.constant dense<0.000000e+00> : vector<16xf32>
    %751 = vector.multi_reduction <add>, %750, %cst_325 [1] : vector<16x16xf32> to vector<16xf32>
    %752 = vector.shape_cast %751 : vector<16xf32> to vector<16x1xf32>
    %c0_326 = arith.constant 0 : index
    %c1_327 = arith.constant 1 : index
    %753 = vector.load %arg10[%c0_326, %c1_327] : memref<16x9xf32, #tpu.memory_space<vmem>>, vector<16x1xf32>
    tpu.vector_store %arg10[%c0_326, %c1_327], %752 {strides = array<i32>} : memref<16x9xf32, #tpu.memory_space<vmem>>, vector<16x1xf32>,
    %c-2_i32_328 = arith.constant -2 : i32
    %754 = vector.broadcast %c-2_i32_328 : i32 to vector<16x16xi32>
    %755 = arith.cmpi eq, %9, %754 : vector<16x16xi32>
    %cst_329 = arith.constant 0.000000e+00 : f32
    %756 = vector.broadcast %cst_329 : f32 to vector<16x16xf32>
    %757 = arith.select %755, %738, %756 : vector<16x16xi1>, vector<16x16xf32>
    %cst_330 = arith.constant dense<0.000000e+00> : vector<16xf32>
    %758 = vector.multi_reduction <add>, %757, %cst_330 [1] : vector<16x16xf32> to vector<16xf32>
    %759 = vector.shape_cast %758 : vector<16xf32> to vector<16x1xf32>
    %c0_331 = arith.constant 0 : index
    %c2_332 = arith.constant 2 : index
    %760 = vector.load %arg10[%c0_331, %c2_332] : memref<16x9xf32, #tpu.memory_space<vmem>>, vector<16x1xf32>
    tpu.vector_store %arg10[%c0_331, %c2_332], %759 {strides = array<i32>} : memref<16x9xf32, #tpu.memory_space<vmem>>, vector<16x1xf32>,
    %c-1_i32_333 = arith.constant -1 : i32
    %761 = vector.broadcast %c-1_i32_333 : i32 to vector<16x16xi32>
    %762 = arith.cmpi eq, %9, %761 : vector<16x16xi32>
    %cst_334 = arith.constant 0.000000e+00 : f32
    %763 = vector.broadcast %cst_334 : f32 to vector<16x16xf32>
    %764 = arith.select %762, %738, %763 : vector<16x16xi1>, vector<16x16xf32>
    %cst_335 = arith.constant dense<0.000000e+00> : vector<16xf32>
    %765 = vector.multi_reduction <add>, %764, %cst_335 [1] : vector<16x16xf32> to vector<16xf32>
    %766 = vector.shape_cast %765 : vector<16xf32> to vector<16x1xf32>
    %c0_336 = arith.constant 0 : index
    %c3_337 = arith.constant 3 : index
    %767 = vector.load %arg10[%c0_336, %c3_337] : memref<16x9xf32, #tpu.memory_space<vmem>>, vector<16x1xf32>
    tpu.vector_store %arg10[%c0_336, %c3_337], %766 {strides = array<i32>} : memref<16x9xf32, #tpu.memory_space<vmem>>, vector<16x1xf32>,
    %c0_i32_338 = arith.constant 0 : i32
    %768 = vector.broadcast %c0_i32_338 : i32 to vector<16x16xi32>
    %769 = arith.cmpi eq, %9, %768 : vector<16x16xi32>
    %cst_339 = arith.constant 0.000000e+00 : f32
    %770 = vector.broadcast %cst_339 : f32 to vector<16x16xf32>
    %771 = arith.select %769, %738, %770 : vector<16x16xi1>, vector<16x16xf32>
    %cst_340 = arith.constant dense<0.000000e+00> : vector<16xf32>
    %772 = vector.multi_reduction <add>, %771, %cst_340 [1] : vector<16x16xf32> to vector<16xf32>
    %773 = vector.shape_cast %772 : vector<16xf32> to vector<16x1xf32>
    %c0_341 = arith.constant 0 : index
    %c4_342 = arith.constant 4 : index
    %774 = vector.load %arg10[%c0_341, %c4_342] : memref<16x9xf32, #tpu.memory_space<vmem>>, vector<16x1xf32>
    tpu.vector_store %arg10[%c0_341, %c4_342], %773 {strides = array<i32>} : memref<16x9xf32, #tpu.memory_space<vmem>>, vector<16x1xf32>,
    %c1_i32_343 = arith.constant 1 : i32
    %775 = vector.broadcast %c1_i32_343 : i32 to vector<16x16xi32>
    %776 = arith.cmpi eq, %9, %775 : vector<16x16xi32>
    %cst_344 = arith.constant 0.000000e+00 : f32
    %777 = vector.broadcast %cst_344 : f32 to vector<16x16xf32>
    %778 = arith.select %776, %738, %777 : vector<16x16xi1>, vector<16x16xf32>
    %cst_345 = arith.constant dense<0.000000e+00> : vector<16xf32>
    %779 = vector.multi_reduction <add>, %778, %cst_345 [1] : vector<16x16xf32> to vector<16xf32>
    %780 = vector.shape_cast %779 : vector<16xf32> to vector<16x1xf32>
    %c0_346 = arith.constant 0 : index
    %c5_347 = arith.constant 5 : index
    %781 = vector.load %arg10[%c0_346, %c5_347] : memref<16x9xf32, #tpu.memory_space<vmem>>, vector<16x1xf32>
    tpu.vector_store %arg10[%c0_346, %c5_347], %780 {strides = array<i32>} : memref<16x9xf32, #tpu.memory_space<vmem>>, vector<16x1xf32>,
    %c2_i32_348 = arith.constant 2 : i32
    %782 = vector.broadcast %c2_i32_348 : i32 to vector<16x16xi32>
    %783 = arith.cmpi eq, %9, %782 : vector<16x16xi32>
    %cst_349 = arith.constant 0.000000e+00 : f32
    %784 = vector.broadcast %cst_349 : f32 to vector<16x16xf32>
    %785 = arith.select %783, %738, %784 : vector<16x16xi1>, vector<16x16xf32>
    %cst_350 = arith.constant dense<0.000000e+00> : vector<16xf32>
    %786 = vector.multi_reduction <add>, %785, %cst_350 [1] : vector<16x16xf32> to vector<16xf32>
    %787 = vector.shape_cast %786 : vector<16xf32> to vector<16x1xf32>
    %c0_351 = arith.constant 0 : index
    %c6_352 = arith.constant 6 : index
    %788 = vector.load %arg10[%c0_351, %c6_352] : memref<16x9xf32, #tpu.memory_space<vmem>>, vector<16x1xf32>
    tpu.vector_store %arg10[%c0_351, %c6_352], %787 {strides = array<i32>} : memref<16x9xf32, #tpu.memory_space<vmem>>, vector<16x1xf32>,
    %c3_i32_353 = arith.constant 3 : i32
    %789 = vector.broadcast %c3_i32_353 : i32 to vector<16x16xi32>
    %790 = arith.cmpi eq, %9, %789 : vector<16x16xi32>
    %cst_354 = arith.constant 0.000000e+00 : f32
    %791 = vector.broadcast %cst_354 : f32 to vector<16x16xf32>
    %792 = arith.select %790, %738, %791 : vector<16x16xi1>, vector<16x16xf32>
    %cst_355 = arith.constant dense<0.000000e+00> : vector<16xf32>
    %793 = vector.multi_reduction <add>, %792, %cst_355 [1] : vector<16x16xf32> to vector<16xf32>
    %794 = vector.shape_cast %793 : vector<16xf32> to vector<16x1xf32>
    %c0_356 = arith.constant 0 : index
    %c7_357 = arith.constant 7 : index
    %795 = vector.load %arg10[%c0_356, %c7_357] : memref<16x9xf32, #tpu.memory_space<vmem>>, vector<16x1xf32>
    tpu.vector_store %arg10[%c0_356, %c7_357], %794 {strides = array<i32>} : memref<16x9xf32, #tpu.memory_space<vmem>>, vector<16x1xf32>,
    %c4_i32_358 = arith.constant 4 : i32
    %796 = vector.broadcast %c4_i32_358 : i32 to vector<16x16xi32>
    %797 = arith.cmpi eq, %9, %796 : vector<16x16xi32>
    %cst_359 = arith.constant 0.000000e+00 : f32
    %798 = vector.broadcast %cst_359 : f32 to vector<16x16xf32>
    %799 = arith.select %797, %738, %798 : vector<16x16xi1>, vector<16x16xf32>
    %cst_360 = arith.constant dense<0.000000e+00> : vector<16xf32>
    %800 = vector.multi_reduction <add>, %799, %cst_360 [1] : vector<16x16xf32> to vector<16xf32>
    %801 = vector.shape_cast %800 : vector<16xf32> to vector<16x1xf32>
    %c0_361 = arith.constant 0 : index
    %c8_362 = arith.constant 8 : index
    %802 = vector.load %arg10[%c0_361, %c8_362] : memref<16x9xf32, #tpu.memory_space<vmem>>, vector<16x1xf32>
    tpu.vector_store %arg10[%c0_361, %c8_362], %801 {strides = array<i32>} : memref<16x9xf32, #tpu.memory_space<vmem>>, vector<16x1xf32>,
    %c0_363 = arith.constant 0 : index
    %c0_364 = arith.constant 0 : index
    %803 = vector.load %arg10[%c0_363, %c0_364] : memref<16x9xf32, #tpu.memory_space<vmem>>, vector<16x9xf32>
    %cst_365 = arith.constant dense<0.000000e+00> : vector<16x8xf32>
    %804 = tpu.matmul %803, %11, %cst_365 {dimension_numbers = #tpu.dot_dimension_numbers<[1], [0], [0], [1], [0, 0, 1, 1], [], []>} : vector<16x9xf32>, vector<9x8xf32>, vector<16x8xf32> -> vector<16x8xf32>
    %805 = arith.addf %739, %804 : vector<16x8xf32>
    %c16_366 = arith.constant 16 : index
    %c0_367 = arith.constant 0 : index
    %806 = vector.load %arg11[%c16_366, %c0_367] : memref<32x32xf32, #tpu.memory_space<vmem>>, vector<16x8xf32>
    tpu.vector_store %arg11[%c16_366, %c0_367], %805 {strides = array<i32>} : memref<32x32xf32, #tpu.memory_space<vmem>>, vector<16x8xf32>,
    %807 = vector.extract_strided_slice %649 {offsets = [0, 8], sizes = [16, 8], strides = [1, 1]} : vector<16x96xf32> to vector<16x8xf32>
    %808 = vector.extract_strided_slice %649 {offsets = [0, 40], sizes = [16, 8], strides = [1, 1]} : vector<16x96xf32> to vector<16x8xf32>
    %809 = vector.extract_strided_slice %649 {offsets = [0, 72], sizes = [16, 8], strides = [1, 1]} : vector<16x96xf32> to vector<16x8xf32>
    %cst_368 = arith.constant dense<0.000000e+00> : vector<16x16xf32>
    %810 = tpu.matmul %807, %808, %cst_368 {dimension_numbers = #tpu.dot_dimension_numbers<[1], [1], [0], [0], [0, 0, 1, 0], [], []>} : vector<16x8xf32>, vector<16x8xf32>, vector<16x16xf32> -> vector<16x16xf32>
    %cst_369 = arith.constant dense<0.000000e+00> : vector<16x9xf32>
    %811 = tpu.matmul %807, %10, %cst_369 {dimension_numbers = #tpu.dot_dimension_numbers<[1], [0], [0], [1], [0, 0, 1, 1], [], []>} : vector<16x8xf32>, vector<8x9xf32>, vector<16x9xf32> -> vector<16x9xf32>
    %c-4_i32_370 = arith.constant -4 : i32
    %812 = vector.broadcast %c-4_i32_370 : i32 to vector<16x16xi32>
    %813 = arith.cmpi eq, %9, %812 : vector<16x16xi32>
    %814 = vector.extract_strided_slice %811 {offsets = [0, 0], sizes = [16, 1], strides = [1, 1]} : vector<16x9xf32> to vector<16x1xf32>
    %cst_371 = arith.constant 0.000000e+00 : f32
    %815 = vector.shape_cast %814 : vector<16x1xf32> to vector<16x1xf32>
    %816 = vector.broadcast %815 : vector<16x1xf32> to vector<16x16xf32>
    %817 = vector.broadcast %cst_371 : f32 to vector<16x16xf32>
    %818 = arith.select %813, %816, %817 : vector<16x16xi1>, vector<16x16xf32>
    %819 = arith.addf %810, %818 : vector<16x16xf32>
    %c-3_i32_372 = arith.constant -3 : i32
    %820 = vector.broadcast %c-3_i32_372 : i32 to vector<16x16xi32>
    %821 = arith.cmpi eq, %9, %820 : vector<16x16xi32>
    %822 = vector.extract_strided_slice %811 {offsets = [0, 1], sizes = [16, 1], strides = [1, 1]} : vector<16x9xf32> to vector<16x1xf32>
    %cst_373 = arith.constant 0.000000e+00 : f32
    %823 = vector.shape_cast %822 : vector<16x1xf32> to vector<16x1xf32>
    %824 = vector.broadcast %823 : vector<16x1xf32> to vector<16x16xf32>
    %825 = vector.broadcast %cst_373 : f32 to vector<16x16xf32>
    %826 = arith.select %821, %824, %825 : vector<16x16xi1>, vector<16x16xf32>
    %827 = arith.addf %819, %826 : vector<16x16xf32>
    %c-2_i32_374 = arith.constant -2 : i32
    %828 = vector.broadcast %c-2_i32_374 : i32 to vector<16x16xi32>
    %829 = arith.cmpi eq, %9, %828 : vector<16x16xi32>
    %830 = vector.extract_strided_slice %811 {offsets = [0, 2], sizes = [16, 1], strides = [1, 1]} : vector<16x9xf32> to vector<16x1xf32>
    %cst_375 = arith.constant 0.000000e+00 : f32
    %831 = vector.shape_cast %830 : vector<16x1xf32> to vector<16x1xf32>
    %832 = vector.broadcast %831 : vector<16x1xf32> to vector<16x16xf32>
    %833 = vector.broadcast %cst_375 : f32 to vector<16x16xf32>
    %834 = arith.select %829, %832, %833 : vector<16x16xi1>, vector<16x16xf32>
    %835 = arith.addf %827, %834 : vector<16x16xf32>
    %c-1_i32_376 = arith.constant -1 : i32
    %836 = vector.broadcast %c-1_i32_376 : i32 to vector<16x16xi32>
    %837 = arith.cmpi eq, %9, %836 : vector<16x16xi32>
    %838 = vector.extract_strided_slice %811 {offsets = [0, 3], sizes = [16, 1], strides = [1, 1]} : vector<16x9xf32> to vector<16x1xf32>
    %cst_377 = arith.constant 0.000000e+00 : f32
    %839 = vector.shape_cast %838 : vector<16x1xf32> to vector<16x1xf32>
    %840 = vector.broadcast %839 : vector<16x1xf32> to vector<16x16xf32>
    %841 = vector.broadcast %cst_377 : f32 to vector<16x16xf32>
    %842 = arith.select %837, %840, %841 : vector<16x16xi1>, vector<16x16xf32>
    %843 = arith.addf %835, %842 : vector<16x16xf32>
    %c0_i32_378 = arith.constant 0 : i32
    %844 = vector.broadcast %c0_i32_378 : i32 to vector<16x16xi32>
    %845 = arith.cmpi eq, %9, %844 : vector<16x16xi32>
    %846 = vector.extract_strided_slice %811 {offsets = [0, 4], sizes = [16, 1], strides = [1, 1]} : vector<16x9xf32> to vector<16x1xf32>
    %cst_379 = arith.constant 0.000000e+00 : f32
    %847 = vector.shape_cast %846 : vector<16x1xf32> to vector<16x1xf32>
    %848 = vector.broadcast %847 : vector<16x1xf32> to vector<16x16xf32>
    %849 = vector.broadcast %cst_379 : f32 to vector<16x16xf32>
    %850 = arith.select %845, %848, %849 : vector<16x16xi1>, vector<16x16xf32>
    %851 = arith.addf %843, %850 : vector<16x16xf32>
    %c1_i32_380 = arith.constant 1 : i32
    %852 = vector.broadcast %c1_i32_380 : i32 to vector<16x16xi32>
    %853 = arith.cmpi eq, %9, %852 : vector<16x16xi32>
    %854 = vector.extract_strided_slice %811 {offsets = [0, 5], sizes = [16, 1], strides = [1, 1]} : vector<16x9xf32> to vector<16x1xf32>
    %cst_381 = arith.constant 0.000000e+00 : f32
    %855 = vector.shape_cast %854 : vector<16x1xf32> to vector<16x1xf32>
    %856 = vector.broadcast %855 : vector<16x1xf32> to vector<16x16xf32>
    %857 = vector.broadcast %cst_381 : f32 to vector<16x16xf32>
    %858 = arith.select %853, %856, %857 : vector<16x16xi1>, vector<16x16xf32>
    %859 = arith.addf %851, %858 : vector<16x16xf32>
    %c2_i32_382 = arith.constant 2 : i32
    %860 = vector.broadcast %c2_i32_382 : i32 to vector<16x16xi32>
    %861 = arith.cmpi eq, %9, %860 : vector<16x16xi32>
    %862 = vector.extract_strided_slice %811 {offsets = [0, 6], sizes = [16, 1], strides = [1, 1]} : vector<16x9xf32> to vector<16x1xf32>
    %cst_383 = arith.constant 0.000000e+00 : f32
    %863 = vector.shape_cast %862 : vector<16x1xf32> to vector<16x1xf32>
    %864 = vector.broadcast %863 : vector<16x1xf32> to vector<16x16xf32>
    %865 = vector.broadcast %cst_383 : f32 to vector<16x16xf32>
    %866 = arith.select %861, %864, %865 : vector<16x16xi1>, vector<16x16xf32>
    %867 = arith.addf %859, %866 : vector<16x16xf32>
    %c3_i32_384 = arith.constant 3 : i32
    %868 = vector.broadcast %c3_i32_384 : i32 to vector<16x16xi32>
    %869 = arith.cmpi eq, %9, %868 : vector<16x16xi32>
    %870 = vector.extract_strided_slice %811 {offsets = [0, 7], sizes = [16, 1], strides = [1, 1]} : vector<16x9xf32> to vector<16x1xf32>
    %cst_385 = arith.constant 0.000000e+00 : f32
    %871 = vector.shape_cast %870 : vector<16x1xf32> to vector<16x1xf32>
    %872 = vector.broadcast %871 : vector<16x1xf32> to vector<16x16xf32>
    %873 = vector.broadcast %cst_385 : f32 to vector<16x16xf32>
    %874 = arith.select %869, %872, %873 : vector<16x16xi1>, vector<16x16xf32>
    %875 = arith.addf %867, %874 : vector<16x16xf32>
    %c4_i32_386 = arith.constant 4 : i32
    %876 = vector.broadcast %c4_i32_386 : i32 to vector<16x16xi32>
    %877 = arith.cmpi eq, %9, %876 : vector<16x16xi32>
    %878 = vector.extract_strided_slice %811 {offsets = [0, 8], sizes = [16, 1], strides = [1, 1]} : vector<16x9xf32> to vector<16x1xf32>
    %cst_387 = arith.constant 0.000000e+00 : f32
    %879 = vector.shape_cast %878 : vector<16x1xf32> to vector<16x1xf32>
    %880 = vector.broadcast %879 : vector<16x1xf32> to vector<16x16xf32>
    %881 = vector.broadcast %cst_387 : f32 to vector<16x16xf32>
    %882 = arith.select %877, %880, %881 : vector<16x16xi1>, vector<16x16xf32>
    %883 = arith.addf %875, %882 : vector<16x16xf32>
    %cst_388 = arith.constant -1.000000e+04 : f32
    %884 = vector.broadcast %cst_388 : f32 to vector<16x16xf32>
    %885 = arith.select %648, %883, %884 : vector<16x16xi1>, vector<16x16xf32>
    %cst_389 = arith.constant dense<0xFF800000> : vector<16xf32>
    %886 = vector.multi_reduction <maximumf>, %885, %cst_389 [1] : vector<16x16xf32> to vector<16xf32>
    %887 = vector.shape_cast %886 : vector<16xf32> to vector<16x1xf32>
    %888 = vector.broadcast %887 : vector<16x1xf32> to vector<16x16xf32>
    %889 = arith.subf %885, %888 : vector<16x16xf32>
    %890 = math.exp %889 : vector<16x16xf32>
    %cst_390 = arith.constant dense<0.000000e+00> : vector<16xf32>
    %891 = vector.multi_reduction <add>, %890, %cst_390 [1] : vector<16x16xf32> to vector<16xf32>
    %892 = vector.shape_cast %891 : vector<16xf32> to vector<16x1xf32>
    %893 = tpu.reciprocal %892 {approx = true} : vector<16x1xf32> -> vector<16x1xf32>
    %894 = vector.broadcast %893 : vector<16x1xf32> to vector<16x16xf32>
    %895 = arith.mulf %890, %894 : vector<16x16xf32>
    %cst_391 = arith.constant dense<0.000000e+00> : vector<16x8xf32>
    %896 = tpu.matmul %895, %809, %cst_391 {dimension_numbers = #tpu.dot_dimension_numbers<[1], [0], [0], [1], [0, 0, 1, 1], [], []>} : vector<16x16xf32>, vector<16x8xf32>, vector<16x8xf32> -> vector<16x8xf32>
    %c-4_i32_392 = arith.constant -4 : i32
    %897 = vector.broadcast %c-4_i32_392 : i32 to vector<16x16xi32>
    %898 = arith.cmpi eq, %9, %897 : vector<16x16xi32>
    %cst_393 = arith.constant 0.000000e+00 : f32
    %899 = vector.broadcast %cst_393 : f32 to vector<16x16xf32>
    %900 = arith.select %898, %895, %899 : vector<16x16xi1>, vector<16x16xf32>
    %cst_394 = arith.constant dense<0.000000e+00> : vector<16xf32>
    %901 = vector.multi_reduction <add>, %900, %cst_394 [1] : vector<16x16xf32> to vector<16xf32>
    %902 = vector.shape_cast %901 : vector<16xf32> to vector<16x1xf32>
    %c0_395 = arith.constant 0 : index
    %c0_396 = arith.constant 0 : index
    %903 = vector.load %arg10[%c0_395, %c0_396] : memref<16x9xf32, #tpu.memory_space<vmem>>, vector<16x1xf32>
    tpu.vector_store %arg10[%c0_395, %c0_396], %902 {strides = array<i32>} : memref<16x9xf32, #tpu.memory_space<vmem>>, vector<16x1xf32>,
    %c-3_i32_397 = arith.constant -3 : i32
    %904 = vector.broadcast %c-3_i32_397 : i32 to vector<16x16xi32>
    %905 = arith.cmpi eq, %9, %904 : vector<16x16xi32>
    %cst_398 = arith.constant 0.000000e+00 : f32
    %906 = vector.broadcast %cst_398 : f32 to vector<16x16xf32>
    %907 = arith.select %905, %895, %906 : vector<16x16xi1>, vector<16x16xf32>
    %cst_399 = arith.constant dense<0.000000e+00> : vector<16xf32>
    %908 = vector.multi_reduction <add>, %907, %cst_399 [1] : vector<16x16xf32> to vector<16xf32>
    %909 = vector.shape_cast %908 : vector<16xf32> to vector<16x1xf32>
    %c0_400 = arith.constant 0 : index
    %c1_401 = arith.constant 1 : index
    %910 = vector.load %arg10[%c0_400, %c1_401] : memref<16x9xf32, #tpu.memory_space<vmem>>, vector<16x1xf32>
    tpu.vector_store %arg10[%c0_400, %c1_401], %909 {strides = array<i32>} : memref<16x9xf32, #tpu.memory_space<vmem>>, vector<16x1xf32>,
    %c-2_i32_402 = arith.constant -2 : i32
    %911 = vector.broadcast %c-2_i32_402 : i32 to vector<16x16xi32>
    %912 = arith.cmpi eq, %9, %911 : vector<16x16xi32>
    %cst_403 = arith.constant 0.000000e+00 : f32
    %913 = vector.broadcast %cst_403 : f32 to vector<16x16xf32>
    %914 = arith.select %912, %895, %913 : vector<16x16xi1>, vector<16x16xf32>
    %cst_404 = arith.constant dense<0.000000e+00> : vector<16xf32>
    %915 = vector.multi_reduction <add>, %914, %cst_404 [1] : vector<16x16xf32> to vector<16xf32>
    %916 = vector.shape_cast %915 : vector<16xf32> to vector<16x1xf32>
    %c0_405 = arith.constant 0 : index
    %c2_406 = arith.constant 2 : index
    %917 = vector.load %arg10[%c0_405, %c2_406] : memref<16x9xf32, #tpu.memory_space<vmem>>, vector<16x1xf32>
    tpu.vector_store %arg10[%c0_405, %c2_406], %916 {strides = array<i32>} : memref<16x9xf32, #tpu.memory_space<vmem>>, vector<16x1xf32>,
    %c-1_i32_407 = arith.constant -1 : i32
    %918 = vector.broadcast %c-1_i32_407 : i32 to vector<16x16xi32>
    %919 = arith.cmpi eq, %9, %918 : vector<16x16xi32>
    %cst_408 = arith.constant 0.000000e+00 : f32
    %920 = vector.broadcast %cst_408 : f32 to vector<16x16xf32>
    %921 = arith.select %919, %895, %920 : vector<16x16xi1>, vector<16x16xf32>
    %cst_409 = arith.constant dense<0.000000e+00> : vector<16xf32>
    %922 = vector.multi_reduction <add>, %921, %cst_409 [1] : vector<16x16xf32> to vector<16xf32>
    %923 = vector.shape_cast %922 : vector<16xf32> to vector<16x1xf32>
    %c0_410 = arith.constant 0 : index
    %c3_411 = arith.constant 3 : index
    %924 = vector.load %arg10[%c0_410, %c3_411] : memref<16x9xf32, #tpu.memory_space<vmem>>, vector<16x1xf32>
    tpu.vector_store %arg10[%c0_410, %c3_411], %923 {strides = array<i32>} : memref<16x9xf32, #tpu.memory_space<vmem>>, vector<16x1xf32>,
    %c0_i32_412 = arith.constant 0 : i32
    %925 = vector.broadcast %c0_i32_412 : i32 to vector<16x16xi32>
    %926 = arith.cmpi eq, %9, %925 : vector<16x16xi32>
    %cst_413 = arith.constant 0.000000e+00 : f32
    %927 = vector.broadcast %cst_413 : f32 to vector<16x16xf32>
    %928 = arith.select %926, %895, %927 : vector<16x16xi1>, vector<16x16xf32>
    %cst_414 = arith.constant dense<0.000000e+00> : vector<16xf32>
    %929 = vector.multi_reduction <add>, %928, %cst_414 [1] : vector<16x16xf32> to vector<16xf32>
    %930 = vector.shape_cast %929 : vector<16xf32> to vector<16x1xf32>
    %c0_415 = arith.constant 0 : index
    %c4_416 = arith.constant 4 : index
    %931 = vector.load %arg10[%c0_415, %c4_416] : memref<16x9xf32, #tpu.memory_space<vmem>>, vector<16x1xf32>
    tpu.vector_store %arg10[%c0_415, %c4_416], %930 {strides = array<i32>} : memref<16x9xf32, #tpu.memory_space<vmem>>, vector<16x1xf32>,
    %c1_i32_417 = arith.constant 1 : i32
    %932 = vector.broadcast %c1_i32_417 : i32 to vector<16x16xi32>
    %933 = arith.cmpi eq, %9, %932 : vector<16x16xi32>
    %cst_418 = arith.constant 0.000000e+00 : f32
    %934 = vector.broadcast %cst_418 : f32 to vector<16x16xf32>
    %935 = arith.select %933, %895, %934 : vector<16x16xi1>, vector<16x16xf32>
    %cst_419 = arith.constant dense<0.000000e+00> : vector<16xf32>
    %936 = vector.multi_reduction <add>, %935, %cst_419 [1] : vector<16x16xf32> to vector<16xf32>
    %937 = vector.shape_cast %936 : vector<16xf32> to vector<16x1xf32>
    %c0_420 = arith.constant 0 : index
    %c5_421 = arith.constant 5 : index
    %938 = vector.load %arg10[%c0_420, %c5_421] : memref<16x9xf32, #tpu.memory_space<vmem>>, vector<16x1xf32>
    tpu.vector_store %arg10[%c0_420, %c5_421], %937 {strides = array<i32>} : memref<16x9xf32, #tpu.memory_space<vmem>>, vector<16x1xf32>,
    %c2_i32_422 = arith.constant 2 : i32
    %939 = vector.broadcast %c2_i32_422 : i32 to vector<16x16xi32>
    %940 = arith.cmpi eq, %9, %939 : vector<16x16xi32>
    %cst_423 = arith.constant 0.000000e+00 : f32
    %941 = vector.broadcast %cst_423 : f32 to vector<16x16xf32>
    %942 = arith.select %940, %895, %941 : vector<16x16xi1>, vector<16x16xf32>
    %cst_424 = arith.constant dense<0.000000e+00> : vector<16xf32>
    %943 = vector.multi_reduction <add>, %942, %cst_424 [1] : vector<16x16xf32> to vector<16xf32>
    %944 = vector.shape_cast %943 : vector<16xf32> to vector<16x1xf32>
    %c0_425 = arith.constant 0 : index
    %c6_426 = arith.constant 6 : index
    %945 = vector.load %arg10[%c0_425, %c6_426] : memref<16x9xf32, #tpu.memory_space<vmem>>, vector<16x1xf32>
    tpu.vector_store %arg10[%c0_425, %c6_426], %944 {strides = array<i32>} : memref<16x9xf32, #tpu.memory_space<vmem>>, vector<16x1xf32>,
    %c3_i32_427 = arith.constant 3 : i32
    %946 = vector.broadcast %c3_i32_427 : i32 to vector<16x16xi32>
    %947 = arith.cmpi eq, %9, %946 : vector<16x16xi32>
    %cst_428 = arith.constant 0.000000e+00 : f32
    %948 = vector.broadcast %cst_428 : f32 to vector<16x16xf32>
    %949 = arith.select %947, %895, %948 : vector<16x16xi1>, vector<16x16xf32>
    %cst_429 = arith.constant dense<0.000000e+00> : vector<16xf32>
    %950 = vector.multi_reduction <add>, %949, %cst_429 [1] : vector<16x16xf32> to vector<16xf32>
    %951 = vector.shape_cast %950 : vector<16xf32> to vector<16x1xf32>
    %c0_430 = arith.constant 0 : index
    %c7_431 = arith.constant 7 : index
    %952 = vector.load %arg10[%c0_430, %c7_431] : memref<16x9xf32, #tpu.memory_space<vmem>>, vector<16x1xf32>
    tpu.vector_store %arg10[%c0_430, %c7_431], %951 {strides = array<i32>} : memref<16x9xf32, #tpu.memory_space<vmem>>, vector<16x1xf32>,
    %c4_i32_432 = arith.constant 4 : i32
    %953 = vector.broadcast %c4_i32_432 : i32 to vector<16x16xi32>
    %954 = arith.cmpi eq, %9, %953 : vector<16x16xi32>
    %cst_433 = arith.constant 0.000000e+00 : f32
    %955 = vector.broadcast %cst_433 : f32 to vector<16x16xf32>
    %956 = arith.select %954, %895, %955 : vector<16x16xi1>, vector<16x16xf32>
    %cst_434 = arith.constant dense<0.000000e+00> : vector<16xf32>
    %957 = vector.multi_reduction <add>, %956, %cst_434 [1] : vector<16x16xf32> to vector<16xf32>
    %958 = vector.shape_cast %957 : vector<16xf32> to vector<16x1xf32>
    %c0_435 = arith.constant 0 : index
    %c8_436 = arith.constant 8 : index
    %959 = vector.load %arg10[%c0_435, %c8_436] : memref<16x9xf32, #tpu.memory_space<vmem>>, vector<16x1xf32>
    tpu.vector_store %arg10[%c0_435, %c8_436], %958 {strides = array<i32>} : memref<16x9xf32, #tpu.memory_space<vmem>>, vector<16x1xf32>,
    %c0_437 = arith.constant 0 : index
    %c0_438 = arith.constant 0 : index
    %960 = vector.load %arg10[%c0_437, %c0_438] : memref<16x9xf32, #tpu.memory_space<vmem>>, vector<16x9xf32>
    %cst_439 = arith.constant dense<0.000000e+00> : vector<16x8xf32>
    %961 = tpu.matmul %960, %11, %cst_439 {dimension_numbers = #tpu.dot_dimension_numbers<[1], [0], [0], [1], [0, 0, 1, 1], [], []>} : vector<16x9xf32>, vector<9x8xf32>, vector<16x8xf32> -> vector<16x8xf32>
    %962 = arith.addf %896, %961 : vector<16x8xf32>
    %c16_440 = arith.constant 16 : index
    %c8_441 = arith.constant 8 : index
    %963 = vector.load %arg11[%c16_440, %c8_441] : memref<32x32xf32, #tpu.memory_space<vmem>>, vector<16x8xf32>
    tpu.vector_store %arg11[%c16_440, %c8_441], %962 {strides = array<i32>} : memref<32x32xf32, #tpu.memory_space<vmem>>, vector<16x8xf32>,
    %964 = vector.extract_strided_slice %649 {offsets = [0, 16], sizes = [16, 8], strides = [1, 1]} : vector<16x96xf32> to vector<16x8xf32>
    %965 = vector.extract_strided_slice %649 {offsets = [0, 48], sizes = [16, 8], strides = [1, 1]} : vector<16x96xf32> to vector<16x8xf32>
    %966 = vector.extract_strided_slice %649 {offsets = [0, 80], sizes = [16, 8], strides = [1, 1]} : vector<16x96xf32> to vector<16x8xf32>
    %cst_442 = arith.constant dense<0.000000e+00> : vector<16x16xf32>
    %967 = tpu.matmul %964, %965, %cst_442 {dimension_numbers = #tpu.dot_dimension_numbers<[1], [1], [0], [0], [0, 0, 1, 0], [], []>} : vector<16x8xf32>, vector<16x8xf32>, vector<16x16xf32> -> vector<16x16xf32>
    %cst_443 = arith.constant dense<0.000000e+00> : vector<16x9xf32>
    %968 = tpu.matmul %964, %10, %cst_443 {dimension_numbers = #tpu.dot_dimension_numbers<[1], [0], [0], [1], [0, 0, 1, 1], [], []>} : vector<16x8xf32>, vector<8x9xf32>, vector<16x9xf32> -> vector<16x9xf32>
    %c-4_i32_444 = arith.constant -4 : i32
    %969 = vector.broadcast %c-4_i32_444 : i32 to vector<16x16xi32>
    %970 = arith.cmpi eq, %9, %969 : vector<16x16xi32>
    %971 = vector.extract_strided_slice %968 {offsets = [0, 0], sizes = [16, 1], strides = [1, 1]} : vector<16x9xf32> to vector<16x1xf32>
    %cst_445 = arith.constant 0.000000e+00 : f32
    %972 = vector.shape_cast %971 : vector<16x1xf32> to vector<16x1xf32>
    %973 = vector.broadcast %972 : vector<16x1xf32> to vector<16x16xf32>
    %974 = vector.broadcast %cst_445 : f32 to vector<16x16xf32>
    %975 = arith.select %970, %973, %974 : vector<16x16xi1>, vector<16x16xf32>
    %976 = arith.addf %967, %975 : vector<16x16xf32>
    %c-3_i32_446 = arith.constant -3 : i32
    %977 = vector.broadcast %c-3_i32_446 : i32 to vector<16x16xi32>
    %978 = arith.cmpi eq, %9, %977 : vector<16x16xi32>
    %979 = vector.extract_strided_slice %968 {offsets = [0, 1], sizes = [16, 1], strides = [1, 1]} : vector<16x9xf32> to vector<16x1xf32>
    %cst_447 = arith.constant 0.000000e+00 : f32
    %980 = vector.shape_cast %979 : vector<16x1xf32> to vector<16x1xf32>
    %981 = vector.broadcast %980 : vector<16x1xf32> to vector<16x16xf32>
    %982 = vector.broadcast %cst_447 : f32 to vector<16x16xf32>
    %983 = arith.select %978, %981, %982 : vector<16x16xi1>, vector<16x16xf32>
    %984 = arith.addf %976, %983 : vector<16x16xf32>
    %c-2_i32_448 = arith.constant -2 : i32
    %985 = vector.broadcast %c-2_i32_448 : i32 to vector<16x16xi32>
    %986 = arith.cmpi eq, %9, %985 : vector<16x16xi32>
    %987 = vector.extract_strided_slice %968 {offsets = [0, 2], sizes = [16, 1], strides = [1, 1]} : vector<16x9xf32> to vector<16x1xf32>
    %cst_449 = arith.constant 0.000000e+00 : f32
    %988 = vector.shape_cast %987 : vector<16x1xf32> to vector<16x1xf32>
    %989 = vector.broadcast %988 : vector<16x1xf32> to vector<16x16xf32>
    %990 = vector.broadcast %cst_449 : f32 to vector<16x16xf32>
    %991 = arith.select %986, %989, %990 : vector<16x16xi1>, vector<16x16xf32>
    %992 = arith.addf %984, %991 : vector<16x16xf32>
    %c-1_i32_450 = arith.constant -1 : i32
    %993 = vector.broadcast %c-1_i32_450 : i32 to vector<16x16xi32>
    %994 = arith.cmpi eq, %9, %993 : vector<16x16xi32>
    %995 = vector.extract_strided_slice %968 {offsets = [0, 3], sizes = [16, 1], strides = [1, 1]} : vector<16x9xf32> to vector<16x1xf32>
    %cst_451 = arith.constant 0.000000e+00 : f32
    %996 = vector.shape_cast %995 : vector<16x1xf32> to vector<16x1xf32>
    %997 = vector.broadcast %996 : vector<16x1xf32> to vector<16x16xf32>
    %998 = vector.broadcast %cst_451 : f32 to vector<16x16xf32>
    %999 = arith.select %994, %997, %998 : vector<16x16xi1>, vector<16x16xf32>
    %1000 = arith.addf %992, %999 : vector<16x16xf32>
    %c0_i32_452 = arith.constant 0 : i32
    %1001 = vector.broadcast %c0_i32_452 : i32 to vector<16x16xi32>
    %1002 = arith.cmpi eq, %9, %1001 : vector<16x16xi32>
    %1003 = vector.extract_strided_slice %968 {offsets = [0, 4], sizes = [16, 1], strides = [1, 1]} : vector<16x9xf32> to vector<16x1xf32>
    %cst_453 = arith.constant 0.000000e+00 : f32
    %1004 = vector.shape_cast %1003 : vector<16x1xf32> to vector<16x1xf32>
    %1005 = vector.broadcast %1004 : vector<16x1xf32> to vector<16x16xf32>
    %1006 = vector.broadcast %cst_453 : f32 to vector<16x16xf32>
    %1007 = arith.select %1002, %1005, %1006 : vector<16x16xi1>, vector<16x16xf32>
    %1008 = arith.addf %1000, %1007 : vector<16x16xf32>
    %c1_i32_454 = arith.constant 1 : i32
    %1009 = vector.broadcast %c1_i32_454 : i32 to vector<16x16xi32>
    %1010 = arith.cmpi eq, %9, %1009 : vector<16x16xi32>
    %1011 = vector.extract_strided_slice %968 {offsets = [0, 5], sizes = [16, 1], strides = [1, 1]} : vector<16x9xf32> to vector<16x1xf32>
    %cst_455 = arith.constant 0.000000e+00 : f32
    %1012 = vector.shape_cast %1011 : vector<16x1xf32> to vector<16x1xf32>
    %1013 = vector.broadcast %1012 : vector<16x1xf32> to vector<16x16xf32>
    %1014 = vector.broadcast %cst_455 : f32 to vector<16x16xf32>
    %1015 = arith.select %1010, %1013, %1014 : vector<16x16xi1>, vector<16x16xf32>
    %1016 = arith.addf %1008, %1015 : vector<16x16xf32>
    %c2_i32_456 = arith.constant 2 : i32
    %1017 = vector.broadcast %c2_i32_456 : i32 to vector<16x16xi32>
    %1018 = arith.cmpi eq, %9, %1017 : vector<16x16xi32>
    %1019 = vector.extract_strided_slice %968 {offsets = [0, 6], sizes = [16, 1], strides = [1, 1]} : vector<16x9xf32> to vector<16x1xf32>
    %cst_457 = arith.constant 0.000000e+00 : f32
    %1020 = vector.shape_cast %1019 : vector<16x1xf32> to vector<16x1xf32>
    %1021 = vector.broadcast %1020 : vector<16x1xf32> to vector<16x16xf32>
    %1022 = vector.broadcast %cst_457 : f32 to vector<16x16xf32>
    %1023 = arith.select %1018, %1021, %1022 : vector<16x16xi1>, vector<16x16xf32>
    %1024 = arith.addf %1016, %1023 : vector<16x16xf32>
    %c3_i32_458 = arith.constant 3 : i32
    %1025 = vector.broadcast %c3_i32_458 : i32 to vector<16x16xi32>
    %1026 = arith.cmpi eq, %9, %1025 : vector<16x16xi32>
    %1027 = vector.extract_strided_slice %968 {offsets = [0, 7], sizes = [16, 1], strides = [1, 1]} : vector<16x9xf32> to vector<16x1xf32>
    %cst_459 = arith.constant 0.000000e+00 : f32
    %1028 = vector.shape_cast %1027 : vector<16x1xf32> to vector<16x1xf32>
    %1029 = vector.broadcast %1028 : vector<16x1xf32> to vector<16x16xf32>
    %1030 = vector.broadcast %cst_459 : f32 to vector<16x16xf32>
    %1031 = arith.select %1026, %1029, %1030 : vector<16x16xi1>, vector<16x16xf32>
    %1032 = arith.addf %1024, %1031 : vector<16x16xf32>
    %c4_i32_460 = arith.constant 4 : i32
    %1033 = vector.broadcast %c4_i32_460 : i32 to vector<16x16xi32>
    %1034 = arith.cmpi eq, %9, %1033 : vector<16x16xi32>
    %1035 = vector.extract_strided_slice %968 {offsets = [0, 8], sizes = [16, 1], strides = [1, 1]} : vector<16x9xf32> to vector<16x1xf32>
    %cst_461 = arith.constant 0.000000e+00 : f32
    %1036 = vector.shape_cast %1035 : vector<16x1xf32> to vector<16x1xf32>
    %1037 = vector.broadcast %1036 : vector<16x1xf32> to vector<16x16xf32>
    %1038 = vector.broadcast %cst_461 : f32 to vector<16x16xf32>
    %1039 = arith.select %1034, %1037, %1038 : vector<16x16xi1>, vector<16x16xf32>
    %1040 = arith.addf %1032, %1039 : vector<16x16xf32>
    %cst_462 = arith.constant -1.000000e+04 : f32
    %1041 = vector.broadcast %cst_462 : f32 to vector<16x16xf32>
    %1042 = arith.select %648, %1040, %1041 : vector<16x16xi1>, vector<16x16xf32>
    %cst_463 = arith.constant dense<0xFF800000> : vector<16xf32>
    %1043 = vector.multi_reduction <maximumf>, %1042, %cst_463 [1] : vector<16x16xf32> to vector<16xf32>
    %1044 = vector.shape_cast %1043 : vector<16xf32> to vector<16x1xf32>
    %1045 = vector.broadcast %1044 : vector<16x1xf32> to vector<16x16xf32>
    %1046 = arith.subf %1042, %1045 : vector<16x16xf32>
    %1047 = math.exp %1046 : vector<16x16xf32>
    %cst_464 = arith.constant dense<0.000000e+00> : vector<16xf32>
    %1048 = vector.multi_reduction <add>, %1047, %cst_464 [1] : vector<16x16xf32> to vector<16xf32>
    %1049 = vector.shape_cast %1048 : vector<16xf32> to vector<16x1xf32>
    %1050 = tpu.reciprocal %1049 {approx = true} : vector<16x1xf32> -> vector<16x1xf32>
    %1051 = vector.broadcast %1050 : vector<16x1xf32> to vector<16x16xf32>
    %1052 = arith.mulf %1047, %1051 : vector<16x16xf32>
    %cst_465 = arith.constant dense<0.000000e+00> : vector<16x8xf32>
    %1053 = tpu.matmul %1052, %966, %cst_465 {dimension_numbers = #tpu.dot_dimension_numbers<[1], [0], [0], [1], [0, 0, 1, 1], [], []>} : vector<16x16xf32>, vector<16x8xf32>, vector<16x8xf32> -> vector<16x8xf32>
    %c-4_i32_466 = arith.constant -4 : i32
    %1054 = vector.broadcast %c-4_i32_466 : i32 to vector<16x16xi32>
    %1055 = arith.cmpi eq, %9, %1054 : vector<16x16xi32>
    %cst_467 = arith.constant 0.000000e+00 : f32
    %1056 = vector.broadcast %cst_467 : f32 to vector<16x16xf32>
    %1057 = arith.select %1055, %1052, %1056 : vector<16x16xi1>, vector<16x16xf32>
    %cst_468 = arith.constant dense<0.000000e+00> : vector<16xf32>
    %1058 = vector.multi_reduction <add>, %1057, %cst_468 [1] : vector<16x16xf32> to vector<16xf32>
    %1059 = vector.shape_cast %1058 : vector<16xf32> to vector<16x1xf32>
    %c0_469 = arith.constant 0 : index
    %c0_470 = arith.constant 0 : index
    %1060 = vector.load %arg10[%c0_469, %c0_470] : memref<16x9xf32, #tpu.memory_space<vmem>>, vector<16x1xf32>
    tpu.vector_store %arg10[%c0_469, %c0_470], %1059 {strides = array<i32>} : memref<16x9xf32, #tpu.memory_space<vmem>>, vector<16x1xf32>,
    %c-3_i32_471 = arith.constant -3 : i32
    %1061 = vector.broadcast %c-3_i32_471 : i32 to vector<16x16xi32>
    %1062 = arith.cmpi eq, %9, %1061 : vector<16x16xi32>
    %cst_472 = arith.constant 0.000000e+00 : f32
    %1063 = vector.broadcast %cst_472 : f32 to vector<16x16xf32>
    %1064 = arith.select %1062, %1052, %1063 : vector<16x16xi1>, vector<16x16xf32>
    %cst_473 = arith.constant dense<0.000000e+00> : vector<16xf32>
    %1065 = vector.multi_reduction <add>, %1064, %cst_473 [1] : vector<16x16xf32> to vector<16xf32>
    %1066 = vector.shape_cast %1065 : vector<16xf32> to vector<16x1xf32>
    %c0_474 = arith.constant 0 : index
    %c1_475 = arith.constant 1 : index
    %1067 = vector.load %arg10[%c0_474, %c1_475] : memref<16x9xf32, #tpu.memory_space<vmem>>, vector<16x1xf32>
    tpu.vector_store %arg10[%c0_474, %c1_475], %1066 {strides = array<i32>} : memref<16x9xf32, #tpu.memory_space<vmem>>, vector<16x1xf32>,
    %c-2_i32_476 = arith.constant -2 : i32
    %1068 = vector.broadcast %c-2_i32_476 : i32 to vector<16x16xi32>
    %1069 = arith.cmpi eq, %9, %1068 : vector<16x16xi32>
    %cst_477 = arith.constant 0.000000e+00 : f32
    %1070 = vector.broadcast %cst_477 : f32 to vector<16x16xf32>
    %1071 = arith.select %1069, %1052, %1070 : vector<16x16xi1>, vector<16x16xf32>
    %cst_478 = arith.constant dense<0.000000e+00> : vector<16xf32>
    %1072 = vector.multi_reduction <add>, %1071, %cst_478 [1] : vector<16x16xf32> to vector<16xf32>
    %1073 = vector.shape_cast %1072 : vector<16xf32> to vector<16x1xf32>
    %c0_479 = arith.constant 0 : index
    %c2_480 = arith.constant 2 : index
    %1074 = vector.load %arg10[%c0_479, %c2_480] : memref<16x9xf32, #tpu.memory_space<vmem>>, vector<16x1xf32>
    tpu.vector_store %arg10[%c0_479, %c2_480], %1073 {strides = array<i32>} : memref<16x9xf32, #tpu.memory_space<vmem>>, vector<16x1xf32>,
    %c-1_i32_481 = arith.constant -1 : i32
    %1075 = vector.broadcast %c-1_i32_481 : i32 to vector<16x16xi32>
    %1076 = arith.cmpi eq, %9, %1075 : vector<16x16xi32>
    %cst_482 = arith.constant 0.000000e+00 : f32
    %1077 = vector.broadcast %cst_482 : f32 to vector<16x16xf32>
    %1078 = arith.select %1076, %1052, %1077 : vector<16x16xi1>, vector<16x16xf32>
    %cst_483 = arith.constant dense<0.000000e+00> : vector<16xf32>
    %1079 = vector.multi_reduction <add>, %1078, %cst_483 [1] : vector<16x16xf32> to vector<16xf32>
    %1080 = vector.shape_cast %1079 : vector<16xf32> to vector<16x1xf32>
    %c0_484 = arith.constant 0 : index
    %c3_485 = arith.constant 3 : index
    %1081 = vector.load %arg10[%c0_484, %c3_485] : memref<16x9xf32, #tpu.memory_space<vmem>>, vector<16x1xf32>
    tpu.vector_store %arg10[%c0_484, %c3_485], %1080 {strides = array<i32>} : memref<16x9xf32, #tpu.memory_space<vmem>>, vector<16x1xf32>,
    %c0_i32_486 = arith.constant 0 : i32
    %1082 = vector.broadcast %c0_i32_486 : i32 to vector<16x16xi32>
    %1083 = arith.cmpi eq, %9, %1082 : vector<16x16xi32>
    %cst_487 = arith.constant 0.000000e+00 : f32
    %1084 = vector.broadcast %cst_487 : f32 to vector<16x16xf32>
    %1085 = arith.select %1083, %1052, %1084 : vector<16x16xi1>, vector<16x16xf32>
    %cst_488 = arith.constant dense<0.000000e+00> : vector<16xf32>
    %1086 = vector.multi_reduction <add>, %1085, %cst_488 [1] : vector<16x16xf32> to vector<16xf32>
    %1087 = vector.shape_cast %1086 : vector<16xf32> to vector<16x1xf32>
    %c0_489 = arith.constant 0 : index
    %c4_490 = arith.constant 4 : index
    %1088 = vector.load %arg10[%c0_489, %c4_490] : memref<16x9xf32, #tpu.memory_space<vmem>>, vector<16x1xf32>
    tpu.vector_store %arg10[%c0_489, %c4_490], %1087 {strides = array<i32>} : memref<16x9xf32, #tpu.memory_space<vmem>>, vector<16x1xf32>,
    %c1_i32_491 = arith.constant 1 : i32
    %1089 = vector.broadcast %c1_i32_491 : i32 to vector<16x16xi32>
    %1090 = arith.cmpi eq, %9, %1089 : vector<16x16xi32>
    %cst_492 = arith.constant 0.000000e+00 : f32
    %1091 = vector.broadcast %cst_492 : f32 to vector<16x16xf32>
    %1092 = arith.select %1090, %1052, %1091 : vector<16x16xi1>, vector<16x16xf32>
    %cst_493 = arith.constant dense<0.000000e+00> : vector<16xf32>
    %1093 = vector.multi_reduction <add>, %1092, %cst_493 [1] : vector<16x16xf32> to vector<16xf32>
    %1094 = vector.shape_cast %1093 : vector<16xf32> to vector<16x1xf32>
    %c0_494 = arith.constant 0 : index
    %c5_495 = arith.constant 5 : index
    %1095 = vector.load %arg10[%c0_494, %c5_495] : memref<16x9xf32, #tpu.memory_space<vmem>>, vector<16x1xf32>
    tpu.vector_store %arg10[%c0_494, %c5_495], %1094 {strides = array<i32>} : memref<16x9xf32, #tpu.memory_space<vmem>>, vector<16x1xf32>,
    %c2_i32_496 = arith.constant 2 : i32
    %1096 = vector.broadcast %c2_i32_496 : i32 to vector<16x16xi32>
    %1097 = arith.cmpi eq, %9, %1096 : vector<16x16xi32>
    %cst_497 = arith.constant 0.000000e+00 : f32
    %1098 = vector.broadcast %cst_497 : f32 to vector<16x16xf32>
    %1099 = arith.select %1097, %1052, %1098 : vector<16x16xi1>, vector<16x16xf32>
    %cst_498 = arith.constant dense<0.000000e+00> : vector<16xf32>
    %1100 = vector.multi_reduction <add>, %1099, %cst_498 [1] : vector<16x16xf32> to vector<16xf32>
    %1101 = vector.shape_cast %1100 : vector<16xf32> to vector<16x1xf32>
    %c0_499 = arith.constant 0 : index
    %c6_500 = arith.constant 6 : index
    %1102 = vector.load %arg10[%c0_499, %c6_500] : memref<16x9xf32, #tpu.memory_space<vmem>>, vector<16x1xf32>
    tpu.vector_store %arg10[%c0_499, %c6_500], %1101 {strides = array<i32>} : memref<16x9xf32, #tpu.memory_space<vmem>>, vector<16x1xf32>,
    %c3_i32_501 = arith.constant 3 : i32
    %1103 = vector.broadcast %c3_i32_501 : i32 to vector<16x16xi32>
    %1104 = arith.cmpi eq, %9, %1103 : vector<16x16xi32>
    %cst_502 = arith.constant 0.000000e+00 : f32
    %1105 = vector.broadcast %cst_502 : f32 to vector<16x16xf32>
    %1106 = arith.select %1104, %1052, %1105 : vector<16x16xi1>, vector<16x16xf32>
    %cst_503 = arith.constant dense<0.000000e+00> : vector<16xf32>
    %1107 = vector.multi_reduction <add>, %1106, %cst_503 [1] : vector<16x16xf32> to vector<16xf32>
    %1108 = vector.shape_cast %1107 : vector<16xf32> to vector<16x1xf32>
    %c0_504 = arith.constant 0 : index
    %c7_505 = arith.constant 7 : index
    %1109 = vector.load %arg10[%c0_504, %c7_505] : memref<16x9xf32, #tpu.memory_space<vmem>>, vector<16x1xf32>
    tpu.vector_store %arg10[%c0_504, %c7_505], %1108 {strides = array<i32>} : memref<16x9xf32, #tpu.memory_space<vmem>>, vector<16x1xf32>,
    %c4_i32_506 = arith.constant 4 : i32
    %1110 = vector.broadcast %c4_i32_506 : i32 to vector<16x16xi32>
    %1111 = arith.cmpi eq, %9, %1110 : vector<16x16xi32>
    %cst_507 = arith.constant 0.000000e+00 : f32
    %1112 = vector.broadcast %cst_507 : f32 to vector<16x16xf32>
    %1113 = arith.select %1111, %1052, %1112 : vector<16x16xi1>, vector<16x16xf32>
    %cst_508 = arith.constant dense<0.000000e+00> : vector<16xf32>
    %1114 = vector.multi_reduction <add>, %1113, %cst_508 [1] : vector<16x16xf32> to vector<16xf32>
    %1115 = vector.shape_cast %1114 : vector<16xf32> to vector<16x1xf32>
    %c0_509 = arith.constant 0 : index
    %c8_510 = arith.constant 8 : index
    %1116 = vector.load %arg10[%c0_509, %c8_510] : memref<16x9xf32, #tpu.memory_space<vmem>>, vector<16x1xf32>
    tpu.vector_store %arg10[%c0_509, %c8_510], %1115 {strides = array<i32>} : memref<16x9xf32, #tpu.memory_space<vmem>>, vector<16x1xf32>,
    %c0_511 = arith.constant 0 : index
    %c0_512 = arith.constant 0 : index
    %1117 = vector.load %arg10[%c0_511, %c0_512] : memref<16x9xf32, #tpu.memory_space<vmem>>, vector<16x9xf32>
    %cst_513 = arith.constant dense<0.000000e+00> : vector<16x8xf32>
    %1118 = tpu.matmul %1117, %11, %cst_513 {dimension_numbers = #tpu.dot_dimension_numbers<[1], [0], [0], [1], [0, 0, 1, 1], [], []>} : vector<16x9xf32>, vector<9x8xf32>, vector<16x8xf32> -> vector<16x8xf32>
    %1119 = arith.addf %1053, %1118 : vector<16x8xf32>
    %c16_514 = arith.constant 16 : index
    %c16_515 = arith.constant 16 : index
    %1120 = vector.load %arg11[%c16_514, %c16_515] : memref<32x32xf32, #tpu.memory_space<vmem>>, vector<16x8xf32>
    tpu.vector_store %arg11[%c16_514, %c16_515], %1119 {strides = array<i32>} : memref<32x32xf32, #tpu.memory_space<vmem>>, vector<16x8xf32>,
    %1121 = vector.extract_strided_slice %649 {offsets = [0, 24], sizes = [16, 8], strides = [1, 1]} : vector<16x96xf32> to vector<16x8xf32>
    %1122 = vector.extract_strided_slice %649 {offsets = [0, 56], sizes = [16, 8], strides = [1, 1]} : vector<16x96xf32> to vector<16x8xf32>
    %1123 = vector.extract_strided_slice %649 {offsets = [0, 88], sizes = [16, 8], strides = [1, 1]} : vector<16x96xf32> to vector<16x8xf32>
    %cst_516 = arith.constant dense<0.000000e+00> : vector<16x16xf32>
    %1124 = tpu.matmul %1121, %1122, %cst_516 {dimension_numbers = #tpu.dot_dimension_numbers<[1], [1], [0], [0], [0, 0, 1, 0], [], []>} : vector<16x8xf32>, vector<16x8xf32>, vector<16x16xf32> -> vector<16x16xf32>
    %cst_517 = arith.constant dense<0.000000e+00> : vector<16x9xf32>
    %1125 = tpu.matmul %1121, %10, %cst_517 {dimension_numbers = #tpu.dot_dimension_numbers<[1], [0], [0], [1], [0, 0, 1, 1], [], []>} : vector<16x8xf32>, vector<8x9xf32>, vector<16x9xf32> -> vector<16x9xf32>
    %c-4_i32_518 = arith.constant -4 : i32
    %1126 = vector.broadcast %c-4_i32_518 : i32 to vector<16x16xi32>
    %1127 = arith.cmpi eq, %9, %1126 : vector<16x16xi32>
    %1128 = vector.extract_strided_slice %1125 {offsets = [0, 0], sizes = [16, 1], strides = [1, 1]} : vector<16x9xf32> to vector<16x1xf32>
    %cst_519 = arith.constant 0.000000e+00 : f32
    %1129 = vector.shape_cast %1128 : vector<16x1xf32> to vector<16x1xf32>
    %1130 = vector.broadcast %1129 : vector<16x1xf32> to vector<16x16xf32>
    %1131 = vector.broadcast %cst_519 : f32 to vector<16x16xf32>
    %1132 = arith.select %1127, %1130, %1131 : vector<16x16xi1>, vector<16x16xf32>
    %1133 = arith.addf %1124, %1132 : vector<16x16xf32>
    %c-3_i32_520 = arith.constant -3 : i32
    %1134 = vector.broadcast %c-3_i32_520 : i32 to vector<16x16xi32>
    %1135 = arith.cmpi eq, %9, %1134 : vector<16x16xi32>
    %1136 = vector.extract_strided_slice %1125 {offsets = [0, 1], sizes = [16, 1], strides = [1, 1]} : vector<16x9xf32> to vector<16x1xf32>
    %cst_521 = arith.constant 0.000000e+00 : f32
    %1137 = vector.shape_cast %1136 : vector<16x1xf32> to vector<16x1xf32>
    %1138 = vector.broadcast %1137 : vector<16x1xf32> to vector<16x16xf32>
    %1139 = vector.broadcast %cst_521 : f32 to vector<16x16xf32>
    %1140 = arith.select %1135, %1138, %1139 : vector<16x16xi1>, vector<16x16xf32>
    %1141 = arith.addf %1133, %1140 : vector<16x16xf32>
    %c-2_i32_522 = arith.constant -2 : i32
    %1142 = vector.broadcast %c-2_i32_522 : i32 to vector<16x16xi32>
    %1143 = arith.cmpi eq, %9, %1142 : vector<16x16xi32>
    %1144 = vector.extract_strided_slice %1125 {offsets = [0, 2], sizes = [16, 1], strides = [1, 1]} : vector<16x9xf32> to vector<16x1xf32>
    %cst_523 = arith.constant 0.000000e+00 : f32
    %1145 = vector.shape_cast %1144 : vector<16x1xf32> to vector<16x1xf32>
    %1146 = vector.broadcast %1145 : vector<16x1xf32> to vector<16x16xf32>
    %1147 = vector.broadcast %cst_523 : f32 to vector<16x16xf32>
    %1148 = arith.select %1143, %1146, %1147 : vector<16x16xi1>, vector<16x16xf32>
    %1149 = arith.addf %1141, %1148 : vector<16x16xf32>
    %c-1_i32_524 = arith.constant -1 : i32
    %1150 = vector.broadcast %c-1_i32_524 : i32 to vector<16x16xi32>
    %1151 = arith.cmpi eq, %9, %1150 : vector<16x16xi32>
    %1152 = vector.extract_strided_slice %1125 {offsets = [0, 3], sizes = [16, 1], strides = [1, 1]} : vector<16x9xf32> to vector<16x1xf32>
    %cst_525 = arith.constant 0.000000e+00 : f32
    %1153 = vector.shape_cast %1152 : vector<16x1xf32> to vector<16x1xf32>
    %1154 = vector.broadcast %1153 : vector<16x1xf32> to vector<16x16xf32>
    %1155 = vector.broadcast %cst_525 : f32 to vector<16x16xf32>
    %1156 = arith.select %1151, %1154, %1155 : vector<16x16xi1>, vector<16x16xf32>
    %1157 = arith.addf %1149, %1156 : vector<16x16xf32>
    %c0_i32_526 = arith.constant 0 : i32
    %1158 = vector.broadcast %c0_i32_526 : i32 to vector<16x16xi32>
    %1159 = arith.cmpi eq, %9, %1158 : vector<16x16xi32>
    %1160 = vector.extract_strided_slice %1125 {offsets = [0, 4], sizes = [16, 1], strides = [1, 1]} : vector<16x9xf32> to vector<16x1xf32>
    %cst_527 = arith.constant 0.000000e+00 : f32
    %1161 = vector.shape_cast %1160 : vector<16x1xf32> to vector<16x1xf32>
    %1162 = vector.broadcast %1161 : vector<16x1xf32> to vector<16x16xf32>
    %1163 = vector.broadcast %cst_527 : f32 to vector<16x16xf32>
    %1164 = arith.select %1159, %1162, %1163 : vector<16x16xi1>, vector<16x16xf32>
    %1165 = arith.addf %1157, %1164 : vector<16x16xf32>
    %c1_i32_528 = arith.constant 1 : i32
    %1166 = vector.broadcast %c1_i32_528 : i32 to vector<16x16xi32>
    %1167 = arith.cmpi eq, %9, %1166 : vector<16x16xi32>
    %1168 = vector.extract_strided_slice %1125 {offsets = [0, 5], sizes = [16, 1], strides = [1, 1]} : vector<16x9xf32> to vector<16x1xf32>
    %cst_529 = arith.constant 0.000000e+00 : f32
    %1169 = vector.shape_cast %1168 : vector<16x1xf32> to vector<16x1xf32>
    %1170 = vector.broadcast %1169 : vector<16x1xf32> to vector<16x16xf32>
    %1171 = vector.broadcast %cst_529 : f32 to vector<16x16xf32>
    %1172 = arith.select %1167, %1170, %1171 : vector<16x16xi1>, vector<16x16xf32>
    %1173 = arith.addf %1165, %1172 : vector<16x16xf32>
    %c2_i32_530 = arith.constant 2 : i32
    %1174 = vector.broadcast %c2_i32_530 : i32 to vector<16x16xi32>
    %1175 = arith.cmpi eq, %9, %1174 : vector<16x16xi32>
    %1176 = vector.extract_strided_slice %1125 {offsets = [0, 6], sizes = [16, 1], strides = [1, 1]} : vector<16x9xf32> to vector<16x1xf32>
    %cst_531 = arith.constant 0.000000e+00 : f32
    %1177 = vector.shape_cast %1176 : vector<16x1xf32> to vector<16x1xf32>
    %1178 = vector.broadcast %1177 : vector<16x1xf32> to vector<16x16xf32>
    %1179 = vector.broadcast %cst_531 : f32 to vector<16x16xf32>
    %1180 = arith.select %1175, %1178, %1179 : vector<16x16xi1>, vector<16x16xf32>
    %1181 = arith.addf %1173, %1180 : vector<16x16xf32>
    %c3_i32_532 = arith.constant 3 : i32
    %1182 = vector.broadcast %c3_i32_532 : i32 to vector<16x16xi32>
    %1183 = arith.cmpi eq, %9, %1182 : vector<16x16xi32>
    %1184 = vector.extract_strided_slice %1125 {offsets = [0, 7], sizes = [16, 1], strides = [1, 1]} : vector<16x9xf32> to vector<16x1xf32>
    %cst_533 = arith.constant 0.000000e+00 : f32
    %1185 = vector.shape_cast %1184 : vector<16x1xf32> to vector<16x1xf32>
    %1186 = vector.broadcast %1185 : vector<16x1xf32> to vector<16x16xf32>
    %1187 = vector.broadcast %cst_533 : f32 to vector<16x16xf32>
    %1188 = arith.select %1183, %1186, %1187 : vector<16x16xi1>, vector<16x16xf32>
    %1189 = arith.addf %1181, %1188 : vector<16x16xf32>
    %c4_i32_534 = arith.constant 4 : i32
    %1190 = vector.broadcast %c4_i32_534 : i32 to vector<16x16xi32>
    %1191 = arith.cmpi eq, %9, %1190 : vector<16x16xi32>
    %1192 = vector.extract_strided_slice %1125 {offsets = [0, 8], sizes = [16, 1], strides = [1, 1]} : vector<16x9xf32> to vector<16x1xf32>
    %cst_535 = arith.constant 0.000000e+00 : f32
    %1193 = vector.shape_cast %1192 : vector<16x1xf32> to vector<16x1xf32>
    %1194 = vector.broadcast %1193 : vector<16x1xf32> to vector<16x16xf32>
    %1195 = vector.broadcast %cst_535 : f32 to vector<16x16xf32>
    %1196 = arith.select %1191, %1194, %1195 : vector<16x16xi1>, vector<16x16xf32>
    %1197 = arith.addf %1189, %1196 : vector<16x16xf32>
    %cst_536 = arith.constant -1.000000e+04 : f32
    %1198 = vector.broadcast %cst_536 : f32 to vector<16x16xf32>
    %1199 = arith.select %648, %1197, %1198 : vector<16x16xi1>, vector<16x16xf32>
    %cst_537 = arith.constant dense<0xFF800000> : vector<16xf32>
    %1200 = vector.multi_reduction <maximumf>, %1199, %cst_537 [1] : vector<16x16xf32> to vector<16xf32>
    %1201 = vector.shape_cast %1200 : vector<16xf32> to vector<16x1xf32>
    %1202 = vector.broadcast %1201 : vector<16x1xf32> to vector<16x16xf32>
    %1203 = arith.subf %1199, %1202 : vector<16x16xf32>
    %1204 = math.exp %1203 : vector<16x16xf32>
    %cst_538 = arith.constant dense<0.000000e+00> : vector<16xf32>
    %1205 = vector.multi_reduction <add>, %1204, %cst_538 [1] : vector<16x16xf32> to vector<16xf32>
    %1206 = vector.shape_cast %1205 : vector<16xf32> to vector<16x1xf32>
    %1207 = tpu.reciprocal %1206 {approx = true} : vector<16x1xf32> -> vector<16x1xf32>
    %1208 = vector.broadcast %1207 : vector<16x1xf32> to vector<16x16xf32>
    %1209 = arith.mulf %1204, %1208 : vector<16x16xf32>
    %cst_539 = arith.constant dense<0.000000e+00> : vector<16x8xf32>
    %1210 = tpu.matmul %1209, %1123, %cst_539 {dimension_numbers = #tpu.dot_dimension_numbers<[1], [0], [0], [1], [0, 0, 1, 1], [], []>} : vector<16x16xf32>, vector<16x8xf32>, vector<16x8xf32> -> vector<16x8xf32>
    %c-4_i32_540 = arith.constant -4 : i32
    %1211 = vector.broadcast %c-4_i32_540 : i32 to vector<16x16xi32>
    %1212 = arith.cmpi eq, %9, %1211 : vector<16x16xi32>
    %cst_541 = arith.constant 0.000000e+00 : f32
    %1213 = vector.broadcast %cst_541 : f32 to vector<16x16xf32>
    %1214 = arith.select %1212, %1209, %1213 : vector<16x16xi1>, vector<16x16xf32>
    %cst_542 = arith.constant dense<0.000000e+00> : vector<16xf32>
    %1215 = vector.multi_reduction <add>, %1214, %cst_542 [1] : vector<16x16xf32> to vector<16xf32>
    %1216 = vector.shape_cast %1215 : vector<16xf32> to vector<16x1xf32>
    %c0_543 = arith.constant 0 : index
    %c0_544 = arith.constant 0 : index
    %1217 = vector.load %arg10[%c0_543, %c0_544] : memref<16x9xf32, #tpu.memory_space<vmem>>, vector<16x1xf32>
    tpu.vector_store %arg10[%c0_543, %c0_544], %1216 {strides = array<i32>} : memref<16x9xf32, #tpu.memory_space<vmem>>, vector<16x1xf32>,
    %c-3_i32_545 = arith.constant -3 : i32
    %1218 = vector.broadcast %c-3_i32_545 : i32 to vector<16x16xi32>
    %1219 = arith.cmpi eq, %9, %1218 : vector<16x16xi32>
    %cst_546 = arith.constant 0.000000e+00 : f32
    %1220 = vector.broadcast %cst_546 : f32 to vector<16x16xf32>
    %1221 = arith.select %1219, %1209, %1220 : vector<16x16xi1>, vector<16x16xf32>
    %cst_547 = arith.constant dense<0.000000e+00> : vector<16xf32>
    %1222 = vector.multi_reduction <add>, %1221, %cst_547 [1] : vector<16x16xf32> to vector<16xf32>
    %1223 = vector.shape_cast %1222 : vector<16xf32> to vector<16x1xf32>
    %c0_548 = arith.constant 0 : index
    %c1_549 = arith.constant 1 : index
    %1224 = vector.load %arg10[%c0_548, %c1_549] : memref<16x9xf32, #tpu.memory_space<vmem>>, vector<16x1xf32>
    tpu.vector_store %arg10[%c0_548, %c1_549], %1223 {strides = array<i32>} : memref<16x9xf32, #tpu.memory_space<vmem>>, vector<16x1xf32>,
    %c-2_i32_550 = arith.constant -2 : i32
    %1225 = vector.broadcast %c-2_i32_550 : i32 to vector<16x16xi32>
    %1226 = arith.cmpi eq, %9, %1225 : vector<16x16xi32>
    %cst_551 = arith.constant 0.000000e+00 : f32
    %1227 = vector.broadcast %cst_551 : f32 to vector<16x16xf32>
    %1228 = arith.select %1226, %1209, %1227 : vector<16x16xi1>, vector<16x16xf32>
    %cst_552 = arith.constant dense<0.000000e+00> : vector<16xf32>
    %1229 = vector.multi_reduction <add>, %1228, %cst_552 [1] : vector<16x16xf32> to vector<16xf32>
    %1230 = vector.shape_cast %1229 : vector<16xf32> to vector<16x1xf32>
    %c0_553 = arith.constant 0 : index
    %c2_554 = arith.constant 2 : index
    %1231 = vector.load %arg10[%c0_553, %c2_554] : memref<16x9xf32, #tpu.memory_space<vmem>>, vector<16x1xf32>
    tpu.vector_store %arg10[%c0_553, %c2_554], %1230 {strides = array<i32>} : memref<16x9xf32, #tpu.memory_space<vmem>>, vector<16x1xf32>,
    %c-1_i32_555 = arith.constant -1 : i32
    %1232 = vector.broadcast %c-1_i32_555 : i32 to vector<16x16xi32>
    %1233 = arith.cmpi eq, %9, %1232 : vector<16x16xi32>
    %cst_556 = arith.constant 0.000000e+00 : f32
    %1234 = vector.broadcast %cst_556 : f32 to vector<16x16xf32>
    %1235 = arith.select %1233, %1209, %1234 : vector<16x16xi1>, vector<16x16xf32>
    %cst_557 = arith.constant dense<0.000000e+00> : vector<16xf32>
    %1236 = vector.multi_reduction <add>, %1235, %cst_557 [1] : vector<16x16xf32> to vector<16xf32>
    %1237 = vector.shape_cast %1236 : vector<16xf32> to vector<16x1xf32>
    %c0_558 = arith.constant 0 : index
    %c3_559 = arith.constant 3 : index
    %1238 = vector.load %arg10[%c0_558, %c3_559] : memref<16x9xf32, #tpu.memory_space<vmem>>, vector<16x1xf32>
    tpu.vector_store %arg10[%c0_558, %c3_559], %1237 {strides = array<i32>} : memref<16x9xf32, #tpu.memory_space<vmem>>, vector<16x1xf32>,
    %c0_i32_560 = arith.constant 0 : i32
    %1239 = vector.broadcast %c0_i32_560 : i32 to vector<16x16xi32>
    %1240 = arith.cmpi eq, %9, %1239 : vector<16x16xi32>
    %cst_561 = arith.constant 0.000000e+00 : f32
    %1241 = vector.broadcast %cst_561 : f32 to vector<16x16xf32>
    %1242 = arith.select %1240, %1209, %1241 : vector<16x16xi1>, vector<16x16xf32>
    %cst_562 = arith.constant dense<0.000000e+00> : vector<16xf32>
    %1243 = vector.multi_reduction <add>, %1242, %cst_562 [1] : vector<16x16xf32> to vector<16xf32>
    %1244 = vector.shape_cast %1243 : vector<16xf32> to vector<16x1xf32>
    %c0_563 = arith.constant 0 : index
    %c4_564 = arith.constant 4 : index
    %1245 = vector.load %arg10[%c0_563, %c4_564] : memref<16x9xf32, #tpu.memory_space<vmem>>, vector<16x1xf32>
    tpu.vector_store %arg10[%c0_563, %c4_564], %1244 {strides = array<i32>} : memref<16x9xf32, #tpu.memory_space<vmem>>, vector<16x1xf32>,
    %c1_i32_565 = arith.constant 1 : i32
    %1246 = vector.broadcast %c1_i32_565 : i32 to vector<16x16xi32>
    %1247 = arith.cmpi eq, %9, %1246 : vector<16x16xi32>
    %cst_566 = arith.constant 0.000000e+00 : f32
    %1248 = vector.broadcast %cst_566 : f32 to vector<16x16xf32>
    %1249 = arith.select %1247, %1209, %1248 : vector<16x16xi1>, vector<16x16xf32>
    %cst_567 = arith.constant dense<0.000000e+00> : vector<16xf32>
    %1250 = vector.multi_reduction <add>, %1249, %cst_567 [1] : vector<16x16xf32> to vector<16xf32>
    %1251 = vector.shape_cast %1250 : vector<16xf32> to vector<16x1xf32>
    %c0_568 = arith.constant 0 : index
    %c5_569 = arith.constant 5 : index
    %1252 = vector.load %arg10[%c0_568, %c5_569] : memref<16x9xf32, #tpu.memory_space<vmem>>, vector<16x1xf32>
    tpu.vector_store %arg10[%c0_568, %c5_569], %1251 {strides = array<i32>} : memref<16x9xf32, #tpu.memory_space<vmem>>, vector<16x1xf32>,
    %c2_i32_570 = arith.constant 2 : i32
    %1253 = vector.broadcast %c2_i32_570 : i32 to vector<16x16xi32>
    %1254 = arith.cmpi eq, %9, %1253 : vector<16x16xi32>
    %cst_571 = arith.constant 0.000000e+00 : f32
    %1255 = vector.broadcast %cst_571 : f32 to vector<16x16xf32>
    %1256 = arith.select %1254, %1209, %1255 : vector<16x16xi1>, vector<16x16xf32>
    %cst_572 = arith.constant dense<0.000000e+00> : vector<16xf32>
    %1257 = vector.multi_reduction <add>, %1256, %cst_572 [1] : vector<16x16xf32> to vector<16xf32>
    %1258 = vector.shape_cast %1257 : vector<16xf32> to vector<16x1xf32>
    %c0_573 = arith.constant 0 : index
    %c6_574 = arith.constant 6 : index
    %1259 = vector.load %arg10[%c0_573, %c6_574] : memref<16x9xf32, #tpu.memory_space<vmem>>, vector<16x1xf32>
    tpu.vector_store %arg10[%c0_573, %c6_574], %1258 {strides = array<i32>} : memref<16x9xf32, #tpu.memory_space<vmem>>, vector<16x1xf32>,
    %c3_i32_575 = arith.constant 3 : i32
    %1260 = vector.broadcast %c3_i32_575 : i32 to vector<16x16xi32>
    %1261 = arith.cmpi eq, %9, %1260 : vector<16x16xi32>
    %cst_576 = arith.constant 0.000000e+00 : f32
    %1262 = vector.broadcast %cst_576 : f32 to vector<16x16xf32>
    %1263 = arith.select %1261, %1209, %1262 : vector<16x16xi1>, vector<16x16xf32>
    %cst_577 = arith.constant dense<0.000000e+00> : vector<16xf32>
    %1264 = vector.multi_reduction <add>, %1263, %cst_577 [1] : vector<16x16xf32> to vector<16xf32>
    %1265 = vector.shape_cast %1264 : vector<16xf32> to vector<16x1xf32>
    %c0_578 = arith.constant 0 : index
    %c7_579 = arith.constant 7 : index
    %1266 = vector.load %arg10[%c0_578, %c7_579] : memref<16x9xf32, #tpu.memory_space<vmem>>, vector<16x1xf32>
    tpu.vector_store %arg10[%c0_578, %c7_579], %1265 {strides = array<i32>} : memref<16x9xf32, #tpu.memory_space<vmem>>, vector<16x1xf32>,
    %c4_i32_580 = arith.constant 4 : i32
    %1267 = vector.broadcast %c4_i32_580 : i32 to vector<16x16xi32>
    %1268 = arith.cmpi eq, %9, %1267 : vector<16x16xi32>
    %cst_581 = arith.constant 0.000000e+00 : f32
    %1269 = vector.broadcast %cst_581 : f32 to vector<16x16xf32>
    %1270 = arith.select %1268, %1209, %1269 : vector<16x16xi1>, vector<16x16xf32>
    %cst_582 = arith.constant dense<0.000000e+00> : vector<16xf32>
    %1271 = vector.multi_reduction <add>, %1270, %cst_582 [1] : vector<16x16xf32> to vector<16xf32>
    %1272 = vector.shape_cast %1271 : vector<16xf32> to vector<16x1xf32>
    %c0_583 = arith.constant 0 : index
    %c8_584 = arith.constant 8 : index
    %1273 = vector.load %arg10[%c0_583, %c8_584] : memref<16x9xf32, #tpu.memory_space<vmem>>, vector<16x1xf32>
    tpu.vector_store %arg10[%c0_583, %c8_584], %1272 {strides = array<i32>} : memref<16x9xf32, #tpu.memory_space<vmem>>, vector<16x1xf32>,
    %c0_585 = arith.constant 0 : index
    %c0_586 = arith.constant 0 : index
    %1274 = vector.load %arg10[%c0_585, %c0_586] : memref<16x9xf32, #tpu.memory_space<vmem>>, vector<16x9xf32>
    %cst_587 = arith.constant dense<0.000000e+00> : vector<16x8xf32>
    %1275 = tpu.matmul %1274, %11, %cst_587 {dimension_numbers = #tpu.dot_dimension_numbers<[1], [0], [0], [1], [0, 0, 1, 1], [], []>} : vector<16x9xf32>, vector<9x8xf32>, vector<16x8xf32> -> vector<16x8xf32>
    %1276 = arith.addf %1210, %1275 : vector<16x8xf32>
    %c16_588 = arith.constant 16 : index
    %c24_589 = arith.constant 24 : index
    %1277 = vector.load %arg11[%c16_588, %c24_589] : memref<32x32xf32, #tpu.memory_space<vmem>>, vector<16x8xf32>
    tpu.vector_store %arg11[%c16_588, %c24_589], %1276 {strides = array<i32>} : memref<32x32xf32, #tpu.memory_space<vmem>>, vector<16x8xf32>,
    %c0_590 = arith.constant 0 : index
    %c0_591 = arith.constant 0 : index
    %1278 = vector.load %arg11[%c0_590, %c0_591] : memref<32x32xf32, #tpu.memory_space<vmem>>, vector<32x32xf32>
    %c0_592 = arith.constant 0 : index
    %c0_593 = arith.constant 0 : index
    %1279 = vector.load %arg4[%c0_592, %c0_593] : memref<32x32xf32, #tpu.memory_space<vmem>>, vector<32x32xf32>
    %cst_594 = arith.constant dense<0.000000e+00> : vector<32x32xf32>
    %1280 = tpu.matmul %1278, %1279, %cst_594 {dimension_numbers = #tpu.dot_dimension_numbers<[1], [0], [0], [1], [0, 0, 1, 1], [], []>} : vector<32x32xf32>, vector<32x32xf32>, vector<32x32xf32> -> vector<32x32xf32>
    %c0_595 = arith.constant 0 : index
    %c0_596 = arith.constant 0 : index
    %1281 = vector.load %arg5[%c0_595, %c0_596] : memref<1x32xf32, #tpu.memory_space<vmem>>, vector<1x32xf32>
    %1282 = vector.broadcast %1281 : vector<1x32xf32> to vector<32x32xf32>
    %1283 = arith.addf %1280, %1282 : vector<32x32xf32>
    %1284 = vector.shape_cast %1283 : vector<32x32xf32> to vector<2x16x32xf32>
    %c0_597 = arith.constant 0 : index
    %c0_598 = arith.constant 0 : index
    %c0_599 = arith.constant 0 : index
    %1285 = vector.load %arg9[%c0_597, %c0_598, %c0_599] : memref<2x16x32xf32, #tpu.memory_space<vmem>>, vector<2x16x32xf32>
    tpu.vector_store %arg9[%c0_597, %c0_598, %c0_599], %1284 {strides = array<i32>} : memref<2x16x32xf32, #tpu.memory_space<vmem>>, vector<2x16x32xf32>,
    return
  }
  func.func @transform_0(%arg0: i32) -> (i32, i32, i32) {
    %c0_i32 = arith.constant 0 : i32
    %c0_i32_0 = arith.constant 0 : i32
    %c0_i32_1 = arith.constant 0 : i32
    return %arg0, %c0_i32, %c0_i32_0 : i32, i32, i32
  }
  func.func @transform_1(%arg0: i32) -> (i32, i32) {
    %c0_i32 = arith.constant 0 : i32
    %c0_i32_0 = arith.constant 0 : i32
    %c0_i32_1 = arith.constant 0 : i32
    return %c0_i32, %c0_i32_0 : i32, i32
  }
  func.func @transform_2(%arg0: i32) -> (i32, i32) {
    %c0_i32 = arith.constant 0 : i32
    %c0_i32_0 = arith.constant 0 : i32
    %c0_i32_1 = arith.constant 0 : i32
    return %c0_i32, %c0_i32_0 : i32, i32
  }
  func.func @transform_3(%arg0: i32) -> (i32, i32) {
    %c0_i32 = arith.constant 0 : i32
    %c0_i32_0 = arith.constant 0 : i32
    %c0_i32_1 = arith.constant 0 : i32
    return %c0_i32, %c0_i32_0 : i32, i32
  }
  func.func @transform_4(%arg0: i32) -> (i32, i32) {
    %c0_i32 = arith.constant 0 : i32
    %c0_i32_0 = arith.constant 0 : i32
    %c0_i32_1 = arith.constant 0 : i32
    return %c0_i32, %c0_i32_0 : i32, i32
  }
  func.func @transform_5(%arg0: i32) -> (i32, i32) {
    %c0_i32 = arith.constant 0 : i32
    %c0_i32_0 = arith.constant 0 : i32
    %c0_i32_1 = arith.constant 0 : i32
    return %c0_i32, %c0_i32_0 : i32, i32
  }
  func.func @transform_6(%arg0: i32) -> (i32, i32) {
    %c0_i32 = arith.constant 0 : i32
    %c0_i32_0 = arith.constant 0 : i32
    %c0_i32_1 = arith.constant 0 : i32
    return %c0_i32, %c0_i32_0 : i32, i32
  }
  func.func @transform_7(%arg0: i32) -> (i32, i32, i32) {
    %c0_i32 = arith.constant 0 : i32
    %c0_i32_0 = arith.constant 0 : i32
    %c0_i32_1 = arith.constant 0 : i32
    return %arg0, %c0_i32, %c0_i32_0 : i32, i32, i32
  }
  func.func @transform_8(%arg0: i32) -> (i32, i32, i32) {
    %c0_i32 = arith.constant 0 : i32
    %c0_i32_0 = arith.constant 0 : i32
    %c0_i32_1 = arith.constant 0 : i32
    return %arg0, %c0_i32, %c0_i32_0 : i32, i32, i32
  }
}

</mosaic_0001>

<llo_original>
// kernel: tpu_custom_call.1
$region0: #{tpu_custom_call.1}
  #allocation0 [shape = 'u32[]', space=smem, size = 0x4, offset = 0x4, fixed_abs, tag = 'smem constant byte address 0x4 - core index']
  #allocation1 [shape = 'u32[72,128]{1,0:T(1,128)}', space=vmem, size = 0x9000, scoped, tag = 'internal scratch']
  #allocation2 [shape = 'f32[16,9]{1,0:T(8,128)}', space=vmem, size = 0x2000, scoped, tag = 'scratch operand']
  #allocation3 [shape = 'f32[32,32]{1,0:T(8,128)}', space=vmem, size = 0x4000, scoped, tag = 'scratch operand']
  %s0 = inlined_call_operand.hbm [shape: f32[2,16,32], index: 0, kind: input, shape index: {}]
  %s1 = inlined_call_operand.hbm [shape: f32[32,96], index: 1, kind: input, shape index: {}]
  %s2 = inlined_call_operand.vmem [shape: f32[1,96], index: 2, kind: input, shape index: {}]
  %s3 = inlined_call_operand.hbm [shape: f32[32,32], index: 3, kind: input, shape index: {}]
  %s4 = inlined_call_operand.vmem [shape: f32[1,32], index: 4, kind: input, shape index: {}]
  %s5 = inlined_call_operand.vmem [shape: f32[8,9], index: 5, kind: input, shape index: {}]
  %s6 = inlined_call_operand.vmem [shape: f32[9,8], index: 6, kind: input, shape index: {}]
  %s7 = inlined_call_operand.vmem [shape: s8[2,16,16], index: 7, kind: input, shape index: {}]
  %s8 = inlined_call_operand.hbm [shape: f32[2,16,32], index: 8, kind: output, shape index: {}]
  %s9 = sld [smem:[#allocation0]]
  $region54: #{tpu_custom_call.1} parent=0
    _
  %s11 = ssub.s32 1, %s9
  %s12 = scalar_select 0, %s11, %s9
  $region1: #{tpu_custom_call.1} parent=0
    #allocation4 [shape = 'u8[16384]{0}', space=vmem, size = 0x4000, scoped, tag = 'input window, operand 0, single buffered']
    #allocation5 [shape = 's32[1]{0}', space=sflag, size = 0x4, scoped, tag = 'scoped memory for tpu_custom_call.1']
    #allocation6 [shape = 's32[1]{0}', space=sflag, size = 0x4, scoped, tag = 'scoped memory for tpu_custom_call.1']
    #allocation7 [shape = 'u8[16384]{0}', space=vmem, size = 0x4000, scoped, tag = 'input window, operand 1, single buffered']
    #allocation8 [shape = 's32[1]{0}', space=sflag, size = 0x4, scoped, tag = 'scoped memory for tpu_custom_call.1']
    #allocation9 [shape = 'u8[16384]{0}', space=vmem, size = 0x4000, scoped, tag = 'input window, operand 3, single buffered']
    #allocation10 [shape = 'u8[16384]{0}', space=vmem, size = 0x4000, scoped, tag = 'output window, operand 0, single buffered']
    %13 = vsyncpa [#allocation5], 0
    %14 = vsyncpa [#allocation8], 0
    %15 = vsyncpa [#allocation6], 0
    // Predicated region
    $region2: #{tpu_custom_call.1} parent=1 // pred_check
      _
    $region3: #{tpu_custom_call.1} parent=1 // pred_check_branch
      %17 = sbr.rel (0) target = $region5
    $region4: #{tpu_custom_call.1} parent=1 // pred_region
      %19 = vsyncadd [#allocation5], 0
      %s20 = sshll.u32 %s0, 4
      %s21 = int_to_ptr.hbm [resolvable:$true] %s20
      %s22 = sshll.u32 [#allocation4], 4
      %s23 = int_to_ptr.vmem [resolvable:$true] %s22
      %28 = dma.hbm_to_vmem [thread:$0]  %s21, 512, %s23, [#allocation5], 128, 128, 8
    $region5: #{tpu_custom_call.1} parent=1 // pred_fallthru
      _
    // Predicated region
    $region6: #{tpu_custom_call.1} parent=1 // pred_check
      _
    $region7: #{tpu_custom_call.1} parent=1 // pred_check_branch
      %30 = sbr.rel (0) target = $region9
    $region8: #{tpu_custom_call.1} parent=1 // pred_region
      %32 = vsyncadd [#allocation8], 0
      %s33 = sshll.u32 %s1, 4
      %s34 = int_to_ptr.hbm [resolvable:$true] %s33
      %s35 = sshll.u32 [#allocation7], 4
      %s36 = int_to_ptr.vmem [resolvable:$true] %s35
      %41 = dma.hbm_to_vmem [thread:$0]  %s34, 512, %s36, [#allocation8], 128, 128, 8
    $region9: #{tpu_custom_call.1} parent=1 // pred_fallthru
      _
    // Predicated region
    $region10: #{tpu_custom_call.1} parent=1 // pred_check
      _
    $region11: #{tpu_custom_call.1} parent=1 // pred_check_branch
      %43 = sbr.rel (0) target = $region13
    $region12: #{tpu_custom_call.1} parent=1 // pred_region
      _
    $region13: #{tpu_custom_call.1} parent=1 // pred_fallthru
      _
    // Predicated region
    $region14: #{tpu_custom_call.1} parent=1 // pred_check
      _
    $region15: #{tpu_custom_call.1} parent=1 // pred_check_branch
      %45 = sbr.rel (0) target = $region17
    $region16: #{tpu_custom_call.1} parent=1 // pred_region
      %47 = vsyncadd [#allocation8], 0
      %s48 = sshll.u32 %s3, 4
      %s49 = int_to_ptr.hbm [resolvable:$true] %s48
      %s50 = sshll.u32 [#allocation9], 4
      %s51 = int_to_ptr.vmem [resolvable:$true] %s50
      %56 = dma.hbm_to_vmem [thread:$0]  %s49, 512, %s51, [#allocation8], 128, 128, 8
    $region17: #{tpu_custom_call.1} parent=1 // pred_fallthru
      _
    // Predicated region
    $region18: #{tpu_custom_call.1} parent=1 // pred_check
      _
    $region19: #{tpu_custom_call.1} parent=1 // pred_check_branch
      %58 = sbr.rel (0) target = $region21
    $region20: #{tpu_custom_call.1} parent=1 // pred_region
      _
    $region21: #{tpu_custom_call.1} parent=1 // pred_fallthru
      _
    // Predicated region
    $region22: #{tpu_custom_call.1} parent=1 // pred_check
      _
    $region23: #{tpu_custom_call.1} parent=1 // pred_check_branch
      %60 = sbr.rel (0) target = $region25
    $region24: #{tpu_custom_call.1} parent=1 // pred_region
      _
    $region25: #{tpu_custom_call.1} parent=1 // pred_fallthru
      _
    // Predicated region
    $region26: #{tpu_custom_call.1} parent=1 // pred_check
      _
    $region27: #{tpu_custom_call.1} parent=1 // pred_check_branch
      %62 = sbr.rel (0) target = $region29
    $region28: #{tpu_custom_call.1} parent=1 // pred_region
      _
    $region29: #{tpu_custom_call.1} parent=1 // pred_fallthru
      _
    // Predicated region
    $region30: #{tpu_custom_call.1} parent=1 // pred_check
      _
    $region31: #{tpu_custom_call.1} parent=1 // pred_check_branch
      %64 = sbr.rel (0) target = $region33
    $region32: #{tpu_custom_call.1} parent=1 // pred_region
      _
    $region33: #{tpu_custom_call.1} parent=1 // pred_fallthru
      _
    // Predicated region
    $region34: #{tpu_custom_call.1} parent=1 // pred_check
      _
    $region35: #{tpu_custom_call.1} parent=1 // pred_check_branch
      %66 = sbr.rel (0) target = $region37
    $region36: #{tpu_custom_call.1} parent=1 // pred_region
      %68 = dma.done [#allocation5], 512
    $region37: #{tpu_custom_call.1} parent=1 // pred_fallthru
      _
    // Predicated region
    $region38: #{tpu_custom_call.1} parent=1 // pred_check
      _
    $region39: #{tpu_custom_call.1} parent=1 // pred_check_branch
      %70 = sbr.rel (0) target = $region41
    $region40: #{tpu_custom_call.1} parent=1 // pred_region
      %72 = dma.done [#allocation8], 512
    $region41: #{tpu_custom_call.1} parent=1 // pred_fallthru
      _
    // Predicated region
    $region42: #{tpu_custom_call.1} parent=1 // pred_check
      _
    $region43: #{tpu_custom_call.1} parent=1 // pred_check_branch
      %74 = sbr.rel (0) target = $region45
    $region44: #{tpu_custom_call.1} parent=1 // pred_region
      %76 = dma.done [#allocation8], 512
    $region45: #{tpu_custom_call.1} parent=1 // pred_fallthru
      _
    %v79 = vld [vmem:[#allocation4] sm:$0xff]
    %v80 = vld [vmem:[#allocation4 + $0x8] sm:$0xff]
    %v81 = vld [vmem:[#allocation4 + $0x10] sm:$0xff]
    %v82 = vld [vmem:[#allocation4 + $0x18] sm:$0xff]
    %v83 = vld [vmem:[#allocation7] sm:$0xff]
    %v84 = vld [vmem:[#allocation7 + $0x8] sm:$0xff]
    %v85 = vld [vmem:[#allocation7 + $0x10] sm:$0xff]
    %v86 = vld [vmem:[#allocation7 + $0x18] sm:$0xff]
    %v87 = vld [vmem:[%s2] sm:$0x1]
    %v89 = vperm.slane %v87, 0
    %vm91 = vcmask 261120
    %v93 = vsel %vm91, %v79, 0
    %v96 = vsel %vm91, %v80, 0
    %v99 = vsel %vm91, %v81, 0
    %v102 = vsel %vm91, %v82, 0
    %104 = vmatpush.msra.mxu0 0.0
    %105 = vmatpush.msra.mxu0 0.0
    %106 = vmatpush.msra.mxu0 0.0
    %107 = vmatpush.msra.mxu0 0.0
    %108 = vmatpush.msra.mxu0 0.0
    %109 = vmatpush.msra.mxu0 0.0
    %110 = vmatpush.msra.mxu0 0.0
    %111 = vmatpush.msra.mxu0 0.0
    %112 = vmatpush.msra.mxu0 0.0
    %113 = vmatpush.msra.mxu0 0.0
    %114 = vmatpush.msra.mxu0 0.0
    %115 = vmatpush.msra.mxu0 0.0
    %116 = vmatpush.msra.mxu0 %v86
    %117 = vmatpush.msra.mxu0 %v85
    %118 = vmatpush.msra.mxu0 %v84
    %119 = vmatpush.msra.mxu0 %v83
    %120 = vmatmul.f32.gmra.mxu0 %v93
    %v121 = vpop.f32.mrf.mxu0
    %v122 = vadd.f32 %v89, %v121
    %123 = vmatmul.f32.gmra.mxu0 %v96
    %v124 = vpop.f32.mrf.mxu0
    %v125 = vadd.f32 %v89, %v124
    %126 = vmatmul.f32.gmra.mxu0 %v99
    %v127 = vpop.f32.mrf.mxu0
    %v128 = vadd.f32 %v89, %v127
    %129 = vmatmul.f32.gmra.mxu0 %v102
    %v130 = vpop.f32.mrf.mxu0
    %v131 = vadd.f32 %v89, %v130
    %132 = vdwg.mxu0
    %v133 = vlaneseq
    %v134 = vand.u32 %v133, 127
    %v135 = vlaneseq
    %v136 = vshrl.u32 %v135, 7
    %v137 = vadd.s32 %v136, 8
    %v138 = vsub.s32 %v134, %v136
    %v139 = vsub.s32 %v134, %v137
    %v140 = vld [vmem:[%s5] sm:$0xff]
    %v141 = vld [vmem:[%s6] sm:$0xff]
    %v142 = vld [vmem:[%s6 + $0x8] sm:$0x1]
    %v143 = vld [vmem:[%s7] sm:$0x3]
    %v144 = vld [vmem:[%s7 + $0x2] sm:$0x3]
    %vm145 = vnez %v143
    %vm146 = vnez %v144
    %vm147 = vcmask 64512
    %v149 = vsel %vm147, %v122, 0
    %v152 = vsel %vm147, %v125, 0
    %154 = vmatpush.msra.mxu0 0.0
    %155 = vmatpush.msra.mxu0 0.0
    %156 = vmatpush.msra.mxu0 0.0
    %157 = vmatpush.msra.mxu0 0.0
    %158 = vmatpush.msra.mxu0 0.0
    %159 = vmatpush.msra.mxu0 0.0
    %160 = vmatpush.msra.mxu0 0.0
    %161 = vmatpush.msra.mxu0 0.0
    %162 = vmatpush.msra.mxu0 0.0
    %163 = vmatpush.msra.mxu0 0.0
    %164 = vmatpush.msra.mxu0 0.0
    %165 = vmatpush.msra.mxu0 0.0
    %166 = vmatpush.msra.mxu0 0.0
    %167 = vmatpush.msra.mxu0 0.0
    %168 = vmatpush.msra.mxu0 0.0
    %169 = vmatpush.msra.mxu0 %v140
    %170 = vmatmul.f32.gmra.mxu0 %v149
    %v171 = vpop.f32.mrf.mxu0
    %v172 = vadd.f32 0.0, %v171
    %173 = vmatmul.f32.gmra.mxu0 %v152
    %v174 = vpop.f32.mrf.mxu0
    %v175 = vadd.f32 0.0, %v174
    %176 = vdwg.mxu0
    %vm177 = vcmp.eq.s32.totalorder %v138, 4294967292
    %vm178 = vcmp.eq.s32.totalorder %v139, 4294967292
    %180 = vset.pattern.permute.xlu0 0
    %181 = vperm.xlu0 %180, %v172
    %v182 = vpop.permute.xlu0 %181
    %185 = vset.pattern.permute.xlu0 0
    %186 = vperm.xlu0 %185, %v175
    %v187 = vpop.permute.xlu0 %186
    %v189 = vsel %vm177, %v182, 0.0
    %v190 = vsel %vm178, %v187, 0.0
    %191 = vrot.lane.b32.xlu0 %v122, 96
    %v192 = vpop.permute.xlu0 %191
    %193 = vrot.lane.b32.xlu0 %v125, 96
    %v194 = vpop.permute.xlu0 %193
    %v195 = vsel %vm147, %v192, 0
    %v197 = vsel %vm147, %v194, 0
    %199 = vmatpush.xpose.msra.mxu0 0.0
    %200 = vmatpush.xpose.msra.mxu0 0.0
    %201 = vmatpush.xpose.msra.mxu0 0.0
    %202 = vmatpush.xpose.msra.mxu0 0.0
    %203 = vmatpush.xpose.msra.mxu0 0.0
    %204 = vmatpush.xpose.msra.mxu0 0.0
    %205 = vmatpush.xpose.msra.mxu0 0.0
    %206 = vmatpush.xpose.msra.mxu0 0.0
    %207 = vmatpush.xpose.msra.mxu0 0.0
    %208 = vmatpush.xpose.msra.mxu0 0.0
    %209 = vmatpush.xpose.msra.mxu0 0.0
    %210 = vmatpush.xpose.msra.mxu0 0.0
    %211 = vmatpush.xpose.msra.mxu0 0.0
    %212 = vmatpush.xpose.msra.mxu0 0.0
    %213 = vmatpush.xpose.msra.mxu0 %v197
    %214 = vmatpush.xpose.msra.mxu0 %v195
    %215 = vmatmul.f32.gmra.mxu0 %v149
    %v216 = vpop.f32.mrf.mxu0
    %v217 = vadd.f32 %v189, %v216
    %218 = vmatmul.f32.gmra.mxu0 %v152
    %v219 = vpop.f32.mrf.mxu0
    %v220 = vadd.f32 %v190, %v219
    %221 = vdwg.mxu0
    %vm222 = vcmp.eq.s32.totalorder %v138, 4294967293
    %vm223 = vcmp.eq.s32.totalorder %v139, 4294967293
    %224 = vset.pattern.permute.xlu0 1
    %225 = vperm.xlu0 %224, %v172
    %v226 = vpop.permute.xlu0 %225
    %228 = vset.pattern.permute.xlu0 1
    %229 = vperm.xlu0 %228, %v175
    %v230 = vpop.permute.xlu0 %229
    %v232 = vsel %vm222, %v226, 0.0
    %v233 = vsel %vm223, %v230, 0.0
    %v234 = vadd.f32 %v217, %v232
    %v235 = vadd.f32 %v220, %v233
    %vm236 = vcmp.eq.s32.totalorder %v138, 4294967294
    %vm237 = vcmp.eq.s32.totalorder %v139, 4294967294
    %238 = vset.pattern.permute.xlu0 2
    %239 = vperm.xlu0 %238, %v172
    %v240 = vpop.permute.xlu0 %239
    %242 = vset.pattern.permute.xlu0 2
    %243 = vperm.xlu0 %242, %v175
    %v244 = vpop.permute.xlu0 %243
    %v246 = vsel %vm236, %v240, 0.0
    %v247 = vsel %vm237, %v244, 0.0
    %v248 = vadd.f32 %v234, %v246
    %v249 = vadd.f32 %v235, %v247
    %vm250 = vcmp.eq.s32.totalorder %v138, 4294967295
    %vm251 = vcmp.eq.s32.totalorder %v139, 4294967295
    %252 = vset.pattern.permute.xlu0 3
    %253 = vperm.xlu0 %252, %v172
    %v254 = vpop.permute.xlu0 %253
    %256 = vset.pattern.permute.xlu0 3
    %257 = vperm.xlu0 %256, %v175
    %v258 = vpop.permute.xlu0 %257
    %v260 = vsel %vm250, %v254, 0.0
    %v261 = vsel %vm251, %v258, 0.0
    %v262 = vadd.f32 %v248, %v260
    %v263 = vadd.f32 %v249, %v261
    %vm264 = vcmp.eq.s32.totalorder %v138, 0
    %vm265 = vcmp.eq.s32.totalorder %v139, 0
    %266 = vset.pattern.permute.xlu0 4
    %267 = vperm.xlu0 %266, %v172
    %v268 = vpop.permute.xlu0 %267
    %270 = vset.pattern.permute.xlu0 4
    %271 = vperm.xlu0 %270, %v175
    %v272 = vpop.permute.xlu0 %271
    %v274 = vsel %vm264, %v268, 0.0
    %v275 = vsel %vm265, %v272, 0.0
    %v276 = vadd.f32 %v262, %v274
    %v277 = vadd.f32 %v263, %v275
    %vm278 = vcmp.eq.s32.totalorder %v138, 1
    %vm279 = vcmp.eq.s32.totalorder %v139, 1
    %280 = vset.pattern.permute.xlu0 5
    %281 = vperm.xlu0 %280, %v172
    %v282 = vpop.permute.xlu0 %281
    %284 = vset.pattern.permute.xlu0 5
    %285 = vperm.xlu0 %284, %v175
    %v286 = vpop.permute.xlu0 %285
    %v288 = vsel %vm278, %v282, 0.0
    %v289 = vsel %vm279, %v286, 0.0
    %v290 = vadd.f32 %v276, %v288
    %v291 = vadd.f32 %v277, %v289
    %vm292 = vcmp.eq.s32.totalorder %v138, 2
    %vm293 = vcmp.eq.s32.totalorder %v139, 2
    %294 = vset.pattern.permute.xlu0 6
    %295 = vperm.xlu0 %294, %v172
    %v296 = vpop.permute.xlu0 %295
    %298 = vset.pattern.permute.xlu0 6
    %299 = vperm.xlu0 %298, %v175
    %v300 = vpop.permute.xlu0 %299
    %v302 = vsel %vm292, %v296, 0.0
    %v303 = vsel %vm293, %v300, 0.0
    %v304 = vadd.f32 %v290, %v302
    %v305 = vadd.f32 %v291, %v303
    %vm306 = vcmp.eq.s32.totalorder %v138, 3
    %vm307 = vcmp.eq.s32.totalorder %v139, 3
    %308 = vset.pattern.permute.xlu0 7
    %309 = vperm.xlu0 %308, %v172
    %v310 = vpop.permute.xlu0 %309
    %312 = vset.pattern.permute.xlu0 7
    %313 = vperm.xlu0 %312, %v175
    %v314 = vpop.permute.xlu0 %313
    %v316 = vsel %vm306, %v310, 0.0
    %v317 = vsel %vm307, %v314, 0.0
    %v318 = vadd.f32 %v304, %v316
    %v319 = vadd.f32 %v305, %v317
    %vm320 = vcmp.eq.s32.totalorder %v138, 4
    %vm321 = vcmp.eq.s32.totalorder %v139, 4
    %322 = vset.pattern.permute.xlu0 8
    %323 = vperm.xlu0 %322, %v172
    %v324 = vpop.permute.xlu0 %323
    %326 = vset.pattern.permute.xlu0 8
    %327 = vperm.xlu0 %326, %v175
    %v328 = vpop.permute.xlu0 %327
    %v330 = vsel %vm320, %v324, 0.0
    %v331 = vsel %vm321, %v328, 0.0
    %v332 = vadd.f32 %v318, %v330
    %v333 = vadd.f32 %v319, %v331
    %v334 = vsel %vm145, 16843009, 0
    %v335 = vsel %vm146, 16843009, 0
    %v336 = vunpack.c.0.s8 %v334
    %v337 = vunpack.c.0.s8 %v335
    %vm338 = vcmp.ne.s32.totalorder %v336, 0
    %vm339 = vcmp.ne.s32.totalorder %v337, 0
    %v340 = vsel %vm338, %v332, -10000.0
    %v341 = vsel %vm339, %v333, -10000.0
    %vm342 = vcmask 130048
    %v343 = vsel %vm342, %v340, -inf
    %344 = vmax.xlane.f32.xlu0 %v343
    %v345 = vpop.xlane.xlu0 %344
    %v346 = vsel %vm342, %v341, -inf
    %347 = vmax.xlane.f32.xlu0 %v346
    %v348 = vpop.xlane.xlu0 %347
    %v349 = vsub.f32 %v340, %v345
    %v350 = vsub.f32 %v341, %v348
    %v351 = vmul.f32 %v349, 1.442695
    %v352 = vpow.pop %v351
    %v353 = vmul.f32 %v350, 1.442695
    %v354 = vpow.pop %v353
    %v355 = vsel %vm342, %v352, 0.0
    %356 = vadd.xlane.f32.xlu0 %v355
    %v357 = vpop.xlane.xlu0 %356
    %v358 = vsel %vm342, %v354, 0.0
    %359 = vadd.xlane.f32.xlu0 %v358
    %v360 = vpop.xlane.xlu0 %359
    %v361 = vrcp.pop %v357
    %v362 = vrcp.pop %v360
    %v363 = vmul.f32 %v352, %v361
    %v364 = vmul.f32 %v354, %v362
    %v365 = vsel %vm177, %v363, 0.0
    %v366 = vsel %vm178, %v364, 0.0
    %v367 = vsel %vm342, %v365, 0.0
    %368 = vadd.xlane.f32.xlu0 %v367
    %v369 = vpop.xlane.xlu0 %368
    %v370 = vsel %vm342, %v366, 0.0
    %371 = vadd.xlane.f32.xlu0 %v370
    %v372 = vpop.xlane.xlu0 %371
    %vm373 = vcmask 7168
    %374 = vst.msk [vmem:[#allocation2] sm:$0xff] %vm373, %v369
    %375 = vst.msk [vmem:[#allocation2 + $0x8] sm:$0xff] %vm373, %v372
    %v376 = vsel %vm222, %v363, 0.0
    %v377 = vsel %vm223, %v364, 0.0
    %v378 = vsel %vm342, %v376, 0.0
    %379 = vadd.xlane.f32.xlu0 %v378
    %v380 = vpop.xlane.xlu0 %379
    %v381 = vsel %vm342, %v377, 0.0
    %382 = vadd.xlane.f32.xlu0 %v381
    %v383 = vpop.xlane.xlu0 %382
    %vm384 = vcmask 15368
    %385 = vst.msk [vmem:[#allocation2] sm:$0xff] %vm384, %v380
    %386 = vst.msk [vmem:[#allocation2 + $0x8] sm:$0xff] %vm384, %v383
    %v387 = vsel %vm236, %v363, 0.0
    %v388 = vsel %vm237, %v364, 0.0
    %v389 = vsel %vm342, %v387, 0.0
    %390 = vadd.xlane.f32.xlu0 %v389
    %v391 = vpop.xlane.xlu0 %390
    %v392 = vsel %vm342, %v388, 0.0
    %393 = vadd.xlane.f32.xlu0 %v392
    %v394 = vpop.xlane.xlu0 %393
    %vm395 = vcmask 23568
    %396 = vst.msk [vmem:[#allocation2] sm:$0xff] %vm395, %v391
    %397 = vst.msk [vmem:[#allocation2 + $0x8] sm:$0xff] %vm395, %v394
    %v398 = vsel %vm250, %v363, 0.0
    %v399 = vsel %vm251, %v364, 0.0
    %v400 = vsel %vm342, %v398, 0.0
    %401 = vadd.xlane.f32.xlu0 %v400
    %v402 = vpop.xlane.xlu0 %401
    %v403 = vsel %vm342, %v399, 0.0
    %404 = vadd.xlane.f32.xlu0 %v403
    %v405 = vpop.xlane.xlu0 %404
    %vm406 = vcmask 31768
    %407 = vst.msk [vmem:[#allocation2] sm:$0xff] %vm406, %v402
    %408 = vst.msk [vmem:[#allocation2 + $0x8] sm:$0xff] %vm406, %v405
    %v409 = vsel %vm264, %v363, 0.0
    %v410 = vsel %vm265, %v364, 0.0
    %v411 = vsel %vm342, %v409, 0.0
    %412 = vadd.xlane.f32.xlu0 %v411
    %v413 = vpop.xlane.xlu0 %412
    %v414 = vsel %vm342, %v410, 0.0
    %415 = vadd.xlane.f32.xlu0 %v414
    %v416 = vpop.xlane.xlu0 %415
    %vm417 = vcmask 39968
    %418 = vst.msk [vmem:[#allocation2] sm:$0xff] %vm417, %v413
    %419 = vst.msk [vmem:[#allocation2 + $0x8] sm:$0xff] %vm417, %v416
    %v420 = vsel %vm278, %v363, 0.0
    %v421 = vsel %vm279, %v364, 0.0
    %v422 = vsel %vm342, %v420, 0.0
    %423 = vadd.xlane.f32.xlu0 %v422
    %v424 = vpop.xlane.xlu0 %423
    %v425 = vsel %vm342, %v421, 0.0
    %426 = vadd.xlane.f32.xlu0 %v425
    %v427 = vpop.xlane.xlu0 %426
    %vm428 = vcmask 48168
    %429 = vst.msk [vmem:[#allocation2] sm:$0xff] %vm428, %v424
    %430 = vst.msk [vmem:[#allocation2 + $0x8] sm:$0xff] %vm428, %v427
    %v431 = vsel %vm292, %v363, 0.0
    %v432 = vsel %vm293, %v364, 0.0
    %v433 = vsel %vm342, %v431, 0.0
    %434 = vadd.xlane.f32.xlu0 %v433
    %v435 = vpop.xlane.xlu0 %434
    %v436 = vsel %vm342, %v432, 0.0
    %437 = vadd.xlane.f32.xlu0 %v436
    %v438 = vpop.xlane.xlu0 %437
    %vm439 = vcmask 56368
    %440 = vst.msk [vmem:[#allocation2] sm:$0xff] %vm439, %v435
    %441 = vst.msk [vmem:[#allocation2 + $0x8] sm:$0xff] %vm439, %v438
    %v442 = vsel %vm306, %v363, 0.0
    %v443 = vsel %vm307, %v364, 0.0
    %v444 = vsel %vm342, %v442, 0.0
    %445 = vadd.xlane.f32.xlu0 %v444
    %v446 = vpop.xlane.xlu0 %445
    %v447 = vsel %vm342, %v443, 0.0
    %448 = vadd.xlane.f32.xlu0 %v447
    %v449 = vpop.xlane.xlu0 %448
    %vm450 = vcmask 64568
    %451 = vst.msk [vmem:[#allocation2] sm:$0xff] %vm450, %v446
    %452 = vst.msk [vmem:[#allocation2 + $0x8] sm:$0xff] %vm450, %v449
    %v453 = vsel %vm320, %v363, 0.0
    %v454 = vsel %vm321, %v364, 0.0
    %v455 = vsel %vm342, %v453, 0.0
    %456 = vadd.xlane.f32.xlu0 %v455
    %v457 = vpop.xlane.xlu0 %456
    %v458 = vsel %vm342, %v454, 0.0
    %459 = vadd.xlane.f32.xlu0 %v458
    %v460 = vpop.xlane.xlu0 %459
    %vm461 = vcmask 72768
    %462 = vst.msk [vmem:[#allocation2] sm:$0xff] %vm461, %v457
    %463 = vst.msk [vmem:[#allocation2 + $0x8] sm:$0xff] %vm461, %v460
    %v464 = vld [vmem:[#allocation2] sm:$0xff]
    %v465 = vld [vmem:[#allocation2 + $0x8] sm:$0xff]
    %vm466 = vcmask 72704
    %v468 = vsel %vm466, %v464, 0
    %v471 = vsel %vm466, %v465, 0
    %vm473 = vcmask 1040384
    %v475 = vsel %vm473, %v142, 0
    %477 = vmatpush.msra.mxu0 0.0
    %478 = vmatpush.msra.mxu0 0.0
    %479 = vmatpush.msra.mxu0 0.0
    %480 = vmatpush.msra.mxu0 0.0
    %481 = vmatpush.msra.mxu0 0.0
    %482 = vmatpush.msra.mxu0 0.0
    %483 = vmatpush.msra.mxu0 0.0
    %484 = vmatpush.msra.mxu0 0.0
    %485 = vmatpush.msra.mxu0 0.0
    %486 = vmatpush.msra.mxu0 0.0
    %487 = vmatpush.msra.mxu0 0.0
    %488 = vmatpush.msra.mxu0 0.0
    %489 = vmatpush.msra.mxu0 0.0
    %490 = vmatpush.msra.mxu0 0.0
    %491 = vmatpush.msra.mxu0 %v475
    %492 = vmatpush.msra.mxu0 %v141
    %493 = vmatmul.f32.gmra.mxu0 %v468
    %v494 = vpop.f32.mrf.mxu0
    %v495 = vadd.f32 0.0, %v494
    %496 = vmatmul.f32.gmra.mxu0 %v471
    %v497 = vpop.f32.mrf.mxu0
    %v498 = vadd.f32 0.0, %v497
    %499 = vdwg.mxu0
    %500 = vrot.lane.b32.xlu0 %v122, 64
    %v501 = vpop.permute.xlu0 %500
    %502 = vrot.lane.b32.xlu0 %v125, 64
    %v503 = vpop.permute.xlu0 %502
    %v507 = vsel %vm342, %v363, 0
    %v510 = vsel %vm342, %v364, 0
    %512 = vmatpush.msra.mxu0 0.0
    %513 = vmatpush.msra.mxu0 0.0
    %514 = vmatpush.msra.mxu0 0.0
    %515 = vmatpush.msra.mxu0 0.0
    %516 = vmatpush.msra.mxu0 0.0
    %517 = vmatpush.msra.mxu0 0.0
    %518 = vmatpush.msra.mxu0 0.0
    %519 = vmatpush.msra.mxu0 0.0
    %520 = vmatpush.msra.mxu0 0.0
    %521 = vmatpush.msra.mxu0 0.0
    %522 = vmatpush.msra.mxu0 0.0
    %523 = vmatpush.msra.mxu0 0.0
    %524 = vmatpush.msra.mxu0 0.0
    %525 = vmatpush.msra.mxu0 0.0
    %526 = vmatpush.msra.mxu0 %v503
    %527 = vmatpush.msra.mxu0 %v501
    %528 = vmatmul.f32.gmra.mxu0 %v507
    %v529 = vpop.f32.mrf.mxu0
    %v530 = vadd.f32 %v495, %v529
    %531 = vmatmul.f32.gmra.mxu0 %v510
    %v532 = vpop.f32.mrf.mxu0
    %v533 = vadd.f32 %v498, %v532
    %534 = vdwg.mxu0
    %535 = vst.msk [vmem:[#allocation3] sm:$0xff] %vm147, %v530
    %536 = vst.msk [vmem:[#allocation3 + $0x8] sm:$0xff] %vm147, %v533
    %537 = vrot.lane.b32.xlu0 %v122, 120
    %v538 = vpop.permute.xlu0 %537
    %539 = vrot.lane.b32.xlu0 %v125, 120
    %v540 = vpop.permute.xlu0 %539
    %v541 = vsel %vm147, %v538, 0
    %v543 = vsel %vm147, %v540, 0
    %545 = vmatpush.msra.mxu0 0.0
    %546 = vmatpush.msra.mxu0 0.0
    %547 = vmatpush.msra.mxu0 0.0
    %548 = vmatpush.msra.mxu0 0.0
    %549 = vmatpush.msra.mxu0 0.0
    %550 = vmatpush.msra.mxu0 0.0
    %551 = vmatpush.msra.mxu0 0.0
    %552 = vmatpush.msra.mxu0 0.0
    %553 = vmatpush.msra.mxu0 0.0
    %554 = vmatpush.msra.mxu0 0.0
    %555 = vmatpush.msra.mxu0 0.0
    %556 = vmatpush.msra.mxu0 0.0
    %557 = vmatpush.msra.mxu0 0.0
    %558 = vmatpush.msra.mxu0 0.0
    %559 = vmatpush.msra.mxu0 0.0
    %560 = vmatpush.msra.mxu0 %v140
    %561 = vmatmul.f32.gmra.mxu0 %v541
    %v562 = vpop.f32.mrf.mxu0
    %v563 = vadd.f32 0.0, %v562
    %564 = vmatmul.f32.gmra.mxu0 %v543
    %v565 = vpop.f32.mrf.mxu0
    %v566 = vadd.f32 0.0, %v565
    %567 = vdwg.mxu0
    %569 = vset.pattern.permute.xlu0 0
    %570 = vperm.xlu0 %569, %v563
    %v571 = vpop.permute.xlu0 %570
    %574 = vset.pattern.permute.xlu0 0
    %575 = vperm.xlu0 %574, %v566
    %v576 = vpop.permute.xlu0 %575
    %v578 = vsel %vm177, %v571, 0.0
    %v579 = vsel %vm178, %v576, 0.0
    %580 = vrot.lane.b32.xlu0 %v122, 88
    %v581 = vpop.permute.xlu0 %580
    %582 = vrot.lane.b32.xlu0 %v125, 88
    %v583 = vpop.permute.xlu0 %582
    %v584 = vsel %vm147, %v581, 0
    %v586 = vsel %vm147, %v583, 0
    %588 = vmatpush.xpose.msra.mxu0 0.0
    %589 = vmatpush.xpose.msra.mxu0 0.0
    %590 = vmatpush.xpose.msra.mxu0 0.0
    %591 = vmatpush.xpose.msra.mxu0 0.0
    %592 = vmatpush.xpose.msra.mxu0 0.0
    %593 = vmatpush.xpose.msra.mxu0 0.0
    %594 = vmatpush.xpose.msra.mxu0 0.0
    %595 = vmatpush.xpose.msra.mxu0 0.0
    %596 = vmatpush.xpose.msra.mxu0 0.0
    %597 = vmatpush.xpose.msra.mxu0 0.0
    %598 = vmatpush.xpose.msra.mxu0 0.0
    %599 = vmatpush.xpose.msra.mxu0 0.0
    %600 = vmatpush.xpose.msra.mxu0 0.0
    %601 = vmatpush.xpose.msra.mxu0 0.0
    %602 = vmatpush.xpose.msra.mxu0 %v586
    %603 = vmatpush.xpose.msra.mxu0 %v584
    %604 = vmatmul.f32.gmra.mxu0 %v541
    %v605 = vpop.f32.mrf.mxu0
    %v606 = vadd.f32 %v578, %v605
    %607 = vmatmul.f32.gmra.mxu0 %v543
    %v608 = vpop.f32.mrf.mxu0
    %v609 = vadd.f32 %v579, %v608
    %610 = vdwg.mxu0
    %611 = vset.pattern.permute.xlu0 1
    %612 = vperm.xlu0 %611, %v563
    %v613 = vpop.permute.xlu0 %612
    %615 = vset.pattern.permute.xlu0 1
    %616 = vperm.xlu0 %615, %v566
    %v617 = vpop.permute.xlu0 %616
    %v619 = vsel %vm222, %v613, 0.0
    %v620 = vsel %vm223, %v617, 0.0
    %v621 = vadd.f32 %v606, %v619
    %v622 = vadd.f32 %v609, %v620
    %623 = vset.pattern.permute.xlu0 2
    %624 = vperm.xlu0 %623, %v563
    %v625 = vpop.permute.xlu0 %624
    %627 = vset.pattern.permute.xlu0 2
    %628 = vperm.xlu0 %627, %v566
    %v629 = vpop.permute.xlu0 %628
    %v631 = vsel %vm236, %v625, 0.0
    %v632 = vsel %vm237, %v629, 0.0
    %v633 = vadd.f32 %v621, %v631
    %v634 = vadd.f32 %v622, %v632
    %635 = vset.pattern.permute.xlu0 3
    %636 = vperm.xlu0 %635, %v563
    %v637 = vpop.permute.xlu0 %636
    %639 = vset.pattern.permute.xlu0 3
    %640 = vperm.xlu0 %639, %v566
    %v641 = vpop.permute.xlu0 %640
    %v643 = vsel %vm250, %v637, 0.0
    %v644 = vsel %vm251, %v641, 0.0
    %v645 = vadd.f32 %v633, %v643
    %v646 = vadd.f32 %v634, %v644
    %647 = vset.pattern.permute.xlu0 4
    %648 = vperm.xlu0 %647, %v563
    %v649 = vpop.permute.xlu0 %648
    %651 = vset.pattern.permute.xlu0 4
    %652 = vperm.xlu0 %651, %v566
    %v653 = vpop.permute.xlu0 %652
    %v655 = vsel %vm264, %v649, 0.0
    %v656 = vsel %vm265, %v653, 0.0
    %v657 = vadd.f32 %v645, %v655
    %v658 = vadd.f32 %v646, %v656
    %659 = vset.pattern.permute.xlu0 5
    %660 = vperm.xlu0 %659, %v563
    %v661 = vpop.permute.xlu0 %660
    %663 = vset.pattern.permute.xlu0 5
    %664 = vperm.xlu0 %663, %v566
    %v665 = vpop.permute.xlu0 %664
    %v667 = vsel %vm278, %v661, 0.0
    %v668 = vsel %vm279, %v665, 0.0
    %v669 = vadd.f32 %v657, %v667
    %v670 = vadd.f32 %v658, %v668
    %671 = vset.pattern.permute.xlu0 6
    %672 = vperm.xlu0 %671, %v563
    %v673 = vpop.permute.xlu0 %672
    %675 = vset.pattern.permute.xlu0 6
    %676 = vperm.xlu0 %675, %v566
    %v677 = vpop.permute.xlu0 %676
    %v679 = vsel %vm292, %v673, 0.0
    %v680 = vsel %vm293, %v677, 0.0
    %v681 = vadd.f32 %v669, %v679
    %v682 = vadd.f32 %v670, %v680
    %683 = vset.pattern.permute.xlu0 7
    %684 = vperm.xlu0 %683, %v563
    %v685 = vpop.permute.xlu0 %684
    %687 = vset.pattern.permute.xlu0 7
    %688 = vperm.xlu0 %687, %v566
    %v689 = vpop.permute.xlu0 %688
    %v691 = vsel %vm306, %v685, 0.0
    %v692 = vsel %vm307, %v689, 0.0
    %v693 = vadd.f32 %v681, %v691
    %v694 = vadd.f32 %v682, %v692
    %695 = vset.pattern.permute.xlu0 8
    %696 = vperm.xlu0 %695, %v563
    %v697 = vpop.permute.xlu0 %696
    %699 = vset.pattern.permute.xlu0 8
    %700 = vperm.xlu0 %699, %v566
    %v701 = vpop.permute.xlu0 %700
    %v703 = vsel %vm320, %v697, 0.0
    %v704 = vsel %vm321, %v701, 0.0
    %v705 = vadd.f32 %v693, %v703
    %v706 = vadd.f32 %v694, %v704
    %v707 = vsel %vm338, %v705, -10000.0
    %v708 = vsel %vm339, %v706, -10000.0
    %v709 = vsel %vm342, %v707, -inf
    %710 = vmax.xlane.f32.xlu0 %v709
    %v711 = vpop.xlane.xlu0 %710
    %v712 = vsel %vm342, %v708, -inf
    %713 = vmax.xlane.f32.xlu0 %v712
    %v714 = vpop.xlane.xlu0 %713
    %v715 = vsub.f32 %v707, %v711
    %v716 = vsub.f32 %v708, %v714
    %v717 = vmul.f32 %v715, 1.442695
    %v718 = vpow.pop %v717
    %v719 = vmul.f32 %v716, 1.442695
    %v720 = vpow.pop %v719
    %v721 = vsel %vm342, %v718, 0.0
    %722 = vadd.xlane.f32.xlu0 %v721
    %v723 = vpop.xlane.xlu0 %722
    %v724 = vsel %vm342, %v720, 0.0
    %725 = vadd.xlane.f32.xlu0 %v724
    %v726 = vpop.xlane.xlu0 %725
    %v727 = vrcp.pop %v723
    %v728 = vrcp.pop %v726
    %v729 = vmul.f32 %v718, %v727
    %v730 = vmul.f32 %v720, %v728
    %v731 = vsel %vm177, %v729, 0.0
    %v732 = vsel %vm178, %v730, 0.0
    %v733 = vsel %vm342, %v731, 0.0
    %734 = vadd.xlane.f32.xlu0 %v733
    %v735 = vpop.xlane.xlu0 %734
    %v736 = vsel %vm342, %v732, 0.0
    %737 = vadd.xlane.f32.xlu0 %v736
    %v738 = vpop.xlane.xlu0 %737
    %739 = vst.msk [vmem:[#allocation2] sm:$0xff] %vm373, %v735
    %740 = vst.msk [vmem:[#allocation2 + $0x8] sm:$0xff] %vm373, %v738
    %v741 = vsel %vm222, %v729, 0.0
    %v742 = vsel %vm223, %v730, 0.0
    %v743 = vsel %vm342, %v741, 0.0
    %744 = vadd.xlane.f32.xlu0 %v743
    %v745 = vpop.xlane.xlu0 %744
    %v746 = vsel %vm342, %v742, 0.0
    %747 = vadd.xlane.f32.xlu0 %v746
    %v748 = vpop.xlane.xlu0 %747
    %749 = vst.msk [vmem:[#allocation2] sm:$0xff] %vm384, %v745
    %750 = vst.msk [vmem:[#allocation2 + $0x8] sm:$0xff] %vm384, %v748
    %v751 = vsel %vm236, %v729, 0.0
    %v752 = vsel %vm237, %v730, 0.0
    %v753 = vsel %vm342, %v751, 0.0
    %754 = vadd.xlane.f32.xlu0 %v753
    %v755 = vpop.xlane.xlu0 %754
    %v756 = vsel %vm342, %v752, 0.0
    %757 = vadd.xlane.f32.xlu0 %v756
    %v758 = vpop.xlane.xlu0 %757
    %759 = vst.msk [vmem:[#allocation2] sm:$0xff] %vm395, %v755
    %760 = vst.msk [vmem:[#allocation2 + $0x8] sm:$0xff] %vm395, %v758
    %v761 = vsel %vm250, %v729, 0.0
    %v762 = vsel %vm251, %v730, 0.0
    %v763 = vsel %vm342, %v761, 0.0
    %764 = vadd.xlane.f32.xlu0 %v763
    %v765 = vpop.xlane.xlu0 %764
    %v766 = vsel %vm342, %v762, 0.0
    %767 = vadd.xlane.f32.xlu0 %v766
    %v768 = vpop.xlane.xlu0 %767
    %769 = vst.msk [vmem:[#allocation2] sm:$0xff] %vm406, %v765
    %770 = vst.msk [vmem:[#allocation2 + $0x8] sm:$0xff] %vm406, %v768
    %v771 = vsel %vm264, %v729, 0.0
    %v772 = vsel %vm265, %v730, 0.0
    %v773 = vsel %vm342, %v771, 0.0
    %774 = vadd.xlane.f32.xlu0 %v773
    %v775 = vpop.xlane.xlu0 %774
    %v776 = vsel %vm342, %v772, 0.0
    %777 = vadd.xlane.f32.xlu0 %v776
    %v778 = vpop.xlane.xlu0 %777
    %779 = vst.msk [vmem:[#allocation2] sm:$0xff] %vm417, %v775
    %780 = vst.msk [vmem:[#allocation2 + $0x8] sm:$0xff] %vm417, %v778
    %v781 = vsel %vm278, %v729, 0.0
    %v782 = vsel %vm279, %v730, 0.0
    %v783 = vsel %vm342, %v781, 0.0
    %784 = vadd.xlane.f32.xlu0 %v783
    %v785 = vpop.xlane.xlu0 %784
    %v786 = vsel %vm342, %v782, 0.0
    %787 = vadd.xlane.f32.xlu0 %v786
    %v788 = vpop.xlane.xlu0 %787
    %789 = vst.msk [vmem:[#allocation2] sm:$0xff] %vm428, %v785
    %790 = vst.msk [vmem:[#allocation2 + $0x8] sm:$0xff] %vm428, %v788
    %v791 = vsel %vm292, %v729, 0.0
    %v792 = vsel %vm293, %v730, 0.0
    %v793 = vsel %vm342, %v791, 0.0
    %794 = vadd.xlane.f32.xlu0 %v793
    %v795 = vpop.xlane.xlu0 %794
    %v796 = vsel %vm342, %v792, 0.0
    %797 = vadd.xlane.f32.xlu0 %v796
    %v798 = vpop.xlane.xlu0 %797
    %799 = vst.msk [vmem:[#allocation2] sm:$0xff] %vm439, %v795
    %800 = vst.msk [vmem:[#allocation2 + $0x8] sm:$0xff] %vm439, %v798
    %v801 = vsel %vm306, %v729, 0.0
    %v802 = vsel %vm307, %v730, 0.0
    %v803 = vsel %vm342, %v801, 0.0
    %804 = vadd.xlane.f32.xlu0 %v803
    %v805 = vpop.xlane.xlu0 %804
    %v806 = vsel %vm342, %v802, 0.0
    %807 = vadd.xlane.f32.xlu0 %v806
    %v808 = vpop.xlane.xlu0 %807
    %809 = vst.msk [vmem:[#allocation2] sm:$0xff] %vm450, %v805
    %810 = vst.msk [vmem:[#allocation2 + $0x8] sm:$0xff] %vm450, %v808
    %v811 = vsel %vm320, %v729, 0.0
    %v812 = vsel %vm321, %v730, 0.0
    %v813 = vsel %vm342, %v811, 0.0
    %814 = vadd.xlane.f32.xlu0 %v813
    %v815 = vpop.xlane.xlu0 %814
    %v816 = vsel %vm342, %v812, 0.0
    %817 = vadd.xlane.f32.xlu0 %v816
    %v818 = vpop.xlane.xlu0 %817
    %819 = vst.msk [vmem:[#allocation2] sm:$0xff] %vm461, %v815
    %820 = vst.msk [vmem:[#allocation2 + $0x8] sm:$0xff] %vm461, %v818
    %v821 = vld [vmem:[#allocation2] sm:$0xff]
    %v822 = vld [vmem:[#allocation2 + $0x8] sm:$0xff]
    %v824 = vsel %vm466, %v821, 0
    %v827 = vsel %vm466, %v822, 0
    %829 = vmatpush.msra.mxu0 0.0
    %830 = vmatpush.msra.mxu0 0.0
    %831 = vmatpush.msra.mxu0 0.0
    %832 = vmatpush.msra.mxu0 0.0
    %833 = vmatpush.msra.mxu0 0.0
    %834 = vmatpush.msra.mxu0 0.0
    %835 = vmatpush.msra.mxu0 0.0
    %836 = vmatpush.msra.mxu0 0.0
    %837 = vmatpush.msra.mxu0 0.0
    %838 = vmatpush.msra.mxu0 0.0
    %839 = vmatpush.msra.mxu0 0.0
    %840 = vmatpush.msra.mxu0 0.0
    %841 = vmatpush.msra.mxu0 0.0
    %842 = vmatpush.msra.mxu0 0.0
    %843 = vmatpush.msra.mxu0 %v475
    %844 = vmatpush.msra.mxu0 %v141
    %845 = vmatmul.f32.gmra.mxu0 %v824
    %v846 = vpop.f32.mrf.mxu0
    %v847 = vadd.f32 0.0, %v846
    %848 = vmatmul.f32.gmra.mxu0 %v827
    %v849 = vpop.f32.mrf.mxu0
    %v850 = vadd.f32 0.0, %v849
    %851 = vdwg.mxu0
    %852 = vrot.lane.b32.xlu0 %v122, 56
    %v853 = vpop.permute.xlu0 %852
    %854 = vrot.lane.b32.xlu0 %v125, 56
    %v855 = vpop.permute.xlu0 %854
    %v859 = vsel %vm342, %v729, 0
    %v862 = vsel %vm342, %v730, 0
    %864 = vmatpush.msra.mxu0 0.0
    %865 = vmatpush.msra.mxu0 0.0
    %866 = vmatpush.msra.mxu0 0.0
    %867 = vmatpush.msra.mxu0 0.0
    %868 = vmatpush.msra.mxu0 0.0
    %869 = vmatpush.msra.mxu0 0.0
    %870 = vmatpush.msra.mxu0 0.0
    %871 = vmatpush.msra.mxu0 0.0
    %872 = vmatpush.msra.mxu0 0.0
    %873 = vmatpush.msra.mxu0 0.0
    %874 = vmatpush.msra.mxu0 0.0
    %875 = vmatpush.msra.mxu0 0.0
    %876 = vmatpush.msra.mxu0 0.0
    %877 = vmatpush.msra.mxu0 0.0
    %878 = vmatpush.msra.mxu0 %v855
    %879 = vmatpush.msra.mxu0 %v853
    %880 = vmatmul.f32.gmra.mxu0 %v859
    %v881 = vpop.f32.mrf.mxu0
    %v882 = vadd.f32 %v847, %v881
    %883 = vmatmul.f32.gmra.mxu0 %v862
    %v884 = vpop.f32.mrf.mxu0
    %v885 = vadd.f32 %v850, %v884
    %886 = vdwg.mxu0
    %889 = vrot.lane.b32.xlu0 %v882, 8
    %v890 = vpop.permute.xlu0 %889
    %891 = vrot.lane.b32.xlu0 %v885, 8
    %v892 = vpop.permute.xlu0 %891
    %vm895 = vcmask 130112
    %896 = vst.msk [vmem:[#allocation3] sm:$0xff] %vm895, %v890
    %897 = vst.msk [vmem:[#allocation3 + $0x8] sm:$0xff] %vm895, %v892
    %898 = vrot.lane.b32.xlu0 %v122, 112
    %v899 = vpop.permute.xlu0 %898
    %900 = vrot.lane.b32.xlu0 %v125, 112
    %v901 = vpop.permute.xlu0 %900
    %v902 = vsel %vm147, %v899, 0
    %v904 = vsel %vm147, %v901, 0
    %906 = vmatpush.msra.mxu0 0.0
    %907 = vmatpush.msra.mxu0 0.0
    %908 = vmatpush.msra.mxu0 0.0
    %909 = vmatpush.msra.mxu0 0.0
    %910 = vmatpush.msra.mxu0 0.0
    %911 = vmatpush.msra.mxu0 0.0
    %912 = vmatpush.msra.mxu0 0.0
    %913 = vmatpush.msra.mxu0 0.0
    %914 = vmatpush.msra.mxu0 0.0
    %915 = vmatpush.msra.mxu0 0.0
    %916 = vmatpush.msra.mxu0 0.0
    %917 = vmatpush.msra.mxu0 0.0
    %918 = vmatpush.msra.mxu0 0.0
    %919 = vmatpush.msra.mxu0 0.0
    %920 = vmatpush.msra.mxu0 0.0
    %921 = vmatpush.msra.mxu0 %v140
    %922 = vmatmul.f32.gmra.mxu0 %v902
    %v923 = vpop.f32.mrf.mxu0
    %v924 = vadd.f32 0.0, %v923
    %925 = vmatmul.f32.gmra.mxu0 %v904
    %v926 = vpop.f32.mrf.mxu0
    %v927 = vadd.f32 0.0, %v926
    %928 = vdwg.mxu0
    %930 = vset.pattern.permute.xlu0 0
    %931 = vperm.xlu0 %930, %v924
    %v932 = vpop.permute.xlu0 %931
    %935 = vset.pattern.permute.xlu0 0
    %936 = vperm.xlu0 %935, %v927
    %v937 = vpop.permute.xlu0 %936
    %v939 = vsel %vm177, %v932, 0.0
    %v940 = vsel %vm178, %v937, 0.0
    %941 = vrot.lane.b32.xlu0 %v122, 80
    %v942 = vpop.permute.xlu0 %941
    %943 = vrot.lane.b32.xlu0 %v125, 80
    %v944 = vpop.permute.xlu0 %943
    %v945 = vsel %vm147, %v942, 0
    %v947 = vsel %vm147, %v944, 0
    %949 = vmatpush.xpose.msra.mxu0 0.0
    %950 = vmatpush.xpose.msra.mxu0 0.0
    %951 = vmatpush.xpose.msra.mxu0 0.0
    %952 = vmatpush.xpose.msra.mxu0 0.0
    %953 = vmatpush.xpose.msra.mxu0 0.0
    %954 = vmatpush.xpose.msra.mxu0 0.0
    %955 = vmatpush.xpose.msra.mxu0 0.0
    %956 = vmatpush.xpose.msra.mxu0 0.0
    %957 = vmatpush.xpose.msra.mxu0 0.0
    %958 = vmatpush.xpose.msra.mxu0 0.0
    %959 = vmatpush.xpose.msra.mxu0 0.0
    %960 = vmatpush.xpose.msra.mxu0 0.0
    %961 = vmatpush.xpose.msra.mxu0 0.0
    %962 = vmatpush.xpose.msra.mxu0 0.0
    %963 = vmatpush.xpose.msra.mxu0 %v947
    %964 = vmatpush.xpose.msra.mxu0 %v945
    %965 = vmatmul.f32.gmra.mxu0 %v902
    %v966 = vpop.f32.mrf.mxu0
    %v967 = vadd.f32 %v939, %v966
    %968 = vmatmul.f32.gmra.mxu0 %v904
    %v969 = vpop.f32.mrf.mxu0
    %v970 = vadd.f32 %v940, %v969
    %971 = vdwg.mxu0
    %972 = vset.pattern.permute.xlu0 1
    %973 = vperm.xlu0 %972, %v924
    %v974 = vpop.permute.xlu0 %973
    %976 = vset.pattern.permute.xlu0 1
    %977 = vperm.xlu0 %976, %v927
    %v978 = vpop.permute.xlu0 %977
    %v980 = vsel %vm222, %v974, 0.0
    %v981 = vsel %vm223, %v978, 0.0
    %v982 = vadd.f32 %v967, %v980
    %v983 = vadd.f32 %v970, %v981
    %984 = vset.pattern.permute.xlu0 2
    %985 = vperm.xlu0 %984, %v924
    %v986 = vpop.permute.xlu0 %985
    %988 = vset.pattern.permute.xlu0 2
    %989 = vperm.xlu0 %988, %v927
    %v990 = vpop.permute.xlu0 %989
    %v992 = vsel %vm236, %v986, 0.0
    %v993 = vsel %vm237, %v990, 0.0
    %v994 = vadd.f32 %v982, %v992
    %v995 = vadd.f32 %v983, %v993
    %996 = vset.pattern.permute.xlu0 3
    %997 = vperm.xlu0 %996, %v924
    %v998 = vpop.permute.xlu0 %997
    %1000 = vset.pattern.permute.xlu0 3
    %1001 = vperm.xlu0 %1000, %v927
    %v1002 = vpop.permute.xlu0 %1001
    %v1004 = vsel %vm250, %v998, 0.0
    %v1005 = vsel %vm251, %v1002, 0.0
    %v1006 = vadd.f32 %v994, %v1004
    %v1007 = vadd.f32 %v995, %v1005
    %1008 = vset.pattern.permute.xlu0 4
    %1009 = vperm.xlu0 %1008, %v924
    %v1010 = vpop.permute.xlu0 %1009
    %1012 = vset.pattern.permute.xlu0 4
    %1013 = vperm.xlu0 %1012, %v927
    %v1014 = vpop.permute.xlu0 %1013
    %v1016 = vsel %vm264, %v1010, 0.0
    %v1017 = vsel %vm265, %v1014, 0.0
    %v1018 = vadd.f32 %v1006, %v1016
    %v1019 = vadd.f32 %v1007, %v1017
    %1020 = vset.pattern.permute.xlu0 5
    %1021 = vperm.xlu0 %1020, %v924
    %v1022 = vpop.permute.xlu0 %1021
    %1024 = vset.pattern.permute.xlu0 5
    %1025 = vperm.xlu0 %1024, %v927
    %v1026 = vpop.permute.xlu0 %1025
    %v1028 = vsel %vm278, %v1022, 0.0
    %v1029 = vsel %vm279, %v1026, 0.0
    %v1030 = vadd.f32 %v1018, %v1028
    %v1031 = vadd.f32 %v1019, %v1029
    %1032 = vset.pattern.permute.xlu0 6
    %1033 = vperm.xlu0 %1032, %v924
    %v1034 = vpop.permute.xlu0 %1033
    %1036 = vset.pattern.permute.xlu0 6
    %1037 = vperm.xlu0 %1036, %v927
    %v1038 = vpop.permute.xlu0 %1037
    %v1040 = vsel %vm292, %v1034, 0.0
    %v1041 = vsel %vm293, %v1038, 0.0
    %v1042 = vadd.f32 %v1030, %v1040
    %v1043 = vadd.f32 %v1031, %v1041
    %1044 = vset.pattern.permute.xlu0 7
    %1045 = vperm.xlu0 %1044, %v924
    %v1046 = vpop.permute.xlu0 %1045
    %1048 = vset.pattern.permute.xlu0 7
    %1049 = vperm.xlu0 %1048, %v927
    %v1050 = vpop.permute.xlu0 %1049
    %v1052 = vsel %vm306, %v1046, 0.0
    %v1053 = vsel %vm307, %v1050, 0.0
    %v1054 = vadd.f32 %v1042, %v1052
    %v1055 = vadd.f32 %v1043, %v1053
    %1056 = vset.pattern.permute.xlu0 8
    %1057 = vperm.xlu0 %1056, %v924
    %v1058 = vpop.permute.xlu0 %1057
    %1060 = vset.pattern.permute.xlu0 8
    %1061 = vperm.xlu0 %1060, %v927
    %v1062 = vpop.permute.xlu0 %1061
    %v1064 = vsel %vm320, %v1058, 0.0
    %v1065 = vsel %vm321, %v1062, 0.0
    %v1066 = vadd.f32 %v1054, %v1064
    %v1067 = vadd.f32 %v1055, %v1065
    %v1068 = vsel %vm338, %v1066, -10000.0
    %v1069 = vsel %vm339, %v1067, -10000.0
    %v1070 = vsel %vm342, %v1068, -inf
    %1071 = vmax.xlane.f32.xlu0 %v1070
    %v1072 = vpop.xlane.xlu0 %1071
    %v1073 = vsel %vm342, %v1069, -inf
    %1074 = vmax.xlane.f32.xlu0 %v1073
    %v1075 = vpop.xlane.xlu0 %1074
    %v1076 = vsub.f32 %v1068, %v1072
    %v1077 = vsub.f32 %v1069, %v1075
    %v1078 = vmul.f32 %v1076, 1.442695
    %v1079 = vpow.pop %v1078
    %v1080 = vmul.f32 %v1077, 1.442695
    %v1081 = vpow.pop %v1080
    %v1082 = vsel %vm342, %v1079, 0.0
    %1083 = vadd.xlane.f32.xlu0 %v1082
    %v1084 = vpop.xlane.xlu0 %1083
    %v1085 = vsel %vm342, %v1081, 0.0
    %1086 = vadd.xlane.f32.xlu0 %v1085
    %v1087 = vpop.xlane.xlu0 %1086
    %v1088 = vrcp.pop %v1084
    %v1089 = vrcp.pop %v1087
    %v1090 = vmul.f32 %v1079, %v1088
    %v1091 = vmul.f32 %v1081, %v1089
    %v1092 = vsel %vm177, %v1090, 0.0
    %v1093 = vsel %vm178, %v1091, 0.0
    %v1094 = vsel %vm342, %v1092, 0.0
    %1095 = vadd.xlane.f32.xlu0 %v1094
    %v1096 = vpop.xlane.xlu0 %1095
    %v1097 = vsel %vm342, %v1093, 0.0
    %1098 = vadd.xlane.f32.xlu0 %v1097
    %v1099 = vpop.xlane.xlu0 %1098
    %1100 = vst.msk [vmem:[#allocation2] sm:$0xff] %vm373, %v1096
    %1101 = vst.msk [vmem:[#allocation2 + $0x8] sm:$0xff] %vm373, %v1099
    %v1102 = vsel %vm222, %v1090, 0.0
    %v1103 = vsel %vm223, %v1091, 0.0
    %v1104 = vsel %vm342, %v1102, 0.0
    %1105 = vadd.xlane.f32.xlu0 %v1104
    %v1106 = vpop.xlane.xlu0 %1105
    %v1107 = vsel %vm342, %v1103, 0.0
    %1108 = vadd.xlane.f32.xlu0 %v1107
    %v1109 = vpop.xlane.xlu0 %1108
    %1110 = vst.msk [vmem:[#allocation2] sm:$0xff] %vm384, %v1106
    %1111 = vst.msk [vmem:[#allocation2 + $0x8] sm:$0xff] %vm384, %v1109
    %v1112 = vsel %vm236, %v1090, 0.0
    %v1113 = vsel %vm237, %v1091, 0.0
    %v1114 = vsel %vm342, %v1112, 0.0
    %1115 = vadd.xlane.f32.xlu0 %v1114
    %v1116 = vpop.xlane.xlu0 %1115
    %v1117 = vsel %vm342, %v1113, 0.0
    %1118 = vadd.xlane.f32.xlu0 %v1117
    %v1119 = vpop.xlane.xlu0 %1118
    %1120 = vst.msk [vmem:[#allocation2] sm:$0xff] %vm395, %v1116
    %1121 = vst.msk [vmem:[#allocation2 + $0x8] sm:$0xff] %vm395, %v1119
    %v1122 = vsel %vm250, %v1090, 0.0
    %v1123 = vsel %vm251, %v1091, 0.0
    %v1124 = vsel %vm342, %v1122, 0.0
    %1125 = vadd.xlane.f32.xlu0 %v1124
    %v1126 = vpop.xlane.xlu0 %1125
    %v1127 = vsel %vm342, %v1123, 0.0
    %1128 = vadd.xlane.f32.xlu0 %v1127
    %v1129 = vpop.xlane.xlu0 %1128
    %1130 = vst.msk [vmem:[#allocation2] sm:$0xff] %vm406, %v1126
    %1131 = vst.msk [vmem:[#allocation2 + $0x8] sm:$0xff] %vm406, %v1129
    %v1132 = vsel %vm264, %v1090, 0.0
    %v1133 = vsel %vm265, %v1091, 0.0
    %v1134 = vsel %vm342, %v1132, 0.0
    %1135 = vadd.xlane.f32.xlu0 %v1134
    %v1136 = vpop.xlane.xlu0 %1135
    %v1137 = vsel %vm342, %v1133, 0.0
    %1138 = vadd.xlane.f32.xlu0 %v1137
    %v1139 = vpop.xlane.xlu0 %1138
    %1140 = vst.msk [vmem:[#allocation2] sm:$0xff] %vm417, %v1136
    %1141 = vst.msk [vmem:[#allocation2 + $0x8] sm:$0xff] %vm417, %v1139
    %v1142 = vsel %vm278, %v1090, 0.0
    %v1143 = vsel %vm279, %v1091, 0.0
    %v1144 = vsel %vm342, %v1142, 0.0
    %1145 = vadd.xlane.f32.xlu0 %v1144
    %v1146 = vpop.xlane.xlu0 %1145
    %v1147 = vsel %vm342, %v1143, 0.0
    %1148 = vadd.xlane.f32.xlu0 %v1147
    %v1149 = vpop.xlane.xlu0 %1148
    %1150 = vst.msk [vmem:[#allocation2] sm:$0xff] %vm428, %v1146
    %1151 = vst.msk [vmem:[#allocation2 + $0x8] sm:$0xff] %vm428, %v1149
    %v1152 = vsel %vm292, %v1090, 0.0
    %v1153 = vsel %vm293, %v1091, 0.0
    %v1154 = vsel %vm342, %v1152, 0.0
    %1155 = vadd.xlane.f32.xlu0 %v1154
    %v1156 = vpop.xlane.xlu0 %1155
    %v1157 = vsel %vm342, %v1153, 0.0
    %1158 = vadd.xlane.f32.xlu0 %v1157
    %v1159 = vpop.xlane.xlu0 %1158
    %1160 = vst.msk [vmem:[#allocation2] sm:$0xff] %vm439, %v1156
    %1161 = vst.msk [vmem:[#allocation2 + $0x8] sm:$0xff] %vm439, %v1159
    %v1162 = vsel %vm306, %v1090, 0.0
    %v1163 = vsel %vm307, %v1091, 0.0
    %v1164 = vsel %vm342, %v1162, 0.0
    %1165 = vadd.xlane.f32.xlu0 %v1164
    %v1166 = vpop.xlane.xlu0 %1165
    %v1167 = vsel %vm342, %v1163, 0.0
    %1168 = vadd.xlane.f32.xlu0 %v1167
    %v1169 = vpop.xlane.xlu0 %1168
    %1170 = vst.msk [vmem:[#allocation2] sm:$0xff] %vm450, %v1166
    %1171 = vst.msk [vmem:[#allocation2 + $0x8] sm:$0xff] %vm450, %v1169
    %v1172 = vsel %vm320, %v1090, 0.0
    %v1173 = vsel %vm321, %v1091, 0.0
    %v1174 = vsel %vm342, %v1172, 0.0
    %1175 = vadd.xlane.f32.xlu0 %v1174
    %v1176 = vpop.xlane.xlu0 %1175
    %v1177 = vsel %vm342, %v1173, 0.0
    %1178 = vadd.xlane.f32.xlu0 %v1177
    %v1179 = vpop.xlane.xlu0 %1178
    %1180 = vst.msk [vmem:[#allocation2] sm:$0xff] %vm461, %v1176
    %1181 = vst.msk [vmem:[#allocation2 + $0x8] sm:$0xff] %vm461, %v1179
    %v1182 = vld [vmem:[#allocation2] sm:$0xff]
    %v1183 = vld [vmem:[#allocation2 + $0x8] sm:$0xff]
    %v1185 = vsel %vm466, %v1182, 0
    %v1188 = vsel %vm466, %v1183, 0
    %1190 = vmatpush.msra.mxu0 0.0
    %1191 = vmatpush.msra.mxu0 0.0
    %1192 = vmatpush.msra.mxu0 0.0
    %1193 = vmatpush.msra.mxu0 0.0
    %1194 = vmatpush.msra.mxu0 0.0
    %1195 = vmatpush.msra.mxu0 0.0
    %1196 = vmatpush.msra.mxu0 0.0
    %1197 = vmatpush.msra.mxu0 0.0
    %1198 = vmatpush.msra.mxu0 0.0
    %1199 = vmatpush.msra.mxu0 0.0
    %1200 = vmatpush.msra.mxu0 0.0
    %1201 = vmatpush.msra.mxu0 0.0
    %1202 = vmatpush.msra.mxu0 0.0
    %1203 = vmatpush.msra.mxu0 0.0
    %1204 = vmatpush.msra.mxu0 %v475
    %1205 = vmatpush.msra.mxu0 %v141
    %1206 = vmatmul.f32.gmra.mxu0 %v1185
    %v1207 = vpop.f32.mrf.mxu0
    %v1208 = vadd.f32 0.0, %v1207
    %1209 = vmatmul.f32.gmra.mxu0 %v1188
    %v1210 = vpop.f32.mrf.mxu0
    %v1211 = vadd.f32 0.0, %v1210
    %1212 = vdwg.mxu0
    %1213 = vrot.lane.b32.xlu0 %v122, 48
    %v1214 = vpop.permute.xlu0 %1213
    %1215 = vrot.lane.b32.xlu0 %v125, 48
    %v1216 = vpop.permute.xlu0 %1215
    %v1220 = vsel %vm342, %v1090, 0
    %v1223 = vsel %vm342, %v1091, 0
    %1225 = vmatpush.msra.mxu0 0.0
    %1226 = vmatpush.msra.mxu0 0.0
    %1227 = vmatpush.msra.mxu0 0.0
    %1228 = vmatpush.msra.mxu0 0.0
    %1229 = vmatpush.msra.mxu0 0.0
    %1230 = vmatpush.msra.mxu0 0.0
    %1231 = vmatpush.msra.mxu0 0.0
    %1232 = vmatpush.msra.mxu0 0.0
    %1233 = vmatpush.msra.mxu0 0.0
    %1234 = vmatpush.msra.mxu0 0.0
    %1235 = vmatpush.msra.mxu0 0.0
    %1236 = vmatpush.msra.mxu0 0.0
    %1237 = vmatpush.msra.mxu0 0.0
    %1238 = vmatpush.msra.mxu0 0.0
    %1239 = vmatpush.msra.mxu0 %v1216
    %1240 = vmatpush.msra.mxu0 %v1214
    %1241 = vmatmul.f32.gmra.mxu0 %v1220
    %v1242 = vpop.f32.mrf.mxu0
    %v1243 = vadd.f32 %v1208, %v1242
    %1244 = vmatmul.f32.gmra.mxu0 %v1223
    %v1245 = vpop.f32.mrf.mxu0
    %v1246 = vadd.f32 %v1211, %v1245
    %1247 = vdwg.mxu0
    %1250 = vrot.lane.b32.xlu0 %v1243, 16
    %v1251 = vpop.permute.xlu0 %1250
    %1252 = vrot.lane.b32.xlu0 %v1246, 16
    %v1253 = vpop.permute.xlu0 %1252
    %vm1256 = vcmask 195712
    %1257 = vst.msk [vmem:[#allocation3] sm:$0xff] %vm1256, %v1251
    %1258 = vst.msk [vmem:[#allocation3 + $0x8] sm:$0xff] %vm1256, %v1253
    %1259 = vrot.lane.b32.xlu0 %v122, 104
    %v1260 = vpop.permute.xlu0 %1259
    %1261 = vrot.lane.b32.xlu0 %v125, 104
    %v1262 = vpop.permute.xlu0 %1261
    %v1263 = vsel %vm147, %v1260, 0
    %v1265 = vsel %vm147, %v1262, 0
    %1267 = vmatpush.msra.mxu0 0.0
    %1268 = vmatpush.msra.mxu0 0.0
    %1269 = vmatpush.msra.mxu0 0.0
    %1270 = vmatpush.msra.mxu0 0.0
    %1271 = vmatpush.msra.mxu0 0.0
    %1272 = vmatpush.msra.mxu0 0.0
    %1273 = vmatpush.msra.mxu0 0.0
    %1274 = vmatpush.msra.mxu0 0.0
    %1275 = vmatpush.msra.mxu0 0.0
    %1276 = vmatpush.msra.mxu0 0.0
    %1277 = vmatpush.msra.mxu0 0.0
    %1278 = vmatpush.msra.mxu0 0.0
    %1279 = vmatpush.msra.mxu0 0.0
    %1280 = vmatpush.msra.mxu0 0.0
    %1281 = vmatpush.msra.mxu0 0.0
    %1282 = vmatpush.msra.mxu0 %v140
    %1283 = vmatmul.f32.gmra.mxu0 %v1263
    %v1284 = vpop.f32.mrf.mxu0
    %v1285 = vadd.f32 0.0, %v1284
    %1286 = vmatmul.f32.gmra.mxu0 %v1265
    %v1287 = vpop.f32.mrf.mxu0
    %v1288 = vadd.f32 0.0, %v1287
    %1289 = vdwg.mxu0
    %1291 = vset.pattern.permute.xlu0 0
    %1292 = vperm.xlu0 %1291, %v1285
    %v1293 = vpop.permute.xlu0 %1292
    %1296 = vset.pattern.permute.xlu0 0
    %1297 = vperm.xlu0 %1296, %v1288
    %v1298 = vpop.permute.xlu0 %1297
    %v1300 = vsel %vm177, %v1293, 0.0
    %v1301 = vsel %vm178, %v1298, 0.0
    %1302 = vrot.lane.b32.xlu0 %v122, 72
    %v1303 = vpop.permute.xlu0 %1302
    %1304 = vrot.lane.b32.xlu0 %v125, 72
    %v1305 = vpop.permute.xlu0 %1304
    %v1306 = vsel %vm147, %v1303, 0
    %v1308 = vsel %vm147, %v1305, 0
    %1310 = vmatpush.xpose.msra.mxu0 0.0
    %1311 = vmatpush.xpose.msra.mxu0 0.0
    %1312 = vmatpush.xpose.msra.mxu0 0.0
    %1313 = vmatpush.xpose.msra.mxu0 0.0
    %1314 = vmatpush.xpose.msra.mxu0 0.0
    %1315 = vmatpush.xpose.msra.mxu0 0.0
    %1316 = vmatpush.xpose.msra.mxu0 0.0
    %1317 = vmatpush.xpose.msra.mxu0 0.0
    %1318 = vmatpush.xpose.msra.mxu0 0.0
    %1319 = vmatpush.xpose.msra.mxu0 0.0
    %1320 = vmatpush.xpose.msra.mxu0 0.0
    %1321 = vmatpush.xpose.msra.mxu0 0.0
    %1322 = vmatpush.xpose.msra.mxu0 0.0
    %1323 = vmatpush.xpose.msra.mxu0 0.0
    %1324 = vmatpush.xpose.msra.mxu0 %v1308
    %1325 = vmatpush.xpose.msra.mxu0 %v1306
    %1326 = vmatmul.f32.gmra.mxu0 %v1263
    %v1327 = vpop.f32.mrf.mxu0
    %v1328 = vadd.f32 %v1300, %v1327
    %1329 = vmatmul.f32.gmra.mxu0 %v1265
    %v1330 = vpop.f32.mrf.mxu0
    %v1331 = vadd.f32 %v1301, %v1330
    %1332 = vdwg.mxu0
    %1333 = vset.pattern.permute.xlu0 1
    %1334 = vperm.xlu0 %1333, %v1285
    %v1335 = vpop.permute.xlu0 %1334
    %1337 = vset.pattern.permute.xlu0 1
    %1338 = vperm.xlu0 %1337, %v1288
    %v1339 = vpop.permute.xlu0 %1338
    %v1341 = vsel %vm222, %v1335, 0.0
    %v1342 = vsel %vm223, %v1339, 0.0
    %v1343 = vadd.f32 %v1328, %v1341
    %v1344 = vadd.f32 %v1331, %v1342
    %1345 = vset.pattern.permute.xlu0 2
    %1346 = vperm.xlu0 %1345, %v1285
    %v1347 = vpop.permute.xlu0 %1346
    %1349 = vset.pattern.permute.xlu0 2
    %1350 = vperm.xlu0 %1349, %v1288
    %v1351 = vpop.permute.xlu0 %1350
    %v1353 = vsel %vm236, %v1347, 0.0
    %v1354 = vsel %vm237, %v1351, 0.0
    %v1355 = vadd.f32 %v1343, %v1353
    %v1356 = vadd.f32 %v1344, %v1354
    %1357 = vset.pattern.permute.xlu0 3
    %1358 = vperm.xlu0 %1357, %v1285
    %v1359 = vpop.permute.xlu0 %1358
    %1361 = vset.pattern.permute.xlu0 3
    %1362 = vperm.xlu0 %1361, %v1288
    %v1363 = vpop.permute.xlu0 %1362
    %v1365 = vsel %vm250, %v1359, 0.0
    %v1366 = vsel %vm251, %v1363, 0.0
    %v1367 = vadd.f32 %v1355, %v1365
    %v1368 = vadd.f32 %v1356, %v1366
    %1369 = vset.pattern.permute.xlu0 4
    %1370 = vperm.xlu0 %1369, %v1285
    %v1371 = vpop.permute.xlu0 %1370
    %1373 = vset.pattern.permute.xlu0 4
    %1374 = vperm.xlu0 %1373, %v1288
    %v1375 = vpop.permute.xlu0 %1374
    %v1377 = vsel %vm264, %v1371, 0.0
    %v1378 = vsel %vm265, %v1375, 0.0
    %v1379 = vadd.f32 %v1367, %v1377
    %v1380 = vadd.f32 %v1368, %v1378
    %1381 = vset.pattern.permute.xlu0 5
    %1382 = vperm.xlu0 %1381, %v1285
    %v1383 = vpop.permute.xlu0 %1382
    %1385 = vset.pattern.permute.xlu0 5
    %1386 = vperm.xlu0 %1385, %v1288
    %v1387 = vpop.permute.xlu0 %1386
    %v1389 = vsel %vm278, %v1383, 0.0
    %v1390 = vsel %vm279, %v1387, 0.0
    %v1391 = vadd.f32 %v1379, %v1389
    %v1392 = vadd.f32 %v1380, %v1390
    %1393 = vset.pattern.permute.xlu0 6
    %1394 = vperm.xlu0 %1393, %v1285
    %v1395 = vpop.permute.xlu0 %1394
    %1397 = vset.pattern.permute.xlu0 6
    %1398 = vperm.xlu0 %1397, %v1288
    %v1399 = vpop.permute.xlu0 %1398
    %v1401 = vsel %vm292, %v1395, 0.0
    %v1402 = vsel %vm293, %v1399, 0.0
    %v1403 = vadd.f32 %v1391, %v1401
    %v1404 = vadd.f32 %v1392, %v1402
    %1405 = vset.pattern.permute.xlu0 7
    %1406 = vperm.xlu0 %1405, %v1285
    %v1407 = vpop.permute.xlu0 %1406
    %1409 = vset.pattern.permute.xlu0 7
    %1410 = vperm.xlu0 %1409, %v1288
    %v1411 = vpop.permute.xlu0 %1410
    %v1413 = vsel %vm306, %v1407, 0.0
    %v1414 = vsel %vm307, %v1411, 0.0
    %v1415 = vadd.f32 %v1403, %v1413
    %v1416 = vadd.f32 %v1404, %v1414
    %1417 = vset.pattern.permute.xlu0 8
    %1418 = vperm.xlu0 %1417, %v1285
    %v1419 = vpop.permute.xlu0 %1418
    %1421 = vset.pattern.permute.xlu0 8
    %1422 = vperm.xlu0 %1421, %v1288
    %v1423 = vpop.permute.xlu0 %1422
    %v1425 = vsel %vm320, %v1419, 0.0
    %v1426 = vsel %vm321, %v1423, 0.0
    %v1427 = vadd.f32 %v1415, %v1425
    %v1428 = vadd.f32 %v1416, %v1426
    %v1429 = vsel %vm338, %v1427, -10000.0
    %v1430 = vsel %vm339, %v1428, -10000.0
    %v1431 = vsel %vm342, %v1429, -inf
    %1432 = vmax.xlane.f32.xlu0 %v1431
    %v1433 = vpop.xlane.xlu0 %1432
    %v1434 = vsel %vm342, %v1430, -inf
    %1435 = vmax.xlane.f32.xlu0 %v1434
    %v1436 = vpop.xlane.xlu0 %1435
    %v1437 = vsub.f32 %v1429, %v1433
    %v1438 = vsub.f32 %v1430, %v1436
    %v1439 = vmul.f32 %v1437, 1.442695
    %v1440 = vpow.pop %v1439
    %v1441 = vmul.f32 %v1438, 1.442695
    %v1442 = vpow.pop %v1441
    %v1443 = vsel %vm342, %v1440, 0.0
    %1444 = vadd.xlane.f32.xlu0 %v1443
    %v1445 = vpop.xlane.xlu0 %1444
    %v1446 = vsel %vm342, %v1442, 0.0
    %1447 = vadd.xlane.f32.xlu0 %v1446
    %v1448 = vpop.xlane.xlu0 %1447
    %v1449 = vrcp.pop %v1445
    %v1450 = vrcp.pop %v1448
    %v1451 = vmul.f32 %v1440, %v1449
    %v1452 = vmul.f32 %v1442, %v1450
    %v1453 = vsel %vm177, %v1451, 0.0
    %v1454 = vsel %vm178, %v1452, 0.0
    %v1455 = vsel %vm342, %v1453, 0.0
    %1456 = vadd.xlane.f32.xlu0 %v1455
    %v1457 = vpop.xlane.xlu0 %1456
    %v1458 = vsel %vm342, %v1454, 0.0
    %1459 = vadd.xlane.f32.xlu0 %v1458
    %v1460 = vpop.xlane.xlu0 %1459
    %1461 = vst.msk [vmem:[#allocation2] sm:$0xff] %vm373, %v1457
    %1462 = vst.msk [vmem:[#allocation2 + $0x8] sm:$0xff] %vm373, %v1460
    %v1463 = vsel %vm222, %v1451, 0.0
    %v1464 = vsel %vm223, %v1452, 0.0
    %v1465 = vsel %vm342, %v1463, 0.0
    %1466 = vadd.xlane.f32.xlu0 %v1465
    %v1467 = vpop.xlane.xlu0 %1466
    %v1468 = vsel %vm342, %v1464, 0.0
    %1469 = vadd.xlane.f32.xlu0 %v1468
    %v1470 = vpop.xlane.xlu0 %1469
    %1471 = vst.msk [vmem:[#allocation2] sm:$0xff] %vm384, %v1467
    %1472 = vst.msk [vmem:[#allocation2 + $0x8] sm:$0xff] %vm384, %v1470
    %v1473 = vsel %vm236, %v1451, 0.0
    %v1474 = vsel %vm237, %v1452, 0.0
    %v1475 = vsel %vm342, %v1473, 0.0
    %1476 = vadd.xlane.f32.xlu0 %v1475
    %v1477 = vpop.xlane.xlu0 %1476
    %v1478 = vsel %vm342, %v1474, 0.0
    %1479 = vadd.xlane.f32.xlu0 %v1478
    %v1480 = vpop.xlane.xlu0 %1479
    %1481 = vst.msk [vmem:[#allocation2] sm:$0xff] %vm395, %v1477
    %1482 = vst.msk [vmem:[#allocation2 + $0x8] sm:$0xff] %vm395, %v1480
    %v1483 = vsel %vm250, %v1451, 0.0
    %v1484 = vsel %vm251, %v1452, 0.0
    %v1485 = vsel %vm342, %v1483, 0.0
    %1486 = vadd.xlane.f32.xlu0 %v1485
    %v1487 = vpop.xlane.xlu0 %1486
    %v1488 = vsel %vm342, %v1484, 0.0
    %1489 = vadd.xlane.f32.xlu0 %v1488
    %v1490 = vpop.xlane.xlu0 %1489
    %1491 = vst.msk [vmem:[#allocation2] sm:$0xff] %vm406, %v1487
    %1492 = vst.msk [vmem:[#allocation2 + $0x8] sm:$0xff] %vm406, %v1490
    %v1493 = vsel %vm264, %v1451, 0.0
    %v1494 = vsel %vm265, %v1452, 0.0
    %v1495 = vsel %vm342, %v1493, 0.0
    %1496 = vadd.xlane.f32.xlu0 %v1495
    %v1497 = vpop.xlane.xlu0 %1496
    %v1498 = vsel %vm342, %v1494, 0.0
    %1499 = vadd.xlane.f32.xlu0 %v1498
    %v1500 = vpop.xlane.xlu0 %1499
    %1501 = vst.msk [vmem:[#allocation2] sm:$0xff] %vm417, %v1497
    %1502 = vst.msk [vmem:[#allocation2 + $0x8] sm:$0xff] %vm417, %v1500
    %v1503 = vsel %vm278, %v1451, 0.0
    %v1504 = vsel %vm279, %v1452, 0.0
    %v1505 = vsel %vm342, %v1503, 0.0
    %1506 = vadd.xlane.f32.xlu0 %v1505
    %v1507 = vpop.xlane.xlu0 %1506
    %v1508 = vsel %vm342, %v1504, 0.0
    %1509 = vadd.xlane.f32.xlu0 %v1508
    %v1510 = vpop.xlane.xlu0 %1509
    %1511 = vst.msk [vmem:[#allocation2] sm:$0xff] %vm428, %v1507
    %1512 = vst.msk [vmem:[#allocation2 + $0x8] sm:$0xff] %vm428, %v1510
    %v1513 = vsel %vm292, %v1451, 0.0
    %v1514 = vsel %vm293, %v1452, 0.0
    %v1515 = vsel %vm342, %v1513, 0.0
    %1516 = vadd.xlane.f32.xlu0 %v1515
    %v1517 = vpop.xlane.xlu0 %1516
    %v1518 = vsel %vm342, %v1514, 0.0
    %1519 = vadd.xlane.f32.xlu0 %v1518
    %v1520 = vpop.xlane.xlu0 %1519
    %1521 = vst.msk [vmem:[#allocation2] sm:$0xff] %vm439, %v1517
    %1522 = vst.msk [vmem:[#allocation2 + $0x8] sm:$0xff] %vm439, %v1520
    %v1523 = vsel %vm306, %v1451, 0.0
    %v1524 = vsel %vm307, %v1452, 0.0
    %v1525 = vsel %vm342, %v1523, 0.0
    %1526 = vadd.xlane.f32.xlu0 %v1525
    %v1527 = vpop.xlane.xlu0 %1526
    %v1528 = vsel %vm342, %v1524, 0.0
    %1529 = vadd.xlane.f32.xlu0 %v1528
    %v1530 = vpop.xlane.xlu0 %1529
    %1531 = vst.msk [vmem:[#allocation2] sm:$0xff] %vm450, %v1527
    %1532 = vst.msk [vmem:[#allocation2 + $0x8] sm:$0xff] %vm450, %v1530
    %v1533 = vsel %vm320, %v1451, 0.0
    %v1534 = vsel %vm321, %v1452, 0.0
    %v1535 = vsel %vm342, %v1533, 0.0
    %1536 = vadd.xlane.f32.xlu0 %v1535
    %v1537 = vpop.xlane.xlu0 %1536
    %v1538 = vsel %vm342, %v1534, 0.0
    %1539 = vadd.xlane.f32.xlu0 %v1538
    %v1540 = vpop.xlane.xlu0 %1539
    %1541 = vst.msk [vmem:[#allocation2] sm:$0xff] %vm461, %v1537
    %1542 = vst.msk [vmem:[#allocation2 + $0x8] sm:$0xff] %vm461, %v1540
    %v1543 = vld [vmem:[#allocation2] sm:$0xff]
    %v1544 = vld [vmem:[#allocation2 + $0x8] sm:$0xff]
    %v1546 = vsel %vm466, %v1543, 0
    %v1549 = vsel %vm466, %v1544, 0
    %1551 = vmatpush.msra.mxu0 0.0
    %1552 = vmatpush.msra.mxu0 0.0
    %1553 = vmatpush.msra.mxu0 0.0
    %1554 = vmatpush.msra.mxu0 0.0
    %1555 = vmatpush.msra.mxu0 0.0
    %1556 = vmatpush.msra.mxu0 0.0
    %1557 = vmatpush.msra.mxu0 0.0
    %1558 = vmatpush.msra.mxu0 0.0
    %1559 = vmatpush.msra.mxu0 0.0
    %1560 = vmatpush.msra.mxu0 0.0
    %1561 = vmatpush.msra.mxu0 0.0
    %1562 = vmatpush.msra.mxu0 0.0
    %1563 = vmatpush.msra.mxu0 0.0
    %1564 = vmatpush.msra.mxu0 0.0
    %1565 = vmatpush.msra.mxu0 %v475
    %1566 = vmatpush.msra.mxu0 %v141
    %1567 = vmatmul.f32.gmra.mxu0 %v1546
    %v1568 = vpop.f32.mrf.mxu0
    %v1569 = vadd.f32 0.0, %v1568
    %1570 = vmatmul.f32.gmra.mxu0 %v1549
    %v1571 = vpop.f32.mrf.mxu0
    %v1572 = vadd.f32 0.0, %v1571
    %1573 = vdwg.mxu0
    %1574 = vrot.lane.b32.xlu0 %v122, 40
    %v1575 = vpop.permute.xlu0 %1574
    %1576 = vrot.lane.b32.xlu0 %v125, 40
    %v1577 = vpop.permute.xlu0 %1576
    %v1581 = vsel %vm342, %v1451, 0
    %v1584 = vsel %vm342, %v1452, 0
    %1586 = vmatpush.msra.mxu0 0.0
    %1587 = vmatpush.msra.mxu0 0.0
    %1588 = vmatpush.msra.mxu0 0.0
    %1589 = vmatpush.msra.mxu0 0.0
    %1590 = vmatpush.msra.mxu0 0.0
    %1591 = vmatpush.msra.mxu0 0.0
    %1592 = vmatpush.msra.mxu0 0.0
    %1593 = vmatpush.msra.mxu0 0.0
    %1594 = vmatpush.msra.mxu0 0.0
    %1595 = vmatpush.msra.mxu0 0.0
    %1596 = vmatpush.msra.mxu0 0.0
    %1597 = vmatpush.msra.mxu0 0.0
    %1598 = vmatpush.msra.mxu0 0.0
    %1599 = vmatpush.msra.mxu0 0.0
    %1600 = vmatpush.msra.mxu0 %v1577
    %1601 = vmatpush.msra.mxu0 %v1575
    %1602 = vmatmul.f32.gmra.mxu0 %v1581
    %v1603 = vpop.f32.mrf.mxu0
    %v1604 = vadd.f32 %v1569, %v1603
    %1605 = vmatmul.f32.gmra.mxu0 %v1584
    %v1606 = vpop.f32.mrf.mxu0
    %v1607 = vadd.f32 %v1572, %v1606
    %1608 = vdwg.mxu0
    %1611 = vrot.lane.b32.xlu0 %v1604, 24
    %v1612 = vpop.permute.xlu0 %1611
    %1613 = vrot.lane.b32.xlu0 %v1607, 24
    %v1614 = vpop.permute.xlu0 %1613
    %vm1617 = vcmask 261312
    %1618 = vst.msk [vmem:[#allocation3] sm:$0xff] %vm1617, %v1612
    %1619 = vst.msk [vmem:[#allocation3 + $0x8] sm:$0xff] %vm1617, %v1614
    %s1620 = scalar_lea.vmem %s7, 4
    %v1621 = vld [vmem:[%s1620] sm:$0x3]
    %v1622 = vld [vmem:[%s1620 + $0x2] sm:$0x3]
    %vm1623 = vnez %v1621
    %vm1624 = vnez %v1622
    %v1626 = vsel %vm147, %v128, 0
    %v1629 = vsel %vm147, %v131, 0
    %1631 = vmatpush.msra.mxu0 0.0
    %1632 = vmatpush.msra.mxu0 0.0
    %1633 = vmatpush.msra.mxu0 0.0
    %1634 = vmatpush.msra.mxu0 0.0
    %1635 = vmatpush.msra.mxu0 0.0
    %1636 = vmatpush.msra.mxu0 0.0
    %1637 = vmatpush.msra.mxu0 0.0
    %1638 = vmatpush.msra.mxu0 0.0
    %1639 = vmatpush.msra.mxu0 0.0
    %1640 = vmatpush.msra.mxu0 0.0
    %1641 = vmatpush.msra.mxu0 0.0
    %1642 = vmatpush.msra.mxu0 0.0
    %1643 = vmatpush.msra.mxu0 0.0
    %1644 = vmatpush.msra.mxu0 0.0
    %1645 = vmatpush.msra.mxu0 0.0
    %1646 = vmatpush.msra.mxu0 %v140
    %1647 = vmatmul.f32.gmra.mxu0 %v1626
    %v1648 = vpop.f32.mrf.mxu0
    %v1649 = vadd.f32 0.0, %v1648
    %1650 = vmatmul.f32.gmra.mxu0 %v1629
    %v1651 = vpop.f32.mrf.mxu0
    %v1652 = vadd.f32 0.0, %v1651
    %1653 = vdwg.mxu0
    %1655 = vset.pattern.permute.xlu0 0
    %1656 = vperm.xlu0 %1655, %v1649
    %v1657 = vpop.permute.xlu0 %1656
    %1660 = vset.pattern.permute.xlu0 0
    %1661 = vperm.xlu0 %1660, %v1652
    %v1662 = vpop.permute.xlu0 %1661
    %v1664 = vsel %vm177, %v1657, 0.0
    %v1665 = vsel %vm178, %v1662, 0.0
    %1666 = vrot.lane.b32.xlu0 %v128, 96
    %v1667 = vpop.permute.xlu0 %1666
    %1668 = vrot.lane.b32.xlu0 %v131, 96
    %v1669 = vpop.permute.xlu0 %1668
    %v1670 = vsel %vm147, %v1667, 0
    %v1672 = vsel %vm147, %v1669, 0
    %1674 = vmatpush.xpose.msra.mxu0 0.0
    %1675 = vmatpush.xpose.msra.mxu0 0.0
    %1676 = vmatpush.xpose.msra.mxu0 0.0
    %1677 = vmatpush.xpose.msra.mxu0 0.0
    %1678 = vmatpush.xpose.msra.mxu0 0.0
    %1679 = vmatpush.xpose.msra.mxu0 0.0
    %1680 = vmatpush.xpose.msra.mxu0 0.0
    %1681 = vmatpush.xpose.msra.mxu0 0.0
    %1682 = vmatpush.xpose.msra.mxu0 0.0
    %1683 = vmatpush.xpose.msra.mxu0 0.0
    %1684 = vmatpush.xpose.msra.mxu0 0.0
    %1685 = vmatpush.xpose.msra.mxu0 0.0
    %1686 = vmatpush.xpose.msra.mxu0 0.0
    %1687 = vmatpush.xpose.msra.mxu0 0.0
    %1688 = vmatpush.xpose.msra.mxu0 %v1672
    %1689 = vmatpush.xpose.msra.mxu0 %v1670
    %1690 = vmatmul.f32.gmra.mxu0 %v1626
    %v1691 = vpop.f32.mrf.mxu0
    %v1692 = vadd.f32 %v1664, %v1691
    %1693 = vmatmul.f32.gmra.mxu0 %v1629
    %v1694 = vpop.f32.mrf.mxu0
    %v1695 = vadd.f32 %v1665, %v1694
    %1696 = vdwg.mxu0
    %1697 = vset.pattern.permute.xlu0 1
    %1698 = vperm.xlu0 %1697, %v1649
    %v1699 = vpop.permute.xlu0 %1698
    %1701 = vset.pattern.permute.xlu0 1
    %1702 = vperm.xlu0 %1701, %v1652
    %v1703 = vpop.permute.xlu0 %1702
    %v1705 = vsel %vm222, %v1699, 0.0
    %v1706 = vsel %vm223, %v1703, 0.0
    %v1707 = vadd.f32 %v1692, %v1705
    %v1708 = vadd.f32 %v1695, %v1706
    %1709 = vset.pattern.permute.xlu0 2
    %1710 = vperm.xlu0 %1709, %v1649
    %v1711 = vpop.permute.xlu0 %1710
    %1713 = vset.pattern.permute.xlu0 2
    %1714 = vperm.xlu0 %1713, %v1652
    %v1715 = vpop.permute.xlu0 %1714
    %v1717 = vsel %vm236, %v1711, 0.0
    %v1718 = vsel %vm237, %v1715, 0.0
    %v1719 = vadd.f32 %v1707, %v1717
    %v1720 = vadd.f32 %v1708, %v1718
    %1721 = vset.pattern.permute.xlu0 3
    %1722 = vperm.xlu0 %1721, %v1649
    %v1723 = vpop.permute.xlu0 %1722
    %1725 = vset.pattern.permute.xlu0 3
    %1726 = vperm.xlu0 %1725, %v1652
    %v1727 = vpop.permute.xlu0 %1726
    %v1729 = vsel %vm250, %v1723, 0.0
    %v1730 = vsel %vm251, %v1727, 0.0
    %v1731 = vadd.f32 %v1719, %v1729
    %v1732 = vadd.f32 %v1720, %v1730
    %1733 = vset.pattern.permute.xlu0 4
    %1734 = vperm.xlu0 %1733, %v1649
    %v1735 = vpop.permute.xlu0 %1734
    %1737 = vset.pattern.permute.xlu0 4
    %1738 = vperm.xlu0 %1737, %v1652
    %v1739 = vpop.permute.xlu0 %1738
    %v1741 = vsel %vm264, %v1735, 0.0
    %v1742 = vsel %vm265, %v1739, 0.0
    %v1743 = vadd.f32 %v1731, %v1741
    %v1744 = vadd.f32 %v1732, %v1742
    %1745 = vset.pattern.permute.xlu0 5
    %1746 = vperm.xlu0 %1745, %v1649
    %v1747 = vpop.permute.xlu0 %1746
    %1749 = vset.pattern.permute.xlu0 5
    %1750 = vperm.xlu0 %1749, %v1652
    %v1751 = vpop.permute.xlu0 %1750
    %v1753 = vsel %vm278, %v1747, 0.0
    %v1754 = vsel %vm279, %v1751, 0.0
    %v1755 = vadd.f32 %v1743, %v1753
    %v1756 = vadd.f32 %v1744, %v1754
    %1757 = vset.pattern.permute.xlu0 6
    %1758 = vperm.xlu0 %1757, %v1649
    %v1759 = vpop.permute.xlu0 %1758
    %1761 = vset.pattern.permute.xlu0 6
    %1762 = vperm.xlu0 %1761, %v1652
    %v1763 = vpop.permute.xlu0 %1762
    %v1765 = vsel %vm292, %v1759, 0.0
    %v1766 = vsel %vm293, %v1763, 0.0
    %v1767 = vadd.f32 %v1755, %v1765
    %v1768 = vadd.f32 %v1756, %v1766
    %1769 = vset.pattern.permute.xlu0 7
    %1770 = vperm.xlu0 %1769, %v1649
    %v1771 = vpop.permute.xlu0 %1770
    %1773 = vset.pattern.permute.xlu0 7
    %1774 = vperm.xlu0 %1773, %v1652
    %v1775 = vpop.permute.xlu0 %1774
    %v1777 = vsel %vm306, %v1771, 0.0
    %v1778 = vsel %vm307, %v1775, 0.0
    %v1779 = vadd.f32 %v1767, %v1777
    %v1780 = vadd.f32 %v1768, %v1778
    %1781 = vset.pattern.permute.xlu0 8
    %1782 = vperm.xlu0 %1781, %v1649
    %v1783 = vpop.permute.xlu0 %1782
    %1785 = vset.pattern.permute.xlu0 8
    %1786 = vperm.xlu0 %1785, %v1652
    %v1787 = vpop.permute.xlu0 %1786
    %v1789 = vsel %vm320, %v1783, 0.0
    %v1790 = vsel %vm321, %v1787, 0.0
    %v1791 = vadd.f32 %v1779, %v1789
    %v1792 = vadd.f32 %v1780, %v1790
    %v1793 = vsel %vm1623, 16843009, 0
    %v1794 = vsel %vm1624, 16843009, 0
    %v1795 = vunpack.c.0.s8 %v1793
    %v1796 = vunpack.c.0.s8 %v1794
    %vm1797 = vcmp.ne.s32.totalorder %v1795, 0
    %vm1798 = vcmp.ne.s32.totalorder %v1796, 0
    %v1799 = vsel %vm1797, %v1791, -10000.0
    %v1800 = vsel %vm1798, %v1792, -10000.0
    %v1801 = vsel %vm342, %v1799, -inf
    %1802 = vmax.xlane.f32.xlu0 %v1801
    %v1803 = vpop.xlane.xlu0 %1802
    %v1804 = vsel %vm342, %v1800, -inf
    %1805 = vmax.xlane.f32.xlu0 %v1804
    %v1806 = vpop.xlane.xlu0 %1805
    %v1807 = vsub.f32 %v1799, %v1803
    %v1808 = vsub.f32 %v1800, %v1806
    %v1809 = vmul.f32 %v1807, 1.442695
    %v1810 = vpow.pop %v1809
    %v1811 = vmul.f32 %v1808, 1.442695
    %v1812 = vpow.pop %v1811
    %v1813 = vsel %vm342, %v1810, 0.0
    %1814 = vadd.xlane.f32.xlu0 %v1813
    %v1815 = vpop.xlane.xlu0 %1814
    %v1816 = vsel %vm342, %v1812, 0.0
    %1817 = vadd.xlane.f32.xlu0 %v1816
    %v1818 = vpop.xlane.xlu0 %1817
    %v1819 = vrcp.pop %v1815
    %v1820 = vrcp.pop %v1818
    %v1821 = vmul.f32 %v1810, %v1819
    %v1822 = vmul.f32 %v1812, %v1820
    %v1823 = vsel %vm177, %v1821, 0.0
    %v1824 = vsel %vm178, %v1822, 0.0
    %v1825 = vsel %vm342, %v1823, 0.0
    %1826 = vadd.xlane.f32.xlu0 %v1825
    %v1827 = vpop.xlane.xlu0 %1826
    %v1828 = vsel %vm342, %v1824, 0.0
    %1829 = vadd.xlane.f32.xlu0 %v1828
    %v1830 = vpop.xlane.xlu0 %1829
    %1831 = vst.msk [vmem:[#allocation2] sm:$0xff] %vm373, %v1827
    %1832 = vst.msk [vmem:[#allocation2 + $0x8] sm:$0xff] %vm373, %v1830
    %v1833 = vsel %vm222, %v1821, 0.0
    %v1834 = vsel %vm223, %v1822, 0.0
    %v1835 = vsel %vm342, %v1833, 0.0
    %1836 = vadd.xlane.f32.xlu0 %v1835
    %v1837 = vpop.xlane.xlu0 %1836
    %v1838 = vsel %vm342, %v1834, 0.0
    %1839 = vadd.xlane.f32.xlu0 %v1838
    %v1840 = vpop.xlane.xlu0 %1839
    %1841 = vst.msk [vmem:[#allocation2] sm:$0xff] %vm384, %v1837
    %1842 = vst.msk [vmem:[#allocation2 + $0x8] sm:$0xff] %vm384, %v1840
    %v1843 = vsel %vm236, %v1821, 0.0
    %v1844 = vsel %vm237, %v1822, 0.0
    %v1845 = vsel %vm342, %v1843, 0.0
    %1846 = vadd.xlane.f32.xlu0 %v1845
    %v1847 = vpop.xlane.xlu0 %1846
    %v1848 = vsel %vm342, %v1844, 0.0
    %1849 = vadd.xlane.f32.xlu0 %v1848
    %v1850 = vpop.xlane.xlu0 %1849
    %1851 = vst.msk [vmem:[#allocation2] sm:$0xff] %vm395, %v1847
    %1852 = vst.msk [vmem:[#allocation2 + $0x8] sm:$0xff] %vm395, %v1850
    %v1853 = vsel %vm250, %v1821, 0.0
    %v1854 = vsel %vm251, %v1822, 0.0
    %v1855 = vsel %vm342, %v1853, 0.0
    %1856 = vadd.xlane.f32.xlu0 %v1855
    %v1857 = vpop.xlane.xlu0 %1856
    %v1858 = vsel %vm342, %v1854, 0.0
    %1859 = vadd.xlane.f32.xlu0 %v1858
    %v1860 = vpop.xlane.xlu0 %1859
    %1861 = vst.msk [vmem:[#allocation2] sm:$0xff] %vm406, %v1857
    %1862 = vst.msk [vmem:[#allocation2 + $0x8] sm:$0xff] %vm406, %v1860
    %v1863 = vsel %vm264, %v1821, 0.0
    %v1864 = vsel %vm265, %v1822, 0.0
    %v1865 = vsel %vm342, %v1863, 0.0
    %1866 = vadd.xlane.f32.xlu0 %v1865
    %v1867 = vpop.xlane.xlu0 %1866
    %v1868 = vsel %vm342, %v1864, 0.0
    %1869 = vadd.xlane.f32.xlu0 %v1868
    %v1870 = vpop.xlane.xlu0 %1869
    %1871 = vst.msk [vmem:[#allocation2] sm:$0xff] %vm417, %v1867
    %1872 = vst.msk [vmem:[#allocation2 + $0x8] sm:$0xff] %vm417, %v1870
    %v1873 = vsel %vm278, %v1821, 0.0
    %v1874 = vsel %vm279, %v1822, 0.0
    %v1875 = vsel %vm342, %v1873, 0.0
    %1876 = vadd.xlane.f32.xlu0 %v1875
    %v1877 = vpop.xlane.xlu0 %1876
    %v1878 = vsel %vm342, %v1874, 0.0
    %1879 = vadd.xlane.f32.xlu0 %v1878
    %v1880 = vpop.xlane.xlu0 %1879
    %1881 = vst.msk [vmem:[#allocation2] sm:$0xff] %vm428, %v1877
    %1882 = vst.msk [vmem:[#allocation2 + $0x8] sm:$0xff] %vm428, %v1880
    %v1883 = vsel %vm292, %v1821, 0.0
    %v1884 = vsel %vm293, %v1822, 0.0
    %v1885 = vsel %vm342, %v1883, 0.0
    %1886 = vadd.xlane.f32.xlu0 %v1885
    %v1887 = vpop.xlane.xlu0 %1886
    %v1888 = vsel %vm342, %v1884, 0.0
    %1889 = vadd.xlane.f32.xlu0 %v1888
    %v1890 = vpop.xlane.xlu0 %1889
    %1891 = vst.msk [vmem:[#allocation2] sm:$0xff] %vm439, %v1887
    %1892 = vst.msk [vmem:[#allocation2 + $0x8] sm:$0xff] %vm439, %v1890
    %v1893 = vsel %vm306, %v1821, 0.0
    %v1894 = vsel %vm307, %v1822, 0.0
    %v1895 = vsel %vm342, %v1893, 0.0
    %1896 = vadd.xlane.f32.xlu0 %v1895
    %v1897 = vpop.xlane.xlu0 %1896
    %v1898 = vsel %vm342, %v1894, 0.0
    %1899 = vadd.xlane.f32.xlu0 %v1898
    %v1900 = vpop.xlane.xlu0 %1899
    %1901 = vst.msk [vmem:[#allocation2] sm:$0xff] %vm450, %v1897
    %1902 = vst.msk [vmem:[#allocation2 + $0x8] sm:$0xff] %vm450, %v1900
    %v1903 = vsel %vm320, %v1821, 0.0
    %v1904 = vsel %vm321, %v1822, 0.0
    %v1905 = vsel %vm342, %v1903, 0.0
    %1906 = vadd.xlane.f32.xlu0 %v1905
    %v1907 = vpop.xlane.xlu0 %1906
    %v1908 = vsel %vm342, %v1904, 0.0
    %1909 = vadd.xlane.f32.xlu0 %v1908
    %v1910 = vpop.xlane.xlu0 %1909
    %1911 = vst.msk [vmem:[#allocation2] sm:$0xff] %vm461, %v1907
    %1912 = vst.msk [vmem:[#allocation2 + $0x8] sm:$0xff] %vm461, %v1910
    %v1913 = vld [vmem:[#allocation2] sm:$0xff]
    %v1914 = vld [vmem:[#allocation2 + $0x8] sm:$0xff]
    %v1916 = vsel %vm466, %v1913, 0
    %v1919 = vsel %vm466, %v1914, 0
    %1921 = vmatpush.msra.mxu0 0.0
    %1922 = vmatpush.msra.mxu0 0.0
    %1923 = vmatpush.msra.mxu0 0.0
    %1924 = vmatpush.msra.mxu0 0.0
    %1925 = vmatpush.msra.mxu0 0.0
    %1926 = vmatpush.msra.mxu0 0.0
    %1927 = vmatpush.msra.mxu0 0.0
    %1928 = vmatpush.msra.mxu0 0.0
    %1929 = vmatpush.msra.mxu0 0.0
    %1930 = vmatpush.msra.mxu0 0.0
    %1931 = vmatpush.msra.mxu0 0.0
    %1932 = vmatpush.msra.mxu0 0.0
    %1933 = vmatpush.msra.mxu0 0.0
    %1934 = vmatpush.msra.mxu0 0.0
    %1935 = vmatpush.msra.mxu0 %v475
    %1936 = vmatpush.msra.mxu0 %v141
    %1937 = vmatmul.f32.gmra.mxu0 %v1916
    %v1938 = vpop.f32.mrf.mxu0
    %v1939 = vadd.f32 0.0, %v1938
    %1940 = vmatmul.f32.gmra.mxu0 %v1919
    %v1941 = vpop.f32.mrf.mxu0
    %v1942 = vadd.f32 0.0, %v1941
    %1943 = vdwg.mxu0
    %1944 = vrot.lane.b32.xlu0 %v128, 64
    %v1945 = vpop.permute.xlu0 %1944
    %1946 = vrot.lane.b32.xlu0 %v131, 64
    %v1947 = vpop.permute.xlu0 %1946
    %v1951 = vsel %vm342, %v1821, 0
    %v1954 = vsel %vm342, %v1822, 0
    %1956 = vmatpush.msra.mxu0 0.0
    %1957 = vmatpush.msra.mxu0 0.0
    %1958 = vmatpush.msra.mxu0 0.0
    %1959 = vmatpush.msra.mxu0 0.0
    %1960 = vmatpush.msra.mxu0 0.0
    %1961 = vmatpush.msra.mxu0 0.0
    %1962 = vmatpush.msra.mxu0 0.0
    %1963 = vmatpush.msra.mxu0 0.0
    %1964 = vmatpush.msra.mxu0 0.0
    %1965 = vmatpush.msra.mxu0 0.0
    %1966 = vmatpush.msra.mxu0 0.0
    %1967 = vmatpush.msra.mxu0 0.0
    %1968 = vmatpush.msra.mxu0 0.0
    %1969 = vmatpush.msra.mxu0 0.0
    %1970 = vmatpush.msra.mxu0 %v1947
    %1971 = vmatpush.msra.mxu0 %v1945
    %1972 = vmatmul.f32.gmra.mxu0 %v1951
    %v1973 = vpop.f32.mrf.mxu0
    %v1974 = vadd.f32 %v1939, %v1973
    %1975 = vmatmul.f32.gmra.mxu0 %v1954
    %v1976 = vpop.f32.mrf.mxu0
    %v1977 = vadd.f32 %v1942, %v1976
    %1978 = vdwg.mxu0
    %1979 = vst.msk [vmem:[#allocation3 + $0x10] sm:$0xff] %vm147, %v1974
    %1980 = vst.msk [vmem:[#allocation3 + $0x18] sm:$0xff] %vm147, %v1977
    %1981 = vrot.lane.b32.xlu0 %v128, 120
    %v1982 = vpop.permute.xlu0 %1981
    %1983 = vrot.lane.b32.xlu0 %v131, 120
    %v1984 = vpop.permute.xlu0 %1983
    %v1985 = vsel %vm147, %v1982, 0
    %v1987 = vsel %vm147, %v1984, 0
    %1989 = vmatpush.msra.mxu0 0.0
    %1990 = vmatpush.msra.mxu0 0.0
    %1991 = vmatpush.msra.mxu0 0.0
    %1992 = vmatpush.msra.mxu0 0.0
    %1993 = vmatpush.msra.mxu0 0.0
    %1994 = vmatpush.msra.mxu0 0.0
    %1995 = vmatpush.msra.mxu0 0.0
    %1996 = vmatpush.msra.mxu0 0.0
    %1997 = vmatpush.msra.mxu0 0.0
    %1998 = vmatpush.msra.mxu0 0.0
    %1999 = vmatpush.msra.mxu0 0.0
    %2000 = vmatpush.msra.mxu0 0.0
    %2001 = vmatpush.msra.mxu0 0.0
    %2002 = vmatpush.msra.mxu0 0.0
    %2003 = vmatpush.msra.mxu0 0.0
    %2004 = vmatpush.msra.mxu0 %v140
    %2005 = vmatmul.f32.gmra.mxu0 %v1985
    %v2006 = vpop.f32.mrf.mxu0
    %v2007 = vadd.f32 0.0, %v2006
    %2008 = vmatmul.f32.gmra.mxu0 %v1987
    %v2009 = vpop.f32.mrf.mxu0
    %v2010 = vadd.f32 0.0, %v2009
    %2011 = vdwg.mxu0
    %2013 = vset.pattern.permute.xlu0 0
    %2014 = vperm.xlu0 %2013, %v2007
    %v2015 = vpop.permute.xlu0 %2014
    %2018 = vset.pattern.permute.xlu0 0
    %2019 = vperm.xlu0 %2018, %v2010
    %v2020 = vpop.permute.xlu0 %2019
    %v2022 = vsel %vm177, %v2015, 0.0
    %v2023 = vsel %vm178, %v2020, 0.0
    %2024 = vrot.lane.b32.xlu0 %v128, 88
    %v2025 = vpop.permute.xlu0 %2024
    %2026 = vrot.lane.b32.xlu0 %v131, 88
    %v2027 = vpop.permute.xlu0 %2026
    %v2028 = vsel %vm147, %v2025, 0
    %v2030 = vsel %vm147, %v2027, 0
    %2032 = vmatpush.xpose.msra.mxu0 0.0
    %2033 = vmatpush.xpose.msra.mxu0 0.0
    %2034 = vmatpush.xpose.msra.mxu0 0.0
    %2035 = vmatpush.xpose.msra.mxu0 0.0
    %2036 = vmatpush.xpose.msra.mxu0 0.0
    %2037 = vmatpush.xpose.msra.mxu0 0.0
    %2038 = vmatpush.xpose.msra.mxu0 0.0
    %2039 = vmatpush.xpose.msra.mxu0 0.0
    %2040 = vmatpush.xpose.msra.mxu0 0.0
    %2041 = vmatpush.xpose.msra.mxu0 0.0
    %2042 = vmatpush.xpose.msra.mxu0 0.0
    %2043 = vmatpush.xpose.msra.mxu0 0.0
    %2044 = vmatpush.xpose.msra.mxu0 0.0
    %2045 = vmatpush.xpose.msra.mxu0 0.0
    %2046 = vmatpush.xpose.msra.mxu0 %v2030
    %2047 = vmatpush.xpose.msra.mxu0 %v2028
    %2048 = vmatmul.f32.gmra.mxu0 %v1985
    %v2049 = vpop.f32.mrf.mxu0
    %v2050 = vadd.f32 %v2022, %v2049
    %2051 = vmatmul.f32.gmra.mxu0 %v1987
    %v2052 = vpop.f32.mrf.mxu0
    %v2053 = vadd.f32 %v2023, %v2052
    %2054 = vdwg.mxu0
    %2055 = vset.pattern.permute.xlu0 1
    %2056 = vperm.xlu0 %2055, %v2007
    %v2057 = vpop.permute.xlu0 %2056
    %2059 = vset.pattern.permute.xlu0 1
    %2060 = vperm.xlu0 %2059, %v2010
    %v2061 = vpop.permute.xlu0 %2060
    %v2063 = vsel %vm222, %v2057, 0.0
    %v2064 = vsel %vm223, %v2061, 0.0
    %v2065 = vadd.f32 %v2050, %v2063
    %v2066 = vadd.f32 %v2053, %v2064
    %2067 = vset.pattern.permute.xlu0 2
    %2068 = vperm.xlu0 %2067, %v2007
    %v2069 = vpop.permute.xlu0 %2068
    %2071 = vset.pattern.permute.xlu0 2
    %2072 = vperm.xlu0 %2071, %v2010
    %v2073 = vpop.permute.xlu0 %2072
    %v2075 = vsel %vm236, %v2069, 0.0
    %v2076 = vsel %vm237, %v2073, 0.0
    %v2077 = vadd.f32 %v2065, %v2075
    %v2078 = vadd.f32 %v2066, %v2076
    %2079 = vset.pattern.permute.xlu0 3
    %2080 = vperm.xlu0 %2079, %v2007
    %v2081 = vpop.permute.xlu0 %2080
    %2083 = vset.pattern.permute.xlu0 3
    %2084 = vperm.xlu0 %2083, %v2010
    %v2085 = vpop.permute.xlu0 %2084
    %v2087 = vsel %vm250, %v2081, 0.0
    %v2088 = vsel %vm251, %v2085, 0.0
    %v2089 = vadd.f32 %v2077, %v2087
    %v2090 = vadd.f32 %v2078, %v2088
    %2091 = vset.pattern.permute.xlu0 4
    %2092 = vperm.xlu0 %2091, %v2007
    %v2093 = vpop.permute.xlu0 %2092
    %2095 = vset.pattern.permute.xlu0 4
    %2096 = vperm.xlu0 %2095, %v2010
    %v2097 = vpop.permute.xlu0 %2096
    %v2099 = vsel %vm264, %v2093, 0.0
    %v2100 = vsel %vm265, %v2097, 0.0
    %v2101 = vadd.f32 %v2089, %v2099
    %v2102 = vadd.f32 %v2090, %v2100
    %2103 = vset.pattern.permute.xlu0 5
    %2104 = vperm.xlu0 %2103, %v2007
    %v2105 = vpop.permute.xlu0 %2104
    %2107 = vset.pattern.permute.xlu0 5
    %2108 = vperm.xlu0 %2107, %v2010
    %v2109 = vpop.permute.xlu0 %2108
    %v2111 = vsel %vm278, %v2105, 0.0
    %v2112 = vsel %vm279, %v2109, 0.0
    %v2113 = vadd.f32 %v2101, %v2111
    %v2114 = vadd.f32 %v2102, %v2112
    %2115 = vset.pattern.permute.xlu0 6
    %2116 = vperm.xlu0 %2115, %v2007
    %v2117 = vpop.permute.xlu0 %2116
    %2119 = vset.pattern.permute.xlu0 6
    %2120 = vperm.xlu0 %2119, %v2010
    %v2121 = vpop.permute.xlu0 %2120
    %v2123 = vsel %vm292, %v2117, 0.0
    %v2124 = vsel %vm293, %v2121, 0.0
    %v2125 = vadd.f32 %v2113, %v2123
    %v2126 = vadd.f32 %v2114, %v2124
    %2127 = vset.pattern.permute.xlu0 7
    %2128 = vperm.xlu0 %2127, %v2007
    %v2129 = vpop.permute.xlu0 %2128
    %2131 = vset.pattern.permute.xlu0 7
    %2132 = vperm.xlu0 %2131, %v2010
    %v2133 = vpop.permute.xlu0 %2132
    %v2135 = vsel %vm306, %v2129, 0.0
    %v2136 = vsel %vm307, %v2133, 0.0
    %v2137 = vadd.f32 %v2125, %v2135
    %v2138 = vadd.f32 %v2126, %v2136
    %2139 = vset.pattern.permute.xlu0 8
    %2140 = vperm.xlu0 %2139, %v2007
    %v2141 = vpop.permute.xlu0 %2140
    %2143 = vset.pattern.permute.xlu0 8
    %2144 = vperm.xlu0 %2143, %v2010
    %v2145 = vpop.permute.xlu0 %2144
    %v2147 = vsel %vm320, %v2141, 0.0
    %v2148 = vsel %vm321, %v2145, 0.0
    %v2149 = vadd.f32 %v2137, %v2147
    %v2150 = vadd.f32 %v2138, %v2148
    %v2151 = vsel %vm1797, %v2149, -10000.0
    %v2152 = vsel %vm1798, %v2150, -10000.0
    %v2153 = vsel %vm342, %v2151, -inf
    %2154 = vmax.xlane.f32.xlu0 %v2153
    %v2155 = vpop.xlane.xlu0 %2154
    %v2156 = vsel %vm342, %v2152, -inf
    %2157 = vmax.xlane.f32.xlu0 %v2156
    %v2158 = vpop.xlane.xlu0 %2157
    %v2159 = vsub.f32 %v2151, %v2155
    %v2160 = vsub.f32 %v2152, %v2158
    %v2161 = vmul.f32 %v2159, 1.442695
    %v2162 = vpow.pop %v2161
    %v2163 = vmul.f32 %v2160, 1.442695
    %v2164 = vpow.pop %v2163
    %v2165 = vsel %vm342, %v2162, 0.0
    %2166 = vadd.xlane.f32.xlu0 %v2165
    %v2167 = vpop.xlane.xlu0 %2166
    %v2168 = vsel %vm342, %v2164, 0.0
    %2169 = vadd.xlane.f32.xlu0 %v2168
    %v2170 = vpop.xlane.xlu0 %2169
    %v2171 = vrcp.pop %v2167
    %v2172 = vrcp.pop %v2170
    %v2173 = vmul.f32 %v2162, %v2171
    %v2174 = vmul.f32 %v2164, %v2172
    %v2175 = vsel %vm177, %v2173, 0.0
    %v2176 = vsel %vm178, %v2174, 0.0
    %v2177 = vsel %vm342, %v2175, 0.0
    %2178 = vadd.xlane.f32.xlu0 %v2177
    %v2179 = vpop.xlane.xlu0 %2178
    %v2180 = vsel %vm342, %v2176, 0.0
    %2181 = vadd.xlane.f32.xlu0 %v2180
    %v2182 = vpop.xlane.xlu0 %2181
    %2183 = vst.msk [vmem:[#allocation2] sm:$0xff] %vm373, %v2179
    %2184 = vst.msk [vmem:[#allocation2 + $0x8] sm:$0xff] %vm373, %v2182
    %v2185 = vsel %vm222, %v2173, 0.0
    %v2186 = vsel %vm223, %v2174, 0.0
    %v2187 = vsel %vm342, %v2185, 0.0
    %2188 = vadd.xlane.f32.xlu0 %v2187
    %v2189 = vpop.xlane.xlu0 %2188
    %v2190 = vsel %vm342, %v2186, 0.0
    %2191 = vadd.xlane.f32.xlu0 %v2190
    %v2192 = vpop.xlane.xlu0 %2191
    %2193 = vst.msk [vmem:[#allocation2] sm:$0xff] %vm384, %v2189
    %2194 = vst.msk [vmem:[#allocation2 + $0x8] sm:$0xff] %vm384, %v2192
    %v2195 = vsel %vm236, %v2173, 0.0
    %v2196 = vsel %vm237, %v2174, 0.0
    %v2197 = vsel %vm342, %v2195, 0.0
    %2198 = vadd.xlane.f32.xlu0 %v2197
    %v2199 = vpop.xlane.xlu0 %2198
    %v2200 = vsel %vm342, %v2196, 0.0
    %2201 = vadd.xlane.f32.xlu0 %v2200
    %v2202 = vpop.xlane.xlu0 %2201
    %2203 = vst.msk [vmem:[#allocation2] sm:$0xff] %vm395, %v2199
    %2204 = vst.msk [vmem:[#allocation2 + $0x8] sm:$0xff] %vm395, %v2202
    %v2205 = vsel %vm250, %v2173, 0.0
    %v2206 = vsel %vm251, %v2174, 0.0
    %v2207 = vsel %vm342, %v2205, 0.0
    %2208 = vadd.xlane.f32.xlu0 %v2207
    %v2209 = vpop.xlane.xlu0 %2208
    %v2210 = vsel %vm342, %v2206, 0.0
    %2211 = vadd.xlane.f32.xlu0 %v2210
    %v2212 = vpop.xlane.xlu0 %2211
    %2213 = vst.msk [vmem:[#allocation2] sm:$0xff] %vm406, %v2209
    %2214 = vst.msk [vmem:[#allocation2 + $0x8] sm:$0xff] %vm406, %v2212
    %v2215 = vsel %vm264, %v2173, 0.0
    %v2216 = vsel %vm265, %v2174, 0.0
    %v2217 = vsel %vm342, %v2215, 0.0
    %2218 = vadd.xlane.f32.xlu0 %v2217
    %v2219 = vpop.xlane.xlu0 %2218
    %v2220 = vsel %vm342, %v2216, 0.0
    %2221 = vadd.xlane.f32.xlu0 %v2220
    %v2222 = vpop.xlane.xlu0 %2221
    %2223 = vst.msk [vmem:[#allocation2] sm:$0xff] %vm417, %v2219
    %2224 = vst.msk [vmem:[#allocation2 + $0x8] sm:$0xff] %vm417, %v2222
    %v2225 = vsel %vm278, %v2173, 0.0
    %v2226 = vsel %vm279, %v2174, 0.0
    %v2227 = vsel %vm342, %v2225, 0.0
    %2228 = vadd.xlane.f32.xlu0 %v2227
    %v2229 = vpop.xlane.xlu0 %2228
    %v2230 = vsel %vm342, %v2226, 0.0
    %2231 = vadd.xlane.f32.xlu0 %v2230
    %v2232 = vpop.xlane.xlu0 %2231
    %2233 = vst.msk [vmem:[#allocation2] sm:$0xff] %vm428, %v2229
    %2234 = vst.msk [vmem:[#allocation2 + $0x8] sm:$0xff] %vm428, %v2232
    %v2235 = vsel %vm292, %v2173, 0.0
    %v2236 = vsel %vm293, %v2174, 0.0
    %v2237 = vsel %vm342, %v2235, 0.0
    %2238 = vadd.xlane.f32.xlu0 %v2237
    %v2239 = vpop.xlane.xlu0 %2238
    %v2240 = vsel %vm342, %v2236, 0.0
    %2241 = vadd.xlane.f32.xlu0 %v2240
    %v2242 = vpop.xlane.xlu0 %2241
    %2243 = vst.msk [vmem:[#allocation2] sm:$0xff] %vm439, %v2239
    %2244 = vst.msk [vmem:[#allocation2 + $0x8] sm:$0xff] %vm439, %v2242
    %v2245 = vsel %vm306, %v2173, 0.0
    %v2246 = vsel %vm307, %v2174, 0.0
    %v2247 = vsel %vm342, %v2245, 0.0
    %2248 = vadd.xlane.f32.xlu0 %v2247
    %v2249 = vpop.xlane.xlu0 %2248
    %v2250 = vsel %vm342, %v2246, 0.0
    %2251 = vadd.xlane.f32.xlu0 %v2250
    %v2252 = vpop.xlane.xlu0 %2251
    %2253 = vst.msk [vmem:[#allocation2] sm:$0xff] %vm450, %v2249
    %2254 = vst.msk [vmem:[#allocation2 + $0x8] sm:$0xff] %vm450, %v2252
    %v2255 = vsel %vm320, %v2173, 0.0
    %v2256 = vsel %vm321, %v2174, 0.0
    %v2257 = vsel %vm342, %v2255, 0.0
    %2258 = vadd.xlane.f32.xlu0 %v2257
    %v2259 = vpop.xlane.xlu0 %2258
    %v2260 = vsel %vm342, %v2256, 0.0
    %2261 = vadd.xlane.f32.xlu0 %v2260
    %v2262 = vpop.xlane.xlu0 %2261
    %2263 = vst.msk [vmem:[#allocation2] sm:$0xff] %vm461, %v2259
    %2264 = vst.msk [vmem:[#allocation2 + $0x8] sm:$0xff] %vm461, %v2262
    %v2265 = vld [vmem:[#allocation2] sm:$0xff]
    %v2266 = vld [vmem:[#allocation2 + $0x8] sm:$0xff]
    %v2268 = vsel %vm466, %v2265, 0
    %v2271 = vsel %vm466, %v2266, 0
    %2273 = vmatpush.msra.mxu0 0.0
    %2274 = vmatpush.msra.mxu0 0.0
    %2275 = vmatpush.msra.mxu0 0.0
    %2276 = vmatpush.msra.mxu0 0.0
    %2277 = vmatpush.msra.mxu0 0.0
    %2278 = vmatpush.msra.mxu0 0.0
    %2279 = vmatpush.msra.mxu0 0.0
    %2280 = vmatpush.msra.mxu0 0.0
    %2281 = vmatpush.msra.mxu0 0.0
    %2282 = vmatpush.msra.mxu0 0.0
    %2283 = vmatpush.msra.mxu0 0.0
    %2284 = vmatpush.msra.mxu0 0.0
    %2285 = vmatpush.msra.mxu0 0.0
    %2286 = vmatpush.msra.mxu0 0.0
    %2287 = vmatpush.msra.mxu0 %v475
    %2288 = vmatpush.msra.mxu0 %v141
    %2289 = vmatmul.f32.gmra.mxu0 %v2268
    %v2290 = vpop.f32.mrf.mxu0
    %v2291 = vadd.f32 0.0, %v2290
    %2292 = vmatmul.f32.gmra.mxu0 %v2271
    %v2293 = vpop.f32.mrf.mxu0
    %v2294 = vadd.f32 0.0, %v2293
    %2295 = vdwg.mxu0
    %2296 = vrot.lane.b32.xlu0 %v128, 56
    %v2297 = vpop.permute.xlu0 %2296
    %2298 = vrot.lane.b32.xlu0 %v131, 56
    %v2299 = vpop.permute.xlu0 %2298
    %v2303 = vsel %vm342, %v2173, 0
    %v2306 = vsel %vm342, %v2174, 0
    %2308 = vmatpush.msra.mxu0 0.0
    %2309 = vmatpush.msra.mxu0 0.0
    %2310 = vmatpush.msra.mxu0 0.0
    %2311 = vmatpush.msra.mxu0 0.0
    %2312 = vmatpush.msra.mxu0 0.0
    %2313 = vmatpush.msra.mxu0 0.0
    %2314 = vmatpush.msra.mxu0 0.0
    %2315 = vmatpush.msra.mxu0 0.0
    %2316 = vmatpush.msra.mxu0 0.0
    %2317 = vmatpush.msra.mxu0 0.0
    %2318 = vmatpush.msra.mxu0 0.0
    %2319 = vmatpush.msra.mxu0 0.0
    %2320 = vmatpush.msra.mxu0 0.0
    %2321 = vmatpush.msra.mxu0 0.0
    %2322 = vmatpush.msra.mxu0 %v2299
    %2323 = vmatpush.msra.mxu0 %v2297
    %2324 = vmatmul.f32.gmra.mxu0 %v2303
    %v2325 = vpop.f32.mrf.mxu0
    %v2326 = vadd.f32 %v2291, %v2325
    %2327 = vmatmul.f32.gmra.mxu0 %v2306
    %v2328 = vpop.f32.mrf.mxu0
    %v2329 = vadd.f32 %v2294, %v2328
    %2330 = vdwg.mxu0
    %2333 = vrot.lane.b32.xlu0 %v2326, 8
    %v2334 = vpop.permute.xlu0 %2333
    %2335 = vrot.lane.b32.xlu0 %v2329, 8
    %v2336 = vpop.permute.xlu0 %2335
    %2339 = vst.msk [vmem:[#allocation3 + $0x10] sm:$0xff] %vm895, %v2334
    %2340 = vst.msk [vmem:[#allocation3 + $0x18] sm:$0xff] %vm895, %v2336
    %2341 = vrot.lane.b32.xlu0 %v128, 112
    %v2342 = vpop.permute.xlu0 %2341
    %2343 = vrot.lane.b32.xlu0 %v131, 112
    %v2344 = vpop.permute.xlu0 %2343
    %v2345 = vsel %vm147, %v2342, 0
    %v2347 = vsel %vm147, %v2344, 0
    %2349 = vmatpush.msra.mxu0 0.0
    %2350 = vmatpush.msra.mxu0 0.0
    %2351 = vmatpush.msra.mxu0 0.0
    %2352 = vmatpush.msra.mxu0 0.0
    %2353 = vmatpush.msra.mxu0 0.0
    %2354 = vmatpush.msra.mxu0 0.0
    %2355 = vmatpush.msra.mxu0 0.0
    %2356 = vmatpush.msra.mxu0 0.0
    %2357 = vmatpush.msra.mxu0 0.0
    %2358 = vmatpush.msra.mxu0 0.0
    %2359 = vmatpush.msra.mxu0 0.0
    %2360 = vmatpush.msra.mxu0 0.0
    %2361 = vmatpush.msra.mxu0 0.0
    %2362 = vmatpush.msra.mxu0 0.0
    %2363 = vmatpush.msra.mxu0 0.0
    %2364 = vmatpush.msra.mxu0 %v140
    %2365 = vmatmul.f32.gmra.mxu0 %v2345
    %v2366 = vpop.f32.mrf.mxu0
    %v2367 = vadd.f32 0.0, %v2366
    %2368 = vmatmul.f32.gmra.mxu0 %v2347
    %v2369 = vpop.f32.mrf.mxu0
    %v2370 = vadd.f32 0.0, %v2369
    %2371 = vdwg.mxu0
    %2373 = vset.pattern.permute.xlu0 0
    %2374 = vperm.xlu0 %2373, %v2367
    %v2375 = vpop.permute.xlu0 %2374
    %2378 = vset.pattern.permute.xlu0 0
    %2379 = vperm.xlu0 %2378, %v2370
    %v2380 = vpop.permute.xlu0 %2379
    %v2382 = vsel %vm177, %v2375, 0.0
    %v2383 = vsel %vm178, %v2380, 0.0
    %2384 = vrot.lane.b32.xlu0 %v128, 80
    %v2385 = vpop.permute.xlu0 %2384
    %2386 = vrot.lane.b32.xlu0 %v131, 80
    %v2387 = vpop.permute.xlu0 %2386
    %v2388 = vsel %vm147, %v2385, 0
    %v2390 = vsel %vm147, %v2387, 0
    %2392 = vmatpush.xpose.msra.mxu0 0.0
    %2393 = vmatpush.xpose.msra.mxu0 0.0
    %2394 = vmatpush.xpose.msra.mxu0 0.0
    %2395 = vmatpush.xpose.msra.mxu0 0.0
    %2396 = vmatpush.xpose.msra.mxu0 0.0
    %2397 = vmatpush.xpose.msra.mxu0 0.0
    %2398 = vmatpush.xpose.msra.mxu0 0.0
    %2399 = vmatpush.xpose.msra.mxu0 0.0
    %2400 = vmatpush.xpose.msra.mxu0 0.0
    %2401 = vmatpush.xpose.msra.mxu0 0.0
    %2402 = vmatpush.xpose.msra.mxu0 0.0
    %2403 = vmatpush.xpose.msra.mxu0 0.0
    %2404 = vmatpush.xpose.msra.mxu0 0.0
    %2405 = vmatpush.xpose.msra.mxu0 0.0
    %2406 = vmatpush.xpose.msra.mxu0 %v2390
    %2407 = vmatpush.xpose.msra.mxu0 %v2388
    %2408 = vmatmul.f32.gmra.mxu0 %v2345
    %v2409 = vpop.f32.mrf.mxu0
    %v2410 = vadd.f32 %v2382, %v2409
    %2411 = vmatmul.f32.gmra.mxu0 %v2347
    %v2412 = vpop.f32.mrf.mxu0
    %v2413 = vadd.f32 %v2383, %v2412
    %2414 = vdwg.mxu0
    %2415 = vset.pattern.permute.xlu0 1
    %2416 = vperm.xlu0 %2415, %v2367
    %v2417 = vpop.permute.xlu0 %2416
    %2419 = vset.pattern.permute.xlu0 1
    %2420 = vperm.xlu0 %2419, %v2370
    %v2421 = vpop.permute.xlu0 %2420
    %v2423 = vsel %vm222, %v2417, 0.0
    %v2424 = vsel %vm223, %v2421, 0.0
    %v2425 = vadd.f32 %v2410, %v2423
    %v2426 = vadd.f32 %v2413, %v2424
    %2427 = vset.pattern.permute.xlu0 2
    %2428 = vperm.xlu0 %2427, %v2367
    %v2429 = vpop.permute.xlu0 %2428
    %2431 = vset.pattern.permute.xlu0 2
    %2432 = vperm.xlu0 %2431, %v2370
    %v2433 = vpop.permute.xlu0 %2432
    %v2435 = vsel %vm236, %v2429, 0.0
    %v2436 = vsel %vm237, %v2433, 0.0
    %v2437 = vadd.f32 %v2425, %v2435
    %v2438 = vadd.f32 %v2426, %v2436
    %2439 = vset.pattern.permute.xlu0 3
    %2440 = vperm.xlu0 %2439, %v2367
    %v2441 = vpop.permute.xlu0 %2440
    %2443 = vset.pattern.permute.xlu0 3
    %2444 = vperm.xlu0 %2443, %v2370
    %v2445 = vpop.permute.xlu0 %2444
    %v2447 = vsel %vm250, %v2441, 0.0
    %v2448 = vsel %vm251, %v2445, 0.0
    %v2449 = vadd.f32 %v2437, %v2447
    %v2450 = vadd.f32 %v2438, %v2448
    %2451 = vset.pattern.permute.xlu0 4
    %2452 = vperm.xlu0 %2451, %v2367
    %v2453 = vpop.permute.xlu0 %2452
    %2455 = vset.pattern.permute.xlu0 4
    %2456 = vperm.xlu0 %2455, %v2370
    %v2457 = vpop.permute.xlu0 %2456
    %v2459 = vsel %vm264, %v2453, 0.0
    %v2460 = vsel %vm265, %v2457, 0.0
    %v2461 = vadd.f32 %v2449, %v2459
    %v2462 = vadd.f32 %v2450, %v2460
    %2463 = vset.pattern.permute.xlu0 5
    %2464 = vperm.xlu0 %2463, %v2367
    %v2465 = vpop.permute.xlu0 %2464
    %2467 = vset.pattern.permute.xlu0 5
    %2468 = vperm.xlu0 %2467, %v2370
    %v2469 = vpop.permute.xlu0 %2468
    %v2471 = vsel %vm278, %v2465, 0.0
    %v2472 = vsel %vm279, %v2469, 0.0
    %v2473 = vadd.f32 %v2461, %v2471
    %v2474 = vadd.f32 %v2462, %v2472
    %2475 = vset.pattern.permute.xlu0 6
    %2476 = vperm.xlu0 %2475, %v2367
    %v2477 = vpop.permute.xlu0 %2476
    %2479 = vset.pattern.permute.xlu0 6
    %2480 = vperm.xlu0 %2479, %v2370
    %v2481 = vpop.permute.xlu0 %2480
    %v2483 = vsel %vm292, %v2477, 0.0
    %v2484 = vsel %vm293, %v2481, 0.0
    %v2485 = vadd.f32 %v2473, %v2483
    %v2486 = vadd.f32 %v2474, %v2484
    %2487 = vset.pattern.permute.xlu0 7
    %2488 = vperm.xlu0 %2487, %v2367
    %v2489 = vpop.permute.xlu0 %2488
    %2491 = vset.pattern.permute.xlu0 7
    %2492 = vperm.xlu0 %2491, %v2370
    %v2493 = vpop.permute.xlu0 %2492
    %v2495 = vsel %vm306, %v2489, 0.0
    %v2496 = vsel %vm307, %v2493, 0.0
    %v2497 = vadd.f32 %v2485, %v2495
    %v2498 = vadd.f32 %v2486, %v2496
    %2499 = vset.pattern.permute.xlu0 8
    %2500 = vperm.xlu0 %2499, %v2367
    %v2501 = vpop.permute.xlu0 %2500
    %2503 = vset.pattern.permute.xlu0 8
    %2504 = vperm.xlu0 %2503, %v2370
    %v2505 = vpop.permute.xlu0 %2504
    %v2507 = vsel %vm320, %v2501, 0.0
    %v2508 = vsel %vm321, %v2505, 0.0
    %v2509 = vadd.f32 %v2497, %v2507
    %v2510 = vadd.f32 %v2498, %v2508
    %v2511 = vsel %vm1797, %v2509, -10000.0
    %v2512 = vsel %vm1798, %v2510, -10000.0
    %v2513 = vsel %vm342, %v2511, -inf
    %2514 = vmax.xlane.f32.xlu0 %v2513
    %v2515 = vpop.xlane.xlu0 %2514
    %v2516 = vsel %vm342, %v2512, -inf
    %2517 = vmax.xlane.f32.xlu0 %v2516
    %v2518 = vpop.xlane.xlu0 %2517
    %v2519 = vsub.f32 %v2511, %v2515
    %v2520 = vsub.f32 %v2512, %v2518
    %v2521 = vmul.f32 %v2519, 1.442695
    %v2522 = vpow.pop %v2521
    %v2523 = vmul.f32 %v2520, 1.442695
    %v2524 = vpow.pop %v2523
    %v2525 = vsel %vm342, %v2522, 0.0
    %2526 = vadd.xlane.f32.xlu0 %v2525
    %v2527 = vpop.xlane.xlu0 %2526
    %v2528 = vsel %vm342, %v2524, 0.0
    %2529 = vadd.xlane.f32.xlu0 %v2528
    %v2530 = vpop.xlane.xlu0 %2529
    %v2531 = vrcp.pop %v2527
    %v2532 = vrcp.pop %v2530
    %v2533 = vmul.f32 %v2522, %v2531
    %v2534 = vmul.f32 %v2524, %v2532
    %v2535 = vsel %vm177, %v2533, 0.0
    %v2536 = vsel %vm178, %v2534, 0.0
    %v2537 = vsel %vm342, %v2535, 0.0
    %2538 = vadd.xlane.f32.xlu0 %v2537
    %v2539 = vpop.xlane.xlu0 %2538
    %v2540 = vsel %vm342, %v2536, 0.0
    %2541 = vadd.xlane.f32.xlu0 %v2540
    %v2542 = vpop.xlane.xlu0 %2541
    %2543 = vst.msk [vmem:[#allocation2] sm:$0xff] %vm373, %v2539
    %2544 = vst.msk [vmem:[#allocation2 + $0x8] sm:$0xff] %vm373, %v2542
    %v2545 = vsel %vm222, %v2533, 0.0
    %v2546 = vsel %vm223, %v2534, 0.0
    %v2547 = vsel %vm342, %v2545, 0.0
    %2548 = vadd.xlane.f32.xlu0 %v2547
    %v2549 = vpop.xlane.xlu0 %2548
    %v2550 = vsel %vm342, %v2546, 0.0
    %2551 = vadd.xlane.f32.xlu0 %v2550
    %v2552 = vpop.xlane.xlu0 %2551
    %2553 = vst.msk [vmem:[#allocation2] sm:$0xff] %vm384, %v2549
    %2554 = vst.msk [vmem:[#allocation2 + $0x8] sm:$0xff] %vm384, %v2552
    %v2555 = vsel %vm236, %v2533, 0.0
    %v2556 = vsel %vm237, %v2534, 0.0
    %v2557 = vsel %vm342, %v2555, 0.0
    %2558 = vadd.xlane.f32.xlu0 %v2557
    %v2559 = vpop.xlane.xlu0 %2558
    %v2560 = vsel %vm342, %v2556, 0.0
    %2561 = vadd.xlane.f32.xlu0 %v2560
    %v2562 = vpop.xlane.xlu0 %2561
    %2563 = vst.msk [vmem:[#allocation2] sm:$0xff] %vm395, %v2559
    %2564 = vst.msk [vmem:[#allocation2 + $0x8] sm:$0xff] %vm395, %v2562
    %v2565 = vsel %vm250, %v2533, 0.0
    %v2566 = vsel %vm251, %v2534, 0.0
    %v2567 = vsel %vm342, %v2565, 0.0
    %2568 = vadd.xlane.f32.xlu0 %v2567
    %v2569 = vpop.xlane.xlu0 %2568
    %v2570 = vsel %vm342, %v2566, 0.0
    %2571 = vadd.xlane.f32.xlu0 %v2570
    %v2572 = vpop.xlane.xlu0 %2571
    %2573 = vst.msk [vmem:[#allocation2] sm:$0xff] %vm406, %v2569
    %2574 = vst.msk [vmem:[#allocation2 + $0x8] sm:$0xff] %vm406, %v2572
    %v2575 = vsel %vm264, %v2533, 0.0
    %v2576 = vsel %vm265, %v2534, 0.0
    %v2577 = vsel %vm342, %v2575, 0.0
    %2578 = vadd.xlane.f32.xlu0 %v2577
    %v2579 = vpop.xlane.xlu0 %2578
    %v2580 = vsel %vm342, %v2576, 0.0
    %2581 = vadd.xlane.f32.xlu0 %v2580
    %v2582 = vpop.xlane.xlu0 %2581
    %2583 = vst.msk [vmem:[#allocation2] sm:$0xff] %vm417, %v2579
    %2584 = vst.msk [vmem:[#allocation2 + $0x8] sm:$0xff] %vm417, %v2582
    %v2585 = vsel %vm278, %v2533, 0.0
    %v2586 = vsel %vm279, %v2534, 0.0
    %v2587 = vsel %vm342, %v2585, 0.0
    %2588 = vadd.xlane.f32.xlu0 %v2587
    %v2589 = vpop.xlane.xlu0 %2588
    %v2590 = vsel %vm342, %v2586, 0.0
    %2591 = vadd.xlane.f32.xlu0 %v2590
    %v2592 = vpop.xlane.xlu0 %2591
    %2593 = vst.msk [vmem:[#allocation2] sm:$0xff] %vm428, %v2589
    %2594 = vst.msk [vmem:[#allocation2 + $0x8] sm:$0xff] %vm428, %v2592
    %v2595 = vsel %vm292, %v2533, 0.0
    %v2596 = vsel %vm293, %v2534, 0.0
    %v2597 = vsel %vm342, %v2595, 0.0
    %2598 = vadd.xlane.f32.xlu0 %v2597
    %v2599 = vpop.xlane.xlu0 %2598
    %v2600 = vsel %vm342, %v2596, 0.0
    %2601 = vadd.xlane.f32.xlu0 %v2600
    %v2602 = vpop.xlane.xlu0 %2601
    %2603 = vst.msk [vmem:[#allocation2] sm:$0xff] %vm439, %v2599
    %2604 = vst.msk [vmem:[#allocation2 + $0x8] sm:$0xff] %vm439, %v2602
    %v2605 = vsel %vm306, %v2533, 0.0
    %v2606 = vsel %vm307, %v2534, 0.0
    %v2607 = vsel %vm342, %v2605, 0.0
    %2608 = vadd.xlane.f32.xlu0 %v2607
    %v2609 = vpop.xlane.xlu0 %2608
    %v2610 = vsel %vm342, %v2606, 0.0
    %2611 = vadd.xlane.f32.xlu0 %v2610
    %v2612 = vpop.xlane.xlu0 %2611
    %2613 = vst.msk [vmem:[#allocation2] sm:$0xff] %vm450, %v2609
    %2614 = vst.msk [vmem:[#allocation2 + $0x8] sm:$0xff] %vm450, %v2612
    %v2615 = vsel %vm320, %v2533, 0.0
    %v2616 = vsel %vm321, %v2534, 0.0
    %v2617 = vsel %vm342, %v2615, 0.0
    %2618 = vadd.xlane.f32.xlu0 %v2617
    %v2619 = vpop.xlane.xlu0 %2618
    %v2620 = vsel %vm342, %v2616, 0.0
    %2621 = vadd.xlane.f32.xlu0 %v2620
    %v2622 = vpop.xlane.xlu0 %2621
    %2623 = vst.msk [vmem:[#allocation2] sm:$0xff] %vm461, %v2619
    %2624 = vst.msk [vmem:[#allocation2 + $0x8] sm:$0xff] %vm461, %v2622
    %v2625 = vld [vmem:[#allocation2] sm:$0xff]
    %v2626 = vld [vmem:[#allocation2 + $0x8] sm:$0xff]
    %v2628 = vsel %vm466, %v2625, 0
    %v2631 = vsel %vm466, %v2626, 0
    %2633 = vmatpush.msra.mxu0 0.0
    %2634 = vmatpush.msra.mxu0 0.0
    %2635 = vmatpush.msra.mxu0 0.0
    %2636 = vmatpush.msra.mxu0 0.0
    %2637 = vmatpush.msra.mxu0 0.0
    %2638 = vmatpush.msra.mxu0 0.0
    %2639 = vmatpush.msra.mxu0 0.0
    %2640 = vmatpush.msra.mxu0 0.0
    %2641 = vmatpush.msra.mxu0 0.0
    %2642 = vmatpush.msra.mxu0 0.0
    %2643 = vmatpush.msra.mxu0 0.0
    %2644 = vmatpush.msra.mxu0 0.0
    %2645 = vmatpush.msra.mxu0 0.0
    %2646 = vmatpush.msra.mxu0 0.0
    %2647 = vmatpush.msra.mxu0 %v475
    %2648 = vmatpush.msra.mxu0 %v141
    %2649 = vmatmul.f32.gmra.mxu0 %v2628
    %v2650 = vpop.f32.mrf.mxu0
    %v2651 = vadd.f32 0.0, %v2650
    %2652 = vmatmul.f32.gmra.mxu0 %v2631
    %v2653 = vpop.f32.mrf.mxu0
    %v2654 = vadd.f32 0.0, %v2653
    %2655 = vdwg.mxu0
    %2656 = vrot.lane.b32.xlu0 %v128, 48
    %v2657 = vpop.permute.xlu0 %2656
    %2658 = vrot.lane.b32.xlu0 %v131, 48
    %v2659 = vpop.permute.xlu0 %2658
    %v2663 = vsel %vm342, %v2533, 0
    %v2666 = vsel %vm342, %v2534, 0
    %2668 = vmatpush.msra.mxu0 0.0
    %2669 = vmatpush.msra.mxu0 0.0
    %2670 = vmatpush.msra.mxu0 0.0
    %2671 = vmatpush.msra.mxu0 0.0
    %2672 = vmatpush.msra.mxu0 0.0
    %2673 = vmatpush.msra.mxu0 0.0
    %2674 = vmatpush.msra.mxu0 0.0
    %2675 = vmatpush.msra.mxu0 0.0
    %2676 = vmatpush.msra.mxu0 0.0
    %2677 = vmatpush.msra.mxu0 0.0
    %2678 = vmatpush.msra.mxu0 0.0
    %2679 = vmatpush.msra.mxu0 0.0
    %2680 = vmatpush.msra.mxu0 0.0
    %2681 = vmatpush.msra.mxu0 0.0
    %2682 = vmatpush.msra.mxu0 %v2659
    %2683 = vmatpush.msra.mxu0 %v2657
    %2684 = vmatmul.f32.gmra.mxu0 %v2663
    %v2685 = vpop.f32.mrf.mxu0
    %v2686 = vadd.f32 %v2651, %v2685
    %2687 = vmatmul.f32.gmra.mxu0 %v2666
    %v2688 = vpop.f32.mrf.mxu0
    %v2689 = vadd.f32 %v2654, %v2688
    %2690 = vdwg.mxu0
    %2693 = vrot.lane.b32.xlu0 %v2686, 16
    %v2694 = vpop.permute.xlu0 %2693
    %2695 = vrot.lane.b32.xlu0 %v2689, 16
    %v2696 = vpop.permute.xlu0 %2695
    %2699 = vst.msk [vmem:[#allocation3 + $0x10] sm:$0xff] %vm1256, %v2694
    %2700 = vst.msk [vmem:[#allocation3 + $0x18] sm:$0xff] %vm1256, %v2696
    %2701 = vrot.lane.b32.xlu0 %v128, 104
    %v2702 = vpop.permute.xlu0 %2701
    %2703 = vrot.lane.b32.xlu0 %v131, 104
    %v2704 = vpop.permute.xlu0 %2703
    %v2705 = vsel %vm147, %v2702, 0
    %v2707 = vsel %vm147, %v2704, 0
    %2709 = vmatpush.msra.mxu0 0.0
    %2710 = vmatpush.msra.mxu0 0.0
    %2711 = vmatpush.msra.mxu0 0.0
    %2712 = vmatpush.msra.mxu0 0.0
    %2713 = vmatpush.msra.mxu0 0.0
    %2714 = vmatpush.msra.mxu0 0.0
    %2715 = vmatpush.msra.mxu0 0.0
    %2716 = vmatpush.msra.mxu0 0.0
    %2717 = vmatpush.msra.mxu0 0.0
    %2718 = vmatpush.msra.mxu0 0.0
    %2719 = vmatpush.msra.mxu0 0.0
    %2720 = vmatpush.msra.mxu0 0.0
    %2721 = vmatpush.msra.mxu0 0.0
    %2722 = vmatpush.msra.mxu0 0.0
    %2723 = vmatpush.msra.mxu0 0.0
    %2724 = vmatpush.msra.mxu0 %v140
    %2725 = vmatmul.f32.gmra.mxu0 %v2705
    %v2726 = vpop.f32.mrf.mxu0
    %v2727 = vadd.f32 0.0, %v2726
    %2728 = vmatmul.f32.gmra.mxu0 %v2707
    %v2729 = vpop.f32.mrf.mxu0
    %v2730 = vadd.f32 0.0, %v2729
    %2731 = vdwg.mxu0
    %2733 = vset.pattern.permute.xlu0 0
    %2734 = vperm.xlu0 %2733, %v2727
    %v2735 = vpop.permute.xlu0 %2734
    %2738 = vset.pattern.permute.xlu0 0
    %2739 = vperm.xlu0 %2738, %v2730
    %v2740 = vpop.permute.xlu0 %2739
    %v2742 = vsel %vm177, %v2735, 0.0
    %v2743 = vsel %vm178, %v2740, 0.0
    %2744 = vrot.lane.b32.xlu0 %v128, 72
    %v2745 = vpop.permute.xlu0 %2744
    %2746 = vrot.lane.b32.xlu0 %v131, 72
    %v2747 = vpop.permute.xlu0 %2746
    %v2748 = vsel %vm147, %v2745, 0
    %v2750 = vsel %vm147, %v2747, 0
    %2752 = vmatpush.xpose.msra.mxu0 0.0
    %2753 = vmatpush.xpose.msra.mxu0 0.0
    %2754 = vmatpush.xpose.msra.mxu0 0.0
    %2755 = vmatpush.xpose.msra.mxu0 0.0
    %2756 = vmatpush.xpose.msra.mxu0 0.0
    %2757 = vmatpush.xpose.msra.mxu0 0.0
    %2758 = vmatpush.xpose.msra.mxu0 0.0
    %2759 = vmatpush.xpose.msra.mxu0 0.0
    %2760 = vmatpush.xpose.msra.mxu0 0.0
    %2761 = vmatpush.xpose.msra.mxu0 0.0
    %2762 = vmatpush.xpose.msra.mxu0 0.0
    %2763 = vmatpush.xpose.msra.mxu0 0.0
    %2764 = vmatpush.xpose.msra.mxu0 0.0
    %2765 = vmatpush.xpose.msra.mxu0 0.0
    %2766 = vmatpush.xpose.msra.mxu0 %v2750
    %2767 = vmatpush.xpose.msra.mxu0 %v2748
    %2768 = vmatmul.f32.gmra.mxu0 %v2705
    %v2769 = vpop.f32.mrf.mxu0
    %v2770 = vadd.f32 %v2742, %v2769
    %2771 = vmatmul.f32.gmra.mxu0 %v2707
    %v2772 = vpop.f32.mrf.mxu0
    %v2773 = vadd.f32 %v2743, %v2772
    %2774 = vdwg.mxu0
    %2775 = vset.pattern.permute.xlu0 1
    %2776 = vperm.xlu0 %2775, %v2727
    %v2777 = vpop.permute.xlu0 %2776
    %2779 = vset.pattern.permute.xlu0 1
    %2780 = vperm.xlu0 %2779, %v2730
    %v2781 = vpop.permute.xlu0 %2780
    %v2783 = vsel %vm222, %v2777, 0.0
    %v2784 = vsel %vm223, %v2781, 0.0
    %v2785 = vadd.f32 %v2770, %v2783
    %v2786 = vadd.f32 %v2773, %v2784
    %2787 = vset.pattern.permute.xlu0 2
    %2788 = vperm.xlu0 %2787, %v2727
    %v2789 = vpop.permute.xlu0 %2788
    %2791 = vset.pattern.permute.xlu0 2
    %2792 = vperm.xlu0 %2791, %v2730
    %v2793 = vpop.permute.xlu0 %2792
    %v2795 = vsel %vm236, %v2789, 0.0
    %v2796 = vsel %vm237, %v2793, 0.0
    %v2797 = vadd.f32 %v2785, %v2795
    %v2798 = vadd.f32 %v2786, %v2796
    %2799 = vset.pattern.permute.xlu0 3
    %2800 = vperm.xlu0 %2799, %v2727
    %v2801 = vpop.permute.xlu0 %2800
    %2803 = vset.pattern.permute.xlu0 3
    %2804 = vperm.xlu0 %2803, %v2730
    %v2805 = vpop.permute.xlu0 %2804
    %v2807 = vsel %vm250, %v2801, 0.0
    %v2808 = vsel %vm251, %v2805, 0.0
    %v2809 = vadd.f32 %v2797, %v2807
    %v2810 = vadd.f32 %v2798, %v2808
    %2811 = vset.pattern.permute.xlu0 4
    %2812 = vperm.xlu0 %2811, %v2727
    %v2813 = vpop.permute.xlu0 %2812
    %2815 = vset.pattern.permute.xlu0 4
    %2816 = vperm.xlu0 %2815, %v2730
    %v2817 = vpop.permute.xlu0 %2816
    %v2819 = vsel %vm264, %v2813, 0.0
    %v2820 = vsel %vm265, %v2817, 0.0
    %v2821 = vadd.f32 %v2809, %v2819
    %v2822 = vadd.f32 %v2810, %v2820
    %2823 = vset.pattern.permute.xlu0 5
    %2824 = vperm.xlu0 %2823, %v2727
    %v2825 = vpop.permute.xlu0 %2824
    %2827 = vset.pattern.permute.xlu0 5
    %2828 = vperm.xlu0 %2827, %v2730
    %v2829 = vpop.permute.xlu0 %2828
    %v2831 = vsel %vm278, %v2825, 0.0
    %v2832 = vsel %vm279, %v2829, 0.0
    %v2833 = vadd.f32 %v2821, %v2831
    %v2834 = vadd.f32 %v2822, %v2832
    %2835 = vset.pattern.permute.xlu0 6
    %2836 = vperm.xlu0 %2835, %v2727
    %v2837 = vpop.permute.xlu0 %2836
    %2839 = vset.pattern.permute.xlu0 6
    %2840 = vperm.xlu0 %2839, %v2730
    %v2841 = vpop.permute.xlu0 %2840
    %v2843 = vsel %vm292, %v2837, 0.0
    %v2844 = vsel %vm293, %v2841, 0.0
    %v2845 = vadd.f32 %v2833, %v2843
    %v2846 = vadd.f32 %v2834, %v2844
    %2847 = vset.pattern.permute.xlu0 7
    %2848 = vperm.xlu0 %2847, %v2727
    %v2849 = vpop.permute.xlu0 %2848
    %2851 = vset.pattern.permute.xlu0 7
    %2852 = vperm.xlu0 %2851, %v2730
    %v2853 = vpop.permute.xlu0 %2852
    %v2855 = vsel %vm306, %v2849, 0.0
    %v2856 = vsel %vm307, %v2853, 0.0
    %v2857 = vadd.f32 %v2845, %v2855
    %v2858 = vadd.f32 %v2846, %v2856
    %2859 = vset.pattern.permute.xlu0 8
    %2860 = vperm.xlu0 %2859, %v2727
    %v2861 = vpop.permute.xlu0 %2860
    %2863 = vset.pattern.permute.xlu0 8
    %2864 = vperm.xlu0 %2863, %v2730
    %v2865 = vpop.permute.xlu0 %2864
    %v2867 = vsel %vm320, %v2861, 0.0
    %v2868 = vsel %vm321, %v2865, 0.0
    %v2869 = vadd.f32 %v2857, %v2867
    %v2870 = vadd.f32 %v2858, %v2868
    %v2871 = vsel %vm1797, %v2869, -10000.0
    %v2872 = vsel %vm1798, %v2870, -10000.0
    %v2873 = vsel %vm342, %v2871, -inf
    %2874 = vmax.xlane.f32.xlu0 %v2873
    %v2875 = vpop.xlane.xlu0 %2874
    %v2876 = vsel %vm342, %v2872, -inf
    %2877 = vmax.xlane.f32.xlu0 %v2876
    %v2878 = vpop.xlane.xlu0 %2877
    %v2879 = vsub.f32 %v2871, %v2875
    %v2880 = vsub.f32 %v2872, %v2878
    %v2881 = vmul.f32 %v2879, 1.442695
    %v2882 = vpow.pop %v2881
    %v2883 = vmul.f32 %v2880, 1.442695
    %v2884 = vpow.pop %v2883
    %v2885 = vsel %vm342, %v2882, 0.0
    %2886 = vadd.xlane.f32.xlu0 %v2885
    %v2887 = vpop.xlane.xlu0 %2886
    %v2888 = vsel %vm342, %v2884, 0.0
    %2889 = vadd.xlane.f32.xlu0 %v2888
    %v2890 = vpop.xlane.xlu0 %2889
    %v2891 = vrcp.pop %v2887
    %v2892 = vrcp.pop %v2890
    %v2893 = vmul.f32 %v2882, %v2891
    %v2894 = vmul.f32 %v2884, %v2892
    %v2895 = vsel %vm177, %v2893, 0.0
    %v2896 = vsel %vm178, %v2894, 0.0
    %v2897 = vsel %vm342, %v2895, 0.0
    %2898 = vadd.xlane.f32.xlu0 %v2897
    %v2899 = vpop.xlane.xlu0 %2898
    %v2900 = vsel %vm342, %v2896, 0.0
    %2901 = vadd.xlane.f32.xlu0 %v2900
    %v2902 = vpop.xlane.xlu0 %2901
    %2903 = vst.msk [vmem:[#allocation2] sm:$0xff] %vm373, %v2899
    %2904 = vst.msk [vmem:[#allocation2 + $0x8] sm:$0xff] %vm373, %v2902
    %v2905 = vsel %vm222, %v2893, 0.0
    %v2906 = vsel %vm223, %v2894, 0.0
    %v2907 = vsel %vm342, %v2905, 0.0
    %2908 = vadd.xlane.f32.xlu0 %v2907
    %v2909 = vpop.xlane.xlu0 %2908
    %v2910 = vsel %vm342, %v2906, 0.0
    %2911 = vadd.xlane.f32.xlu0 %v2910
    %v2912 = vpop.xlane.xlu0 %2911
    %2913 = vst.msk [vmem:[#allocation2] sm:$0xff] %vm384, %v2909
    %2914 = vst.msk [vmem:[#allocation2 + $0x8] sm:$0xff] %vm384, %v2912
    %v2915 = vsel %vm236, %v2893, 0.0
    %v2916 = vsel %vm237, %v2894, 0.0
    %v2917 = vsel %vm342, %v2915, 0.0
    %2918 = vadd.xlane.f32.xlu0 %v2917
    %v2919 = vpop.xlane.xlu0 %2918
    %v2920 = vsel %vm342, %v2916, 0.0
    %2921 = vadd.xlane.f32.xlu0 %v2920
    %v2922 = vpop.xlane.xlu0 %2921
    %2923 = vst.msk [vmem:[#allocation2] sm:$0xff] %vm395, %v2919
    %2924 = vst.msk [vmem:[#allocation2 + $0x8] sm:$0xff] %vm395, %v2922
    %v2925 = vsel %vm250, %v2893, 0.0
    %v2926 = vsel %vm251, %v2894, 0.0
    %v2927 = vsel %vm342, %v2925, 0.0
    %2928 = vadd.xlane.f32.xlu0 %v2927
    %v2929 = vpop.xlane.xlu0 %2928
    %v2930 = vsel %vm342, %v2926, 0.0
    %2931 = vadd.xlane.f32.xlu0 %v2930
    %v2932 = vpop.xlane.xlu0 %2931
    %2933 = vst.msk [vmem:[#allocation2] sm:$0xff] %vm406, %v2929
    %2934 = vst.msk [vmem:[#allocation2 + $0x8] sm:$0xff] %vm406, %v2932
    %v2935 = vsel %vm264, %v2893, 0.0
    %v2936 = vsel %vm265, %v2894, 0.0
    %v2937 = vsel %vm342, %v2935, 0.0
    %2938 = vadd.xlane.f32.xlu0 %v2937
    %v2939 = vpop.xlane.xlu0 %2938
    %v2940 = vsel %vm342, %v2936, 0.0
    %2941 = vadd.xlane.f32.xlu0 %v2940
    %v2942 = vpop.xlane.xlu0 %2941
    %2943 = vst.msk [vmem:[#allocation2] sm:$0xff] %vm417, %v2939
    %2944 = vst.msk [vmem:[#allocation2 + $0x8] sm:$0xff] %vm417, %v2942
    %v2945 = vsel %vm278, %v2893, 0.0
    %v2946 = vsel %vm279, %v2894, 0.0
    %v2947 = vsel %vm342, %v2945, 0.0
    %2948 = vadd.xlane.f32.xlu0 %v2947
    %v2949 = vpop.xlane.xlu0 %2948
    %v2950 = vsel %vm342, %v2946, 0.0
    %2951 = vadd.xlane.f32.xlu0 %v2950
    %v2952 = vpop.xlane.xlu0 %2951
    %2953 = vst.msk [vmem:[#allocation2] sm:$0xff] %vm428, %v2949
    %2954 = vst.msk [vmem:[#allocation2 + $0x8] sm:$0xff] %vm428, %v2952
    %v2955 = vsel %vm292, %v2893, 0.0
    %v2956 = vsel %vm293, %v2894, 0.0
    %v2957 = vsel %vm342, %v2955, 0.0
    %2958 = vadd.xlane.f32.xlu0 %v2957
    %v2959 = vpop.xlane.xlu0 %2958
    %v2960 = vsel %vm342, %v2956, 0.0
    %2961 = vadd.xlane.f32.xlu0 %v2960
    %v2962 = vpop.xlane.xlu0 %2961
    %2963 = vst.msk [vmem:[#allocation2] sm:$0xff] %vm439, %v2959
    %2964 = vst.msk [vmem:[#allocation2 + $0x8] sm:$0xff] %vm439, %v2962
    %v2965 = vsel %vm306, %v2893, 0.0
    %v2966 = vsel %vm307, %v2894, 0.0
    %v2967 = vsel %vm342, %v2965, 0.0
    %2968 = vadd.xlane.f32.xlu0 %v2967
    %v2969 = vpop.xlane.xlu0 %2968
    %v2970 = vsel %vm342, %v2966, 0.0
    %2971 = vadd.xlane.f32.xlu0 %v2970
    %v2972 = vpop.xlane.xlu0 %2971
    %2973 = vst.msk [vmem:[#allocation2] sm:$0xff] %vm450, %v2969
    %2974 = vst.msk [vmem:[#allocation2 + $0x8] sm:$0xff] %vm450, %v2972
    %v2975 = vsel %vm320, %v2893, 0.0
    %v2976 = vsel %vm321, %v2894, 0.0
    %v2977 = vsel %vm342, %v2975, 0.0
    %2978 = vadd.xlane.f32.xlu0 %v2977
    %v2979 = vpop.xlane.xlu0 %2978
    %v2980 = vsel %vm342, %v2976, 0.0
    %2981 = vadd.xlane.f32.xlu0 %v2980
    %v2982 = vpop.xlane.xlu0 %2981
    %2983 = vst.msk [vmem:[#allocation2] sm:$0xff] %vm461, %v2979
    %2984 = vst.msk [vmem:[#allocation2 + $0x8] sm:$0xff] %vm461, %v2982
    %v2985 = vld [vmem:[#allocation2] sm:$0xff]
    %v2986 = vld [vmem:[#allocation2 + $0x8] sm:$0xff]
    %v2988 = vsel %vm466, %v2985, 0
    %v2991 = vsel %vm466, %v2986, 0
    %2993 = vmatpush.msra.mxu0 0.0
    %2994 = vmatpush.msra.mxu0 0.0
    %2995 = vmatpush.msra.mxu0 0.0
    %2996 = vmatpush.msra.mxu0 0.0
    %2997 = vmatpush.msra.mxu0 0.0
    %2998 = vmatpush.msra.mxu0 0.0
    %2999 = vmatpush.msra.mxu0 0.0
    %3000 = vmatpush.msra.mxu0 0.0
    %3001 = vmatpush.msra.mxu0 0.0
    %3002 = vmatpush.msra.mxu0 0.0
    %3003 = vmatpush.msra.mxu0 0.0
    %3004 = vmatpush.msra.mxu0 0.0
    %3005 = vmatpush.msra.mxu0 0.0
    %3006 = vmatpush.msra.mxu0 0.0
    %3007 = vmatpush.msra.mxu0 %v475
    %3008 = vmatpush.msra.mxu0 %v141
    %3009 = vmatmul.f32.gmra.mxu0 %v2988
    %v3010 = vpop.f32.mrf.mxu0
    %v3011 = vadd.f32 0.0, %v3010
    %3012 = vmatmul.f32.gmra.mxu0 %v2991
    %v3013 = vpop.f32.mrf.mxu0
    %v3014 = vadd.f32 0.0, %v3013
    %3015 = vdwg.mxu0
    %3016 = vrot.lane.b32.xlu0 %v128, 40
    %v3017 = vpop.permute.xlu0 %3016
    %3018 = vrot.lane.b32.xlu0 %v131, 40
    %v3019 = vpop.permute.xlu0 %3018
    %v3023 = vsel %vm342, %v2893, 0
    %v3026 = vsel %vm342, %v2894, 0
    %3028 = vmatpush.msra.mxu0 0.0
    %3029 = vmatpush.msra.mxu0 0.0
    %3030 = vmatpush.msra.mxu0 0.0
    %3031 = vmatpush.msra.mxu0 0.0
    %3032 = vmatpush.msra.mxu0 0.0
    %3033 = vmatpush.msra.mxu0 0.0
    %3034 = vmatpush.msra.mxu0 0.0
    %3035 = vmatpush.msra.mxu0 0.0
    %3036 = vmatpush.msra.mxu0 0.0
    %3037 = vmatpush.msra.mxu0 0.0
    %3038 = vmatpush.msra.mxu0 0.0
    %3039 = vmatpush.msra.mxu0 0.0
    %3040 = vmatpush.msra.mxu0 0.0
    %3041 = vmatpush.msra.mxu0 0.0
    %3042 = vmatpush.msra.mxu0 %v3019
    %3043 = vmatpush.msra.mxu0 %v3017
    %3044 = vmatmul.f32.gmra.mxu0 %v3023
    %v3045 = vpop.f32.mrf.mxu0
    %v3046 = vadd.f32 %v3011, %v3045
    %3047 = vmatmul.f32.gmra.mxu0 %v3026
    %v3048 = vpop.f32.mrf.mxu0
    %v3049 = vadd.f32 %v3014, %v3048
    %3050 = vdwg.mxu0
    %3053 = vrot.lane.b32.xlu0 %v3046, 24
    %v3054 = vpop.permute.xlu0 %3053
    %3055 = vrot.lane.b32.xlu0 %v3049, 24
    %v3056 = vpop.permute.xlu0 %3055
    %3059 = vst.msk [vmem:[#allocation3 + $0x10] sm:$0xff] %vm1617, %v3054
    %3060 = vst.msk [vmem:[#allocation3 + $0x18] sm:$0xff] %vm1617, %v3056
    %v3061 = vld [vmem:[#allocation3] sm:$0xff]
    %v3062 = vld [vmem:[#allocation3 + $0x8] sm:$0xff]
    %v3063 = vld [vmem:[#allocation3 + $0x10] sm:$0xff]
    %v3064 = vld [vmem:[#allocation3 + $0x18] sm:$0xff]
    %v3065 = vld [vmem:[#allocation9] sm:$0xff]
    %v3066 = vld [vmem:[#allocation9 + $0x8] sm:$0xff]
    %v3067 = vld [vmem:[#allocation9 + $0x10] sm:$0xff]
    %v3068 = vld [vmem:[#allocation9 + $0x18] sm:$0xff]
    %v3069 = vld [vmem:[%s4] sm:$0x1]
    %v3071 = vperm.slane %v3069, 0
    %v3074 = vsel %vm91, %v3061, 0
    %v3077 = vsel %vm91, %v3062, 0
    %v3080 = vsel %vm91, %v3063, 0
    %v3083 = vsel %vm91, %v3064, 0
    %3085 = vmatpush.msra.mxu0 0.0
    %3086 = vmatpush.msra.mxu0 0.0
    %3087 = vmatpush.msra.mxu0 0.0
    %3088 = vmatpush.msra.mxu0 0.0
    %3089 = vmatpush.msra.mxu0 0.0
    %3090 = vmatpush.msra.mxu0 0.0
    %3091 = vmatpush.msra.mxu0 0.0
    %3092 = vmatpush.msra.mxu0 0.0
    %3093 = vmatpush.msra.mxu0 0.0
    %3094 = vmatpush.msra.mxu0 0.0
    %3095 = vmatpush.msra.mxu0 0.0
    %3096 = vmatpush.msra.mxu0 0.0
    %3097 = vmatpush.msra.mxu0 %v3068
    %3098 = vmatpush.msra.mxu0 %v3067
    %3099 = vmatpush.msra.mxu0 %v3066
    %3100 = vmatpush.msra.mxu0 %v3065
    %3101 = vmatmul.f32.gmra.mxu0 %v3074
    %v3102 = vpop.f32.mrf.mxu0
    %v3103 = vadd.f32 %v3071, %v3102
    %3104 = vmatmul.f32.gmra.mxu0 %v3077
    %v3105 = vpop.f32.mrf.mxu0
    %v3106 = vadd.f32 %v3071, %v3105
    %3107 = vmatmul.f32.gmra.mxu0 %v3080
    %v3108 = vpop.f32.mrf.mxu0
    %v3109 = vadd.f32 %v3071, %v3108
    %3110 = vmatmul.f32.gmra.mxu0 %v3083
    %v3111 = vpop.f32.mrf.mxu0
    %v3112 = vadd.f32 %v3071, %v3111
    %3113 = vdwg.mxu0
    %3114 = vst.msk [vmem:[#allocation10] sm:$0xff] %vm91, %v3103
    %3115 = vst.msk [vmem:[#allocation10 + $0x8] sm:$0xff] %vm91, %v3106
    %3116 = vst.msk [vmem:[#allocation10 + $0x10] sm:$0xff] %vm91, %v3109
    %3117 = vst.msk [vmem:[#allocation10 + $0x18] sm:$0xff] %vm91, %v3112
    // Predicated region
    $region46: #{tpu_custom_call.1} parent=1 // pred_check
      _
    $region47: #{tpu_custom_call.1} parent=1 // pred_check_branch
      %3119 = sbr.rel (0) target = $region49
    $region48: #{tpu_custom_call.1} parent=1 // pred_region
      %3121 = vsyncadd [#allocation6], 0
      %s3122 = sshll.u32 [#allocation10], 4
      %s3123 = int_to_ptr.vmem [resolvable:$true] %s3122
      %s3124 = sshll.u32 %s8, 4
      %s3125 = int_to_ptr.hbm [resolvable:$true] %s3124
      %3130 = dma.vmem_to_hbm [thread:$0]  %s3123, 512, %s3125, [#allocation6], 128, 128, 8
    $region49: #{tpu_custom_call.1} parent=1 // pred_fallthru
      _
    // Predicated region
    $region50: #{tpu_custom_call.1} parent=1 // pred_check
      _
    $region51: #{tpu_custom_call.1} parent=1 // pred_check_branch
      %3132 = sbr.rel (0) target = $region53
    $region52: #{tpu_custom_call.1} parent=1 // pred_region
      %3134 = dma.done [#allocation6], 512
    $region53: #{tpu_custom_call.1} parent=1 // pred_fallthru
      _
    %3135 = vsyncpa [#allocation5], 1
    %3136 = vsyncpa [#allocation8], 1
    %3137 = vsyncpa [#allocation6], 1

</llo_original>
